<compile_context>
chip_gen: v6e
topology: v6e:2x2x1
jax: 0.10.0
libtpu: 0.0.40
codegen_flags: <defaults>
</compile_context>

<pallas_src>
import functools

import jax
import jax.numpy as jnp
from jax.experimental import pallas as pl
from jax.experimental.pallas import tpu as pltpu


def _hake_kernel(x_ref, wb_ref, bb_ref, wp_ref, bp_ref, lam_ref, out_ref):
    x = x_ref[...]                 # (3, TE, D) f32: [head; tail; |rel|]
    head = x[0]                    # (TE, D)
    tail = x[1]                    # (TE, D)
    rel = x[2]                     # (TE, D)  already abs()'d in the wrapper
    te, d = head.shape

    wb = wb_ref[...]               # (D, D)  bias_estimator.weight^T
    bb = bb_ref[...]               # (1, D)
    wp = wp_ref[...]               # (D, D)  phase_estimator.weight^T
    bp = bp_ref[...]               # (1, D)
    lam = lam_ref[0]               # scalar lambda_param (SMEM)

    # ---- modulus part ----
    bias = jnp.dot(rel, wb, preferred_element_type=jnp.float32) + bb
    bias = jnp.minimum(bias, 1.0)              # torch.clamp(max=1)
    bias = jnp.where(bias < -rel, rel, bias)   # bias[bias < -rel] = rel  (after clamp)
    modv = head * rel + (head + tail) * bias - tail
    mod_sq = jnp.sum(modv * modv, axis=-1)     # (TE,)

    # ---- phase part (single fused matmul for head/tail/rel) ----
    p = jnp.dot(x.reshape(3 * te, d), wp,
                preferred_element_type=jnp.float32) + bp   # (3*TE, D)
    ph = p[:te]
    pt = p[te:2 * te]
    pr = p[2 * te:]

    sA = jnp.sqrt(1.0 - ph * ph)   # sin(acos(ph)), acos range [0, pi] => sin >= 0
    sB = jnp.sqrt(1.0 - pr * pr)
    sC = jnp.sqrt(1.0 - pt * pt)
    # sin(acos(ph) + acos(pr) - acos(pt))
    sin_val = (sA * pr + ph * sB) * pt - (ph * pr - sA * sB) * sC
    phase_score = jnp.sum(jnp.abs(sin_val), axis=-1)       # (TE,)

    score = jnp.sqrt(mod_sq) + lam * phase_score           # (TE,)
    out_ref[...] = score.reshape(1, 1, te)                 # lane-dense store


def _round_up(x, m):
    return (x + m - 1) // m * m


@functools.partial(jax.jit, static_argnames=("block_e",))
def hake_forward(h, g, edge_idx, edge_type, params, *, block_e=256):
    """h: [N, D], g: [R, D], edge_idx: [2, E] int32, edge_type: [E] int32."""
    assert block_e % 128 == 0, "block_e must be a multiple of 128 (lane-dense output)"
    wb_t, bb, wp_t, bp, lam = params
    row, col = edge_idx[0], edge_idx[1]

    D = h.shape[1]
    E = edge_type.shape[0]

    # Gathers stay in XLA glue; the hot path (matmuls / elementwise / reductions)
    # runs inside the Pallas kernel.
    # TODO(synk): if profiling shows HBM-bound, move the gathers in-kernel via
    # PrefetchScalarGridSpec + manual make_async_copy double-buffering instead of
    # materializing the [3, E, D] gathered array in HBM.
    head = h[row, :]                       # [E, D]
    tail = h[col, :]                       # [E, D]
    rel = jnp.abs(g[edge_type, :])         # [E, D]  rel_mod = |g[edge_type]|
    x = jnp.stack([head, tail, rel], axis=0)          # [3, E, D]

    e_pad = _round_up(max(E, 1), block_e)
    if e_pad != E:
        x = jnp.pad(x, ((0, 0), (0, e_pad - E), (0, 0)))
    num_tiles = e_pad // block_e

    bb2 = bb.reshape(1, D).astype(jnp.float32)
    bp2 = bp.reshape(1, D).astype(jnp.float32)
    lam1 = lam.reshape(1).astype(jnp.float32)          # scalar -> SMEM

    flops = 2 * 4 * e_pad * D * D + 16 * e_pad * D     # 2 fused matmuls + elementwise
    transcendentals = 4 * e_pad * D                    # sqrt's
    bytes_accessed = (3 * e_pad * D + 2 * D * D + 2 * D + e_pad) * 4

    score = pl.pallas_call(
        _hake_kernel,
        out_shape=jax.ShapeDtypeStruct((num_tiles, 1, block_e), jnp.float32),
        grid=(num_tiles,),
        in_specs=[
            pl.BlockSpec((3, block_e, D), lambda i: (0, i, 0)),   # stacked edges
            pl.BlockSpec((D, D), lambda i: (0, 0)),               # wb^T (resident)
            pl.BlockSpec((1, D), lambda i: (0, 0)),               # bb
            pl.BlockSpec((D, D), lambda i: (0, 0)),               # wp^T (resident)
            pl.BlockSpec((1, D), lambda i: (0, 0)),               # bp
            pl.BlockSpec(memory_space=pltpu.MemorySpace.SMEM),    # lambda scalar
        ],
        out_specs=pl.BlockSpec((1, 1, block_e), lambda i: (i, 0, 0)),
        compiler_params=pltpu.CompilerParams(
            dimension_semantics=("parallel",),
            vmem_limit_bytes=48 * 1024 * 1024),
        cost_estimate=pl.CostEstimate(
            flops=flops,
            transcendentals=transcendentals,
            bytes_accessed=bytes_accessed),
    )(x, wb_t, bb2, wp_t, bp2, lam1)

    return score.reshape(-1)[:E]           # [E]


def init_hake_params(key, embedding_size):
    """Deterministic init mirroring Hake.init_params (xavier_normal, gain=1.414)."""
    D = embedding_size
    k1, k2 = jax.random.split(key)
    std = 1.414 * jnp.sqrt(2.0 / (D + D))
    wb = jax.random.normal(k1, (D, D), jnp.float32) * std   # bias_estimator.weight
    wp = jax.random.normal(k2, (D, D), jnp.float32) * std   # phase_estimator.weight
    bb = jnp.zeros((D,), jnp.float32)
    bp = jnp.zeros((D,), jnp.float32)
    lam = jnp.array([0.5], jnp.float32)
    # pass weights transposed so the kernel does x @ W^T directly
    return (wb.T, bb, wp.T, bp, lam)


def hake_reference(h, g, edge_idx, edge_type, params):
    """Pure-JAX reference mirroring the torch forward (acos/sin form)."""
    wb_t, bb, wp_t, bp, lam = params
    row, col = edge_idx[0], edge_idx[1]
    head = h[row, :]
    tail = h[col, :]
    rel = jnp.abs(g[edge_type, :])
    bias = rel @ wb_t + bb
    bias = jnp.minimum(bias, 1.0)
    bias = jnp.where(bias < -rel, rel, bias)
    mod_score = jnp.sqrt(jnp.sum(
        (head * rel + (head + tail) * bias - tail) ** 2, axis=-1))
    hp = 2.0 * jnp.arccos(head @ wp_t + bp)
    tp = 2.0 * jnp.arccos(tail @ wp_t + bp)
    rp = 2.0 * jnp.arccos(rel @ wp_t + bp)
    phase_score = jnp.sum(jnp.abs(jnp.sin((hp + rp - tp) / 2.0)), axis=-1)
    return mod_score + lam[0] * phase_score


if __name__ == "__main__":
    key = jax.random.PRNGKey(0)
    D = 32          # embedding_size
    N = 10          # number of entities
    R = 5           # number of relation types
    E = 16          # number of edges

    k_h, k_g, k_row, k_col, k_et, k_p = jax.random.split(key, 6)
    # keep embeddings small so phase_estimator outputs stay inside the acos domain
    h = 0.1 * jax.random.normal(k_h, (N, D), jnp.float32)
    g = 0.1 * jax.random.normal(k_g, (R, D), jnp.float32)
    row = jax.random.randint(k_row, (E,), 0, N, dtype=jnp.int32)
    col = jax.random.randint(k_col, (E,), 0, N, dtype=jnp.int32)
    edge_idx = jnp.stack([row, col], axis=0)                 # [2, E]
    edge_type = jax.random.randint(k_et, (E,), 0, R, dtype=jnp.int32)

    params = init_hake_params(k_p, D)

    score = hake_forward(h, g, edge_idx, edge_type, params, block_e=256)
    jax.block_until_ready(score)
    assert score.shape == (E,)

    ref = hake_reference(h, g, edge_idx, edge_type, params)
    assert bool(jnp.all(jnp.isfinite(score)))
    assert bool(jnp.allclose(score, ref, rtol=2e-3, atol=2e-3)), (score, ref)
    print("KERNEL_OK")
</pallas_src>

<mosaic_0001>
module attributes {stable_mosaic.version = 11 : i64} {
  func.func @_hake_kernel(%arg0: i32, %arg1: memref<3x256x32xf32, #tpu.memory_space<vmem>>, %arg2: memref<32x32xf32, #tpu.memory_space<vmem>>, %arg3: memref<1x32xf32, #tpu.memory_space<vmem>>, %arg4: memref<32x32xf32, #tpu.memory_space<vmem>>, %arg5: memref<1x32xf32, #tpu.memory_space<vmem>>, %arg6: memref<1xf32, #tpu.memory_space<smem>>, %arg7: memref<1x1x256xf32, #tpu.memory_space<vmem>>) attributes {dimension_semantics = [#tpu.dimension_semantics<parallel>], iteration_bounds = array<i64: 1>, scalar_prefetch = 0 : i64, scratch_operands = 0 : i64, tpu.core_type = #tpu.core_type<tc>, window_params = [{transform_indices = @transform_0, window_bounds = array<i64: 3, 256, 32>}, {pipeline_mode = #tpu.pipeline_mode<synchronous>, transform_indices = @transform_1, window_bounds = array<i64: 32, 32>}, {pipeline_mode = #tpu.pipeline_mode<synchronous>, transform_indices = @transform_2, window_bounds = array<i64: 1, 32>}, {pipeline_mode = #tpu.pipeline_mode<synchronous>, transform_indices = @transform_3, window_bounds = array<i64: 32, 32>}, {pipeline_mode = #tpu.pipeline_mode<synchronous>, transform_indices = @transform_4, window_bounds = array<i64: 1, 32>}, {transform_indices = @transform_5, window_bounds = array<i64: 1>}, {transform_indices = @transform_6, window_bounds = array<i64: 1, 1, 256>}]} {
    %c0 = arith.constant 0 : index
    %c0_0 = arith.constant 0 : index
    %c0_1 = arith.constant 0 : index
    %0 = vector.load %arg1[%c0, %c0_0, %c0_1] : memref<3x256x32xf32, #tpu.memory_space<vmem>>, vector<3x256x32xf32>
    %1 = vector.extract_strided_slice %0 {offsets = [0, 0, 0], sizes = [1, 256, 32], strides = [1, 1, 1]} : vector<3x256x32xf32> to vector<1x256x32xf32>
    %2 = vector.shape_cast %1 : vector<1x256x32xf32> to vector<256x32xf32>
    %3 = vector.extract_strided_slice %0 {offsets = [1, 0, 0], sizes = [1, 256, 32], strides = [1, 1, 1]} : vector<3x256x32xf32> to vector<1x256x32xf32>
    %4 = vector.shape_cast %3 : vector<1x256x32xf32> to vector<256x32xf32>
    %5 = vector.extract_strided_slice %0 {offsets = [2, 0, 0], sizes = [1, 256, 32], strides = [1, 1, 1]} : vector<3x256x32xf32> to vector<1x256x32xf32>
    %6 = vector.shape_cast %5 : vector<1x256x32xf32> to vector<256x32xf32>
    %c0_2 = arith.constant 0 : index
    %c0_3 = arith.constant 0 : index
    %7 = vector.load %arg2[%c0_2, %c0_3] : memref<32x32xf32, #tpu.memory_space<vmem>>, vector<32x32xf32>
    %c0_4 = arith.constant 0 : index
    %c0_5 = arith.constant 0 : index
    %8 = vector.load %arg3[%c0_4, %c0_5] : memref<1x32xf32, #tpu.memory_space<vmem>>, vector<1x32xf32>
    %c0_6 = arith.constant 0 : index
    %c0_7 = arith.constant 0 : index
    %9 = vector.load %arg4[%c0_6, %c0_7] : memref<32x32xf32, #tpu.memory_space<vmem>>, vector<32x32xf32>
    %c0_8 = arith.constant 0 : index
    %c0_9 = arith.constant 0 : index
    %10 = vector.load %arg5[%c0_8, %c0_9] : memref<1x32xf32, #tpu.memory_space<vmem>>, vector<1x32xf32>
    %c0_10 = arith.constant 0 : index
    %11 = memref.load %arg6[%c0_10] : memref<1xf32, #tpu.memory_space<smem>>
    %cst = arith.constant dense<0.000000e+00> : vector<256x32xf32>
    %12 = tpu.matmul %6, %7, %cst {dimension_numbers = #tpu.dot_dimension_numbers<[1], [0], [0], [1], [0, 0, 1, 1], [], []>} : vector<256x32xf32>, vector<32x32xf32>, vector<256x32xf32> -> vector<256x32xf32>
    %13 = vector.broadcast %8 : vector<1x32xf32> to vector<256x32xf32>
    %14 = arith.addf %12, %13 : vector<256x32xf32>
    %cst_11 = arith.constant 1.000000e+00 : f32
    %15 = vector.broadcast %cst_11 : f32 to vector<256x32xf32>
    %16 = arith.minimumf %14, %15 : vector<256x32xf32>
    %cst_12 = arith.constant 0.000000e+00 : f32
    %17 = vector.broadcast %cst_12 : f32 to vector<256x32xf32>
    %18 = arith.subf %17, %6 : vector<256x32xf32>
    %19 = arith.cmpf olt, %16, %18 : vector<256x32xf32>
    %20 = arith.select %19, %6, %16 : vector<256x32xi1>, vector<256x32xf32>
    %21 = arith.mulf %2, %6 : vector<256x32xf32>
    %22 = arith.addf %2, %4 : vector<256x32xf32>
    %23 = arith.mulf %22, %20 : vector<256x32xf32>
    %24 = arith.addf %21, %23 : vector<256x32xf32>
    %25 = arith.subf %24, %4 : vector<256x32xf32>
    %26 = arith.mulf %25, %25 : vector<256x32xf32>
    %cst_13 = arith.constant dense<0.000000e+00> : vector<256xf32>
    %27 = vector.multi_reduction <add>, %26, %cst_13 [1] : vector<256x32xf32> to vector<256xf32>
    %28 = vector.shape_cast %0 : vector<3x256x32xf32> to vector<768x32xf32>
    %cst_14 = arith.constant dense<0.000000e+00> : vector<768x32xf32>
    %29 = tpu.matmul %28, %9, %cst_14 {dimension_numbers = #tpu.dot_dimension_numbers<[1], [0], [0], [1], [0, 0, 1, 1], [], []>} : vector<768x32xf32>, vector<32x32xf32>, vector<768x32xf32> -> vector<768x32xf32>
    %30 = vector.broadcast %10 : vector<1x32xf32> to vector<768x32xf32>
    %31 = arith.addf %29, %30 : vector<768x32xf32>
    %32 = vector.extract_strided_slice %31 {offsets = [0, 0], sizes = [256, 32], strides = [1, 1]} : vector<768x32xf32> to vector<256x32xf32>
    %33 = vector.extract_strided_slice %31 {offsets = [256, 0], sizes = [256, 32], strides = [1, 1]} : vector<768x32xf32> to vector<256x32xf32>
    %34 = vector.extract_strided_slice %31 {offsets = [512, 0], sizes = [256, 32], strides = [1, 1]} : vector<768x32xf32> to vector<256x32xf32>
    %35 = arith.mulf %32, %32 : vector<256x32xf32>
    %cst_15 = arith.constant 1.000000e+00 : f32
    %36 = vector.broadcast %cst_15 : f32 to vector<256x32xf32>
    %37 = arith.subf %36, %35 : vector<256x32xf32>
    %38 = math.sqrt %37 : vector<256x32xf32>
    %39 = arith.mulf %34, %34 : vector<256x32xf32>
    %cst_16 = arith.constant 1.000000e+00 : f32
    %40 = vector.broadcast %cst_16 : f32 to vector<256x32xf32>
    %41 = arith.subf %40, %39 : vector<256x32xf32>
    %42 = math.sqrt %41 : vector<256x32xf32>
    %43 = arith.mulf %33, %33 : vector<256x32xf32>
    %cst_17 = arith.constant 1.000000e+00 : f32
    %44 = vector.broadcast %cst_17 : f32 to vector<256x32xf32>
    %45 = arith.subf %44, %43 : vector<256x32xf32>
    %46 = math.sqrt %45 : vector<256x32xf32>
    %47 = arith.mulf %38, %34 : vector<256x32xf32>
    %48 = arith.mulf %32, %42 : vector<256x32xf32>
    %49 = arith.addf %47, %48 : vector<256x32xf32>
    %50 = arith.mulf %49, %33 : vector<256x32xf32>
    %51 = arith.mulf %32, %34 : vector<256x32xf32>
    %52 = arith.mulf %38, %42 : vector<256x32xf32>
    %53 = arith.subf %51, %52 : vector<256x32xf32>
    %54 = arith.mulf %53, %46 : vector<256x32xf32>
    %55 = arith.subf %50, %54 : vector<256x32xf32>
    %56 = math.absf %55 : vector<256x32xf32>
    %cst_18 = arith.constant dense<0.000000e+00> : vector<256xf32>
    %57 = vector.multi_reduction <add>, %56, %cst_18 [1] : vector<256x32xf32> to vector<256xf32>
    %58 = math.sqrt %27 : vector<256xf32>
    %59 = vector.broadcast %11 : f32 to vector<256xf32>
    %60 = arith.mulf %59, %57 : vector<256xf32>
    %61 = arith.addf %58, %60 : vector<256xf32>
    %62 = vector.shape_cast %61 : vector<256xf32> to vector<1x1x256xf32>
    %c0_19 = arith.constant 0 : index
    %c0_20 = arith.constant 0 : index
    %c0_21 = arith.constant 0 : index
    %63 = vector.load %arg7[%c0_19, %c0_20, %c0_21] : memref<1x1x256xf32, #tpu.memory_space<vmem>>, vector<1x1x256xf32>
    tpu.vector_store %arg7[%c0_19, %c0_20, %c0_21], %62 {strides = array<i32>} : memref<1x1x256xf32, #tpu.memory_space<vmem>>, vector<1x1x256xf32>,
    return
  }
  func.func @transform_0(%arg0: i32) -> (i32, i32, i32) {
    %c0_i32 = arith.constant 0 : i32
    %c0_i32_0 = arith.constant 0 : i32
    %c0_i32_1 = arith.constant 0 : i32
    return %c0_i32, %arg0, %c0_i32_0 : i32, i32, i32
  }
  func.func @transform_1(%arg0: i32) -> (i32, i32) {
    %c0_i32 = arith.constant 0 : i32
    %c0_i32_0 = arith.constant 0 : i32
    %c0_i32_1 = arith.constant 0 : i32
    return %c0_i32, %c0_i32_0 : i32, i32
  }
  func.func @transform_2(%arg0: i32) -> (i32, i32) {
    %c0_i32 = arith.constant 0 : i32
    %c0_i32_0 = arith.constant 0 : i32
    %c0_i32_1 = arith.constant 0 : i32
    return %c0_i32, %c0_i32_0 : i32, i32
  }
  func.func @transform_3(%arg0: i32) -> (i32, i32) {
    %c0_i32 = arith.constant 0 : i32
    %c0_i32_0 = arith.constant 0 : i32
    %c0_i32_1 = arith.constant 0 : i32
    return %c0_i32, %c0_i32_0 : i32, i32
  }
  func.func @transform_4(%arg0: i32) -> (i32, i32) {
    %c0_i32 = arith.constant 0 : i32
    %c0_i32_0 = arith.constant 0 : i32
    %c0_i32_1 = arith.constant 0 : i32
    return %c0_i32, %c0_i32_0 : i32, i32
  }
  func.func @transform_5(%arg0: i32) -> i32 {
    %c0_i32 = arith.constant 0 : i32
    %c0_i32_0 = arith.constant 0 : i32
    return %c0_i32 : i32
  }
  func.func @transform_6(%arg0: i32) -> (i32, i32, i32) {
    %c0_i32 = arith.constant 0 : i32
    %c0_i32_0 = arith.constant 0 : i32
    %c0_i32_1 = arith.constant 0 : i32
    return %arg0, %c0_i32, %c0_i32_0 : i32, i32, i32
  }
}

</mosaic_0001>

<llo_original>
// kernel: hake_forward.1
$region0: #{hake_forward.1}
  #allocation0 [shape = 'u32[]', space=smem, size = 0x4, offset = 0x4, fixed_abs, tag = 'smem constant byte address 0x4 - core index']
  #allocation1 [shape = 'u32[144,128]{1,0:T(1,128)}', space=vmem, size = 0x12000, scoped, tag = 'internal scratch']
  #allocation2 [shape = 'f32[1]{0:T(128)S(6)}', space=smem, size = 0x200, scoped, tag = 'scoped memory for hake_forward.1']
  %s0 = inlined_call_operand.vmem [shape: f32[3,256,32], index: 0, kind: input, shape index: {}]
  %s1 = inlined_call_operand.vmem [shape: f32[32,32], index: 1, kind: input, shape index: {}]
  %s2 = inlined_call_operand.vmem [shape: f32[1,32], index: 2, kind: input, shape index: {}]
  %s3 = inlined_call_operand.vmem [shape: f32[32,32], index: 3, kind: input, shape index: {}]
  %s4 = inlined_call_operand.vmem [shape: f32[1,32], index: 4, kind: input, shape index: {}]
  %s5 = inlined_call_operand.<no memory space> [shape: f32[1], index: 5, kind: input, shape index: {}]
  %s6 = inlined_call_operand.vmem [shape: f32[1,1,256], index: 6, kind: output, shape index: {}]
  %s7 = sld [smem:[#allocation0]]
  $region34: #{hake_forward.1} parent=0
    _
  %s9 = ssub.s32 1, %s7
  %s10 = scalar_select 0, %s9, %s7
  %11 = sst [smem:[#allocation2]] %s5
  // Predicated region
  $region2: #{hake_forward.1} parent=0 // pred_check
    _
  $region3: #{hake_forward.1} parent=0 // pred_check_branch
    %13 = sbr.rel (0) target = $region5
  $region4: #{hake_forward.1} parent=0 // pred_region
    _
  $region5: #{hake_forward.1} parent=0 // pred_fallthru
    _
  // Predicated region
  $region6: #{hake_forward.1} parent=0 // pred_check
    _
  $region7: #{hake_forward.1} parent=0 // pred_check_branch
    %15 = sbr.rel (0) target = $region9
  $region8: #{hake_forward.1} parent=0 // pred_region
    _
  $region9: #{hake_forward.1} parent=0 // pred_fallthru
    _
  // Predicated region
  $region10: #{hake_forward.1} parent=0 // pred_check
    _
  $region11: #{hake_forward.1} parent=0 // pred_check_branch
    %17 = sbr.rel (0) target = $region13
  $region12: #{hake_forward.1} parent=0 // pred_region
    _
  $region13: #{hake_forward.1} parent=0 // pred_fallthru
    _
  // Predicated region
  $region14: #{hake_forward.1} parent=0 // pred_check
    _
  $region15: #{hake_forward.1} parent=0 // pred_check_branch
    %19 = sbr.rel (0) target = $region17
  $region16: #{hake_forward.1} parent=0 // pred_region
    _
  $region17: #{hake_forward.1} parent=0 // pred_fallthru
    _
  // Predicated region
  $region18: #{hake_forward.1} parent=0 // pred_check
    _
  $region19: #{hake_forward.1} parent=0 // pred_check_branch
    %21 = sbr.rel (0) target = $region21
  $region20: #{hake_forward.1} parent=0 // pred_region
    _
  $region21: #{hake_forward.1} parent=0 // pred_fallthru
    _
  // Predicated region
  $region22: #{hake_forward.1} parent=0 // pred_check
    _
  $region23: #{hake_forward.1} parent=0 // pred_check_branch
    %23 = sbr.rel (0) target = $region25
  $region24: #{hake_forward.1} parent=0 // pred_region
    _
  $region25: #{hake_forward.1} parent=0 // pred_fallthru
    _
  %v24 = vld [vmem:[%s0] sm:$0xff]
  %v25 = vld [vmem:[%s0 + $0x8] sm:$0xff]
  %v26 = vld [vmem:[%s0 + $0x10] sm:$0xff]
  %v27 = vld [vmem:[%s0 + $0x18] sm:$0xff]
  %v28 = vld [vmem:[%s0 + $0x20] sm:$0xff]
  %v29 = vld [vmem:[%s0 + $0x28] sm:$0xff]
  %v30 = vld [vmem:[%s0 + $0x30] sm:$0xff]
  %v31 = vld [vmem:[%s0 + $0x38] sm:$0xff]
  %v32 = vld [vmem:[%s0 + $0x40] sm:$0xff]
  %v33 = vld [vmem:[%s0 + $0x48] sm:$0xff]
  %v34 = vld [vmem:[%s0 + $0x50] sm:$0xff]
  %v35 = vld [vmem:[%s0 + $0x58] sm:$0xff]
  %v36 = vld [vmem:[%s0 + $0x60] sm:$0xff]
  %v37 = vld [vmem:[%s0 + $0x68] sm:$0xff]
  %v38 = vld [vmem:[%s0 + $0x70] sm:$0xff]
  %v39 = vld [vmem:[%s0 + $0x78] sm:$0xff]
  %v40 = vld [vmem:[%s0 + $0x80] sm:$0xff]
  %v41 = vld [vmem:[%s0 + $0x88] sm:$0xff]
  %v42 = vld [vmem:[%s0 + $0x90] sm:$0xff]
  %v43 = vld [vmem:[%s0 + $0x98] sm:$0xff]
  %v44 = vld [vmem:[%s0 + $0xa0] sm:$0xff]
  %v45 = vld [vmem:[%s0 + $0xa8] sm:$0xff]
  %v46 = vld [vmem:[%s0 + $0xb0] sm:$0xff]
  %v47 = vld [vmem:[%s0 + $0xb8] sm:$0xff]
  %v48 = vld [vmem:[%s0 + $0xc0] sm:$0xff]
  %v49 = vld [vmem:[%s0 + $0xc8] sm:$0xff]
  %v50 = vld [vmem:[%s0 + $0xd0] sm:$0xff]
  %v51 = vld [vmem:[%s0 + $0xd8] sm:$0xff]
  %v52 = vld [vmem:[%s0 + $0xe0] sm:$0xff]
  %v53 = vld [vmem:[%s0 + $0xe8] sm:$0xff]
  %v54 = vld [vmem:[%s0 + $0xf0] sm:$0xff]
  %v55 = vld [vmem:[%s0 + $0xf8] sm:$0xff]
  %v56 = vld [vmem:[%s0 + $0x100] sm:$0xff]
  %v57 = vld [vmem:[%s0 + $0x108] sm:$0xff]
  %v58 = vld [vmem:[%s0 + $0x110] sm:$0xff]
  %v59 = vld [vmem:[%s0 + $0x118] sm:$0xff]
  %v60 = vld [vmem:[%s0 + $0x120] sm:$0xff]
  %v61 = vld [vmem:[%s0 + $0x128] sm:$0xff]
  %v62 = vld [vmem:[%s0 + $0x130] sm:$0xff]
  %v63 = vld [vmem:[%s0 + $0x138] sm:$0xff]
  %v64 = vld [vmem:[%s0 + $0x140] sm:$0xff]
  %v65 = vld [vmem:[%s0 + $0x148] sm:$0xff]
  %v66 = vld [vmem:[%s0 + $0x150] sm:$0xff]
  %v67 = vld [vmem:[%s0 + $0x158] sm:$0xff]
  %v68 = vld [vmem:[%s0 + $0x160] sm:$0xff]
  %v69 = vld [vmem:[%s0 + $0x168] sm:$0xff]
  %v70 = vld [vmem:[%s0 + $0x170] sm:$0xff]
  %v71 = vld [vmem:[%s0 + $0x178] sm:$0xff]
  %v72 = vld [vmem:[%s0 + $0x180] sm:$0xff]
  %v73 = vld [vmem:[%s0 + $0x188] sm:$0xff]
  %v74 = vld [vmem:[%s0 + $0x190] sm:$0xff]
  %v75 = vld [vmem:[%s0 + $0x198] sm:$0xff]
  %v76 = vld [vmem:[%s0 + $0x1a0] sm:$0xff]
  %v77 = vld [vmem:[%s0 + $0x1a8] sm:$0xff]
  %v78 = vld [vmem:[%s0 + $0x1b0] sm:$0xff]
  %v79 = vld [vmem:[%s0 + $0x1b8] sm:$0xff]
  %v80 = vld [vmem:[%s0 + $0x1c0] sm:$0xff]
  %v81 = vld [vmem:[%s0 + $0x1c8] sm:$0xff]
  %v82 = vld [vmem:[%s0 + $0x1d0] sm:$0xff]
  %v83 = vld [vmem:[%s0 + $0x1d8] sm:$0xff]
  %v84 = vld [vmem:[%s0 + $0x1e0] sm:$0xff]
  %v85 = vld [vmem:[%s0 + $0x1e8] sm:$0xff]
  %v86 = vld [vmem:[%s0 + $0x1f0] sm:$0xff]
  %v87 = vld [vmem:[%s0 + $0x1f8] sm:$0xff]
  %v88 = vld [vmem:[%s0 + $0x200] sm:$0xff]
  %v89 = vld [vmem:[%s0 + $0x208] sm:$0xff]
  %v90 = vld [vmem:[%s0 + $0x210] sm:$0xff]
  %v91 = vld [vmem:[%s0 + $0x218] sm:$0xff]
  %v92 = vld [vmem:[%s0 + $0x220] sm:$0xff]
  %v93 = vld [vmem:[%s0 + $0x228] sm:$0xff]
  %v94 = vld [vmem:[%s0 + $0x230] sm:$0xff]
  %v95 = vld [vmem:[%s0 + $0x238] sm:$0xff]
  %v96 = vld [vmem:[%s0 + $0x240] sm:$0xff]
  %v97 = vld [vmem:[%s0 + $0x248] sm:$0xff]
  %v98 = vld [vmem:[%s0 + $0x250] sm:$0xff]
  %v99 = vld [vmem:[%s0 + $0x258] sm:$0xff]
  %v100 = vld [vmem:[%s0 + $0x260] sm:$0xff]
  %v101 = vld [vmem:[%s0 + $0x268] sm:$0xff]
  %v102 = vld [vmem:[%s0 + $0x270] sm:$0xff]
  %v103 = vld [vmem:[%s0 + $0x278] sm:$0xff]
  %v104 = vld [vmem:[%s0 + $0x280] sm:$0xff]
  %v105 = vld [vmem:[%s0 + $0x288] sm:$0xff]
  %v106 = vld [vmem:[%s0 + $0x290] sm:$0xff]
  %v107 = vld [vmem:[%s0 + $0x298] sm:$0xff]
  %v108 = vld [vmem:[%s0 + $0x2a0] sm:$0xff]
  %v109 = vld [vmem:[%s0 + $0x2a8] sm:$0xff]
  %v110 = vld [vmem:[%s0 + $0x2b0] sm:$0xff]
  %v111 = vld [vmem:[%s0 + $0x2b8] sm:$0xff]
  %v112 = vld [vmem:[%s0 + $0x2c0] sm:$0xff]
  %v113 = vld [vmem:[%s0 + $0x2c8] sm:$0xff]
  %v114 = vld [vmem:[%s0 + $0x2d0] sm:$0xff]
  %v115 = vld [vmem:[%s0 + $0x2d8] sm:$0xff]
  %v116 = vld [vmem:[%s0 + $0x2e0] sm:$0xff]
  %v117 = vld [vmem:[%s0 + $0x2e8] sm:$0xff]
  %v118 = vld [vmem:[%s0 + $0x2f0] sm:$0xff]
  %v119 = vld [vmem:[%s0 + $0x2f8] sm:$0xff]
  %v120 = vld [vmem:[%s1] sm:$0xff]
  %v121 = vld [vmem:[%s1 + $0x8] sm:$0xff]
  %v122 = vld [vmem:[%s1 + $0x10] sm:$0xff]
  %v123 = vld [vmem:[%s1 + $0x18] sm:$0xff]
  %v124 = vld [vmem:[%s2] sm:$0x1]
  %v125 = vld [vmem:[%s3] sm:$0xff]
  %v126 = vld [vmem:[%s3 + $0x8] sm:$0xff]
  %v127 = vld [vmem:[%s3 + $0x10] sm:$0xff]
  %v128 = vld [vmem:[%s3 + $0x18] sm:$0xff]
  %v129 = vld [vmem:[%s4] sm:$0x1]
  %s130 = sld [smem:[#allocation2]]
  %v132 = vlaneseq
  %v133 = vshrl.u32 %v132, 7
  %v134 = vsub.s32 0, %v133
  %v135 = vrot.slane %v124, %v134
  %vm137 = vcmask 261120
  %v139 = vsel %vm137, %v88, 0
  %v142 = vsel %vm137, %v89, 0
  %v145 = vsel %vm137, %v90, 0
  %v148 = vsel %vm137, %v91, 0
  %v151 = vsel %vm137, %v92, 0
  %v154 = vsel %vm137, %v93, 0
  %v157 = vsel %vm137, %v94, 0
  %v160 = vsel %vm137, %v95, 0
  %v163 = vsel %vm137, %v96, 0
  %v166 = vsel %vm137, %v97, 0
  %v169 = vsel %vm137, %v98, 0
  %v172 = vsel %vm137, %v99, 0
  %v175 = vsel %vm137, %v100, 0
  %v178 = vsel %vm137, %v101, 0
  %v181 = vsel %vm137, %v102, 0
  %v184 = vsel %vm137, %v103, 0
  %v187 = vsel %vm137, %v104, 0
  %v190 = vsel %vm137, %v105, 0
  %v193 = vsel %vm137, %v106, 0
  %v196 = vsel %vm137, %v107, 0
  %v199 = vsel %vm137, %v108, 0
  %v202 = vsel %vm137, %v109, 0
  %v205 = vsel %vm137, %v110, 0
  %v208 = vsel %vm137, %v111, 0
  %v211 = vsel %vm137, %v112, 0
  %v214 = vsel %vm137, %v113, 0
  %v217 = vsel %vm137, %v114, 0
  %v220 = vsel %vm137, %v115, 0
  %v223 = vsel %vm137, %v116, 0
  %v226 = vsel %vm137, %v117, 0
  %v229 = vsel %vm137, %v118, 0
  %v232 = vsel %vm137, %v119, 0
  %234 = vmatprep.subr.mxu0 0.0
  %235 = vmatpush1.msra.mxu0 0.0
  %236 = vmatprep.subr.mxu0 0.0
  %237 = vmatpush1.msra.mxu0 0.0
  %238 = vmatprep.subr.mxu0 0.0
  %239 = vmatpush1.msra.mxu0 0.0
  %240 = vmatprep.subr.mxu0 0.0
  %241 = vmatpush1.msra.mxu0 0.0
  %242 = vmatprep.subr.mxu0 0.0
  %243 = vmatpush1.msra.mxu0 0.0
  %244 = vmatprep.subr.mxu0 0.0
  %245 = vmatpush1.msra.mxu0 0.0
  %246 = vmatprep.subr.mxu0 0.0
  %247 = vmatpush1.msra.mxu0 0.0
  %248 = vmatprep.subr.mxu0 0.0
  %249 = vmatpush1.msra.mxu0 0.0
  %250 = vmatprep.subr.mxu0 0.0
  %251 = vmatpush1.msra.mxu0 0.0
  %252 = vmatprep.subr.mxu0 0.0
  %253 = vmatpush1.msra.mxu0 0.0
  %254 = vmatprep.subr.mxu0 0.0
  %255 = vmatpush1.msra.mxu0 0.0
  %256 = vmatprep.subr.mxu0 0.0
  %257 = vmatpush1.msra.mxu0 0.0
  %258 = vmatprep.subr.mxu0 0.0
  %259 = vmatpush1.msra.mxu0 %v123
  %260 = vmatprep.subr.mxu0 0.0
  %261 = vmatpush1.msra.mxu0 %v122
  %262 = vmatprep.subr.mxu0 0.0
  %263 = vmatpush1.msra.mxu0 %v121
  %264 = vmatprep.subr.mxu0 0.0
  %265 = vmatpush1.msra.mxu0 %v120
  %266 = vmatprep.subr.mxu0 0.0
  %267 = vmatpush2.msra.mxu0 0.0
  %268 = vmatprep.subr.mxu0 0.0
  %269 = vmatpush2.msra.mxu0 0.0
  %270 = vmatprep.subr.mxu0 0.0
  %271 = vmatpush2.msra.mxu0 0.0
  %272 = vmatprep.subr.mxu0 0.0
  %273 = vmatpush2.msra.mxu0 0.0
  %274 = vmatprep.subr.mxu0 0.0
  %275 = vmatpush2.msra.mxu0 0.0
  %276 = vmatprep.subr.mxu0 0.0
  %277 = vmatpush2.msra.mxu0 0.0
  %278 = vmatprep.subr.mxu0 0.0
  %279 = vmatpush2.msra.mxu0 0.0
  %280 = vmatprep.subr.mxu0 0.0
  %281 = vmatpush2.msra.mxu0 0.0
  %282 = vmatprep.subr.mxu0 0.0
  %283 = vmatpush2.msra.mxu0 0.0
  %284 = vmatprep.subr.mxu0 0.0
  %285 = vmatpush2.msra.mxu0 0.0
  %286 = vmatprep.subr.mxu0 0.0
  %287 = vmatpush2.msra.mxu0 0.0
  %288 = vmatprep.subr.mxu0 0.0
  %289 = vmatpush2.msra.mxu0 0.0
  %290 = vmatprep.subr.mxu0 0.0
  %291 = vmatpush2.msra.mxu0 0.0
  %292 = vmatprep.subr.mxu0 0.0
  %293 = vmatpush2.msra.mxu0 0.0
  %294 = vmatprep.subr.mxu0 0.0
  %295 = vmatpush2.msra.mxu0 0.0
  %296 = vmatprep.subr.mxu0 0.0
  %297 = vmatpush2.msra.mxu0 0.0
  %298 = vmatprep.mubr.f32.mxu0 0.0
  %299 = vmatmul.mubr.f32.gmra.mxu0 %v139
  %v300 = vpop.f32.mrf.mxu0
  %v301 = vadd.f32 %v135, %v300
  %v302 = vpop.f32.mrf.mxu0
  %303 = vmatprep.mubr.f32.mxu0 0.0
  %304 = vmatmul.mubr.f32.gmra.mxu0 %v142
  %v305 = vpop.f32.mrf.mxu0
  %v306 = vadd.f32 %v135, %v305
  %v307 = vpop.f32.mrf.mxu0
  %308 = vmatprep.mubr.f32.mxu0 0.0
  %309 = vmatmul.mubr.f32.gmra.mxu0 %v145
  %v310 = vpop.f32.mrf.mxu0
  %v311 = vadd.f32 %v135, %v310
  %v312 = vpop.f32.mrf.mxu0
  %313 = vmatprep.mubr.f32.mxu0 0.0
  %314 = vmatmul.mubr.f32.gmra.mxu0 %v148
  %v315 = vpop.f32.mrf.mxu0
  %v316 = vadd.f32 %v135, %v315
  %v317 = vpop.f32.mrf.mxu0
  %318 = vmatprep.mubr.f32.mxu0 0.0
  %319 = vmatmul.mubr.f32.gmra.mxu0 %v151
  %v320 = vpop.f32.mrf.mxu0
  %v321 = vadd.f32 %v135, %v320
  %v322 = vpop.f32.mrf.mxu0
  %323 = vmatprep.mubr.f32.mxu0 0.0
  %324 = vmatmul.mubr.f32.gmra.mxu0 %v154
  %v325 = vpop.f32.mrf.mxu0
  %v326 = vadd.f32 %v135, %v325
  %v327 = vpop.f32.mrf.mxu0
  %328 = vmatprep.mubr.f32.mxu0 0.0
  %329 = vmatmul.mubr.f32.gmra.mxu0 %v157
  %v330 = vpop.f32.mrf.mxu0
  %v331 = vadd.f32 %v135, %v330
  %v332 = vpop.f32.mrf.mxu0
  %333 = vmatprep.mubr.f32.mxu0 0.0
  %334 = vmatmul.mubr.f32.gmra.mxu0 %v160
  %v335 = vpop.f32.mrf.mxu0
  %v336 = vadd.f32 %v135, %v335
  %v337 = vpop.f32.mrf.mxu0
  %338 = vmatprep.mubr.f32.mxu0 0.0
  %339 = vmatmul.mubr.f32.gmra.mxu0 %v163
  %v340 = vpop.f32.mrf.mxu0
  %v341 = vadd.f32 %v135, %v340
  %v342 = vpop.f32.mrf.mxu0
  %343 = vmatprep.mubr.f32.mxu0 0.0
  %344 = vmatmul.mubr.f32.gmra.mxu0 %v166
  %v345 = vpop.f32.mrf.mxu0
  %v346 = vadd.f32 %v135, %v345
  %v347 = vpop.f32.mrf.mxu0
  %348 = vmatprep.mubr.f32.mxu0 0.0
  %349 = vmatmul.mubr.f32.gmra.mxu0 %v169
  %v350 = vpop.f32.mrf.mxu0
  %v351 = vadd.f32 %v135, %v350
  %v352 = vpop.f32.mrf.mxu0
  %353 = vmatprep.mubr.f32.mxu0 0.0
  %354 = vmatmul.mubr.f32.gmra.mxu0 %v172
  %v355 = vpop.f32.mrf.mxu0
  %v356 = vadd.f32 %v135, %v355
  %v357 = vpop.f32.mrf.mxu0
  %358 = vmatprep.mubr.f32.mxu0 0.0
  %359 = vmatmul.mubr.f32.gmra.mxu0 %v175
  %v360 = vpop.f32.mrf.mxu0
  %v361 = vadd.f32 %v135, %v360
  %v362 = vpop.f32.mrf.mxu0
  %363 = vmatprep.mubr.f32.mxu0 0.0
  %364 = vmatmul.mubr.f32.gmra.mxu0 %v178
  %v365 = vpop.f32.mrf.mxu0
  %v366 = vadd.f32 %v135, %v365
  %v367 = vpop.f32.mrf.mxu0
  %368 = vmatprep.mubr.f32.mxu0 0.0
  %369 = vmatmul.mubr.f32.gmra.mxu0 %v181
  %v370 = vpop.f32.mrf.mxu0
  %v371 = vadd.f32 %v135, %v370
  %v372 = vpop.f32.mrf.mxu0
  %373 = vmatprep.mubr.f32.mxu0 0.0
  %374 = vmatmul.mubr.f32.gmra.mxu0 %v184
  %v375 = vpop.f32.mrf.mxu0
  %v376 = vadd.f32 %v135, %v375
  %v377 = vpop.f32.mrf.mxu0
  %378 = vmatprep.mubr.f32.mxu0 0.0
  %379 = vmatmul.mubr.f32.gmra.mxu0 %v187
  %v380 = vpop.f32.mrf.mxu0
  %v381 = vadd.f32 %v135, %v380
  %v382 = vpop.f32.mrf.mxu0
  %383 = vmatprep.mubr.f32.mxu0 0.0
  %384 = vmatmul.mubr.f32.gmra.mxu0 %v190
  %v385 = vpop.f32.mrf.mxu0
  %v386 = vadd.f32 %v135, %v385
  %v387 = vpop.f32.mrf.mxu0
  %388 = vmatprep.mubr.f32.mxu0 0.0
  %389 = vmatmul.mubr.f32.gmra.mxu0 %v193
  %v390 = vpop.f32.mrf.mxu0
  %v391 = vadd.f32 %v135, %v390
  %v392 = vpop.f32.mrf.mxu0
  %393 = vmatprep.mubr.f32.mxu0 0.0
  %394 = vmatmul.mubr.f32.gmra.mxu0 %v196
  %v395 = vpop.f32.mrf.mxu0
  %v396 = vadd.f32 %v135, %v395
  %v397 = vpop.f32.mrf.mxu0
  %398 = vmatprep.mubr.f32.mxu0 0.0
  %399 = vmatmul.mubr.f32.gmra.mxu0 %v199
  %v400 = vpop.f32.mrf.mxu0
  %v401 = vadd.f32 %v135, %v400
  %v402 = vpop.f32.mrf.mxu0
  %403 = vmatprep.mubr.f32.mxu0 0.0
  %404 = vmatmul.mubr.f32.gmra.mxu0 %v202
  %v405 = vpop.f32.mrf.mxu0
  %v406 = vadd.f32 %v135, %v405
  %v407 = vpop.f32.mrf.mxu0
  %408 = vmatprep.mubr.f32.mxu0 0.0
  %409 = vmatmul.mubr.f32.gmra.mxu0 %v205
  %v410 = vpop.f32.mrf.mxu0
  %v411 = vadd.f32 %v135, %v410
  %v412 = vpop.f32.mrf.mxu0
  %413 = vmatprep.mubr.f32.mxu0 0.0
  %414 = vmatmul.mubr.f32.gmra.mxu0 %v208
  %v415 = vpop.f32.mrf.mxu0
  %v416 = vadd.f32 %v135, %v415
  %v417 = vpop.f32.mrf.mxu0
  %418 = vmatprep.mubr.f32.mxu0 0.0
  %419 = vmatmul.mubr.f32.gmra.mxu0 %v211
  %v420 = vpop.f32.mrf.mxu0
  %v421 = vadd.f32 %v135, %v420
  %v422 = vpop.f32.mrf.mxu0
  %423 = vmatprep.mubr.f32.mxu0 0.0
  %424 = vmatmul.mubr.f32.gmra.mxu0 %v214
  %v425 = vpop.f32.mrf.mxu0
  %v426 = vadd.f32 %v135, %v425
  %v427 = vpop.f32.mrf.mxu0
  %428 = vmatprep.mubr.f32.mxu0 0.0
  %429 = vmatmul.mubr.f32.gmra.mxu0 %v217
  %v430 = vpop.f32.mrf.mxu0
  %v431 = vadd.f32 %v135, %v430
  %v432 = vpop.f32.mrf.mxu0
  %433 = vmatprep.mubr.f32.mxu0 0.0
  %434 = vmatmul.mubr.f32.gmra.mxu0 %v220
  %v435 = vpop.f32.mrf.mxu0
  %v436 = vadd.f32 %v135, %v435
  %v437 = vpop.f32.mrf.mxu0
  %438 = vmatprep.mubr.f32.mxu0 0.0
  %439 = vmatmul.mubr.f32.gmra.mxu0 %v223
  %v440 = vpop.f32.mrf.mxu0
  %v441 = vadd.f32 %v135, %v440
  %v442 = vpop.f32.mrf.mxu0
  %443 = vmatprep.mubr.f32.mxu0 0.0
  %444 = vmatmul.mubr.f32.gmra.mxu0 %v226
  %v445 = vpop.f32.mrf.mxu0
  %v446 = vadd.f32 %v135, %v445
  %v447 = vpop.f32.mrf.mxu0
  %448 = vmatprep.mubr.f32.mxu0 0.0
  %449 = vmatmul.mubr.f32.gmra.mxu0 %v229
  %v450 = vpop.f32.mrf.mxu0
  %v451 = vadd.f32 %v135, %v450
  %v452 = vpop.f32.mrf.mxu0
  %453 = vmatprep.mubr.f32.mxu0 0.0
  %454 = vmatmul.mubr.f32.gmra.mxu0 %v232
  %v455 = vpop.f32.mrf.mxu0
  %v456 = vadd.f32 %v135, %v455
  %v457 = vpop.f32.mrf.mxu0
  %458 = vdwg.mxu0
  %v459 = vmin.f32 %v301, 1.0
  %v460 = vmin.f32 %v306, 1.0
  %v461 = vmin.f32 %v311, 1.0
  %v462 = vmin.f32 %v316, 1.0
  %v463 = vmin.f32 %v321, 1.0
  %v464 = vmin.f32 %v326, 1.0
  %v465 = vmin.f32 %v331, 1.0
  %v466 = vmin.f32 %v336, 1.0
  %v467 = vmin.f32 %v341, 1.0
  %v468 = vmin.f32 %v346, 1.0
  %v469 = vmin.f32 %v351, 1.0
  %v470 = vmin.f32 %v356, 1.0
  %v471 = vmin.f32 %v361, 1.0
  %v472 = vmin.f32 %v366, 1.0
  %v473 = vmin.f32 %v371, 1.0
  %v474 = vmin.f32 %v376, 1.0
  %v475 = vmin.f32 %v381, 1.0
  %v476 = vmin.f32 %v386, 1.0
  %v477 = vmin.f32 %v391, 1.0
  %v478 = vmin.f32 %v396, 1.0
  %v479 = vmin.f32 %v401, 1.0
  %v480 = vmin.f32 %v406, 1.0
  %v481 = vmin.f32 %v411, 1.0
  %v482 = vmin.f32 %v416, 1.0
  %v483 = vmin.f32 %v421, 1.0
  %v484 = vmin.f32 %v426, 1.0
  %v485 = vmin.f32 %v431, 1.0
  %v486 = vmin.f32 %v436, 1.0
  %v487 = vmin.f32 %v441, 1.0
  %v488 = vmin.f32 %v446, 1.0
  %v489 = vmin.f32 %v451, 1.0
  %v490 = vmin.f32 %v456, 1.0
  %v491 = vsub.f32 0.0, %v88
  %v492 = vsub.f32 0.0, %v89
  %v493 = vsub.f32 0.0, %v90
  %v494 = vsub.f32 0.0, %v91
  %v495 = vsub.f32 0.0, %v92
  %v496 = vsub.f32 0.0, %v93
  %v497 = vsub.f32 0.0, %v94
  %v498 = vsub.f32 0.0, %v95
  %v499 = vsub.f32 0.0, %v96
  %v500 = vsub.f32 0.0, %v97
  %v501 = vsub.f32 0.0, %v98
  %v502 = vsub.f32 0.0, %v99
  %v503 = vsub.f32 0.0, %v100
  %v504 = vsub.f32 0.0, %v101
  %v505 = vsub.f32 0.0, %v102
  %v506 = vsub.f32 0.0, %v103
  %v507 = vsub.f32 0.0, %v104
  %v508 = vsub.f32 0.0, %v105
  %v509 = vsub.f32 0.0, %v106
  %v510 = vsub.f32 0.0, %v107
  %v511 = vsub.f32 0.0, %v108
  %v512 = vsub.f32 0.0, %v109
  %v513 = vsub.f32 0.0, %v110
  %v514 = vsub.f32 0.0, %v111
  %v515 = vsub.f32 0.0, %v112
  %v516 = vsub.f32 0.0, %v113
  %v517 = vsub.f32 0.0, %v114
  %v518 = vsub.f32 0.0, %v115
  %v519 = vsub.f32 0.0, %v116
  %v520 = vsub.f32 0.0, %v117
  %v521 = vsub.f32 0.0, %v118
  %v522 = vsub.f32 0.0, %v119
  %vm523 = vcmp.lt.f32.partialorder %v459, %v491
  %vm524 = vcmp.lt.f32.partialorder %v460, %v492
  %vm525 = vcmp.lt.f32.partialorder %v461, %v493
  %vm526 = vcmp.lt.f32.partialorder %v462, %v494
  %vm527 = vcmp.lt.f32.partialorder %v463, %v495
  %vm528 = vcmp.lt.f32.partialorder %v464, %v496
  %vm529 = vcmp.lt.f32.partialorder %v465, %v497
  %vm530 = vcmp.lt.f32.partialorder %v466, %v498
  %vm531 = vcmp.lt.f32.partialorder %v467, %v499
  %vm532 = vcmp.lt.f32.partialorder %v468, %v500
  %vm533 = vcmp.lt.f32.partialorder %v469, %v501
  %vm534 = vcmp.lt.f32.partialorder %v470, %v502
  %vm535 = vcmp.lt.f32.partialorder %v471, %v503
  %vm536 = vcmp.lt.f32.partialorder %v472, %v504
  %vm537 = vcmp.lt.f32.partialorder %v473, %v505
  %vm538 = vcmp.lt.f32.partialorder %v474, %v506
  %vm539 = vcmp.lt.f32.partialorder %v475, %v507
  %vm540 = vcmp.lt.f32.partialorder %v476, %v508
  %vm541 = vcmp.lt.f32.partialorder %v477, %v509
  %vm542 = vcmp.lt.f32.partialorder %v478, %v510
  %vm543 = vcmp.lt.f32.partialorder %v479, %v511
  %vm544 = vcmp.lt.f32.partialorder %v480, %v512
  %vm545 = vcmp.lt.f32.partialorder %v481, %v513
  %vm546 = vcmp.lt.f32.partialorder %v482, %v514
  %vm547 = vcmp.lt.f32.partialorder %v483, %v515
  %vm548 = vcmp.lt.f32.partialorder %v484, %v516
  %vm549 = vcmp.lt.f32.partialorder %v485, %v517
  %vm550 = vcmp.lt.f32.partialorder %v486, %v518
  %vm551 = vcmp.lt.f32.partialorder %v487, %v519
  %vm552 = vcmp.lt.f32.partialorder %v488, %v520
  %vm553 = vcmp.lt.f32.partialorder %v489, %v521
  %vm554 = vcmp.lt.f32.partialorder %v490, %v522
  %v555 = vsel %vm523, %v88, %v459
  %v556 = vsel %vm524, %v89, %v460
  %v557 = vsel %vm525, %v90, %v461
  %v558 = vsel %vm526, %v91, %v462
  %v559 = vsel %vm527, %v92, %v463
  %v560 = vsel %vm528, %v93, %v464
  %v561 = vsel %vm529, %v94, %v465
  %v562 = vsel %vm530, %v95, %v466
  %v563 = vsel %vm531, %v96, %v467
  %v564 = vsel %vm532, %v97, %v468
  %v565 = vsel %vm533, %v98, %v469
  %v566 = vsel %vm534, %v99, %v470
  %v567 = vsel %vm535, %v100, %v471
  %v568 = vsel %vm536, %v101, %v472
  %v569 = vsel %vm537, %v102, %v473
  %v570 = vsel %vm538, %v103, %v474
  %v571 = vsel %vm539, %v104, %v475
  %v572 = vsel %vm540, %v105, %v476
  %v573 = vsel %vm541, %v106, %v477
  %v574 = vsel %vm542, %v107, %v478
  %v575 = vsel %vm543, %v108, %v479
  %v576 = vsel %vm544, %v109, %v480
  %v577 = vsel %vm545, %v110, %v481
  %v578 = vsel %vm546, %v111, %v482
  %v579 = vsel %vm547, %v112, %v483
  %v580 = vsel %vm548, %v113, %v484
  %v581 = vsel %vm549, %v114, %v485
  %v582 = vsel %vm550, %v115, %v486
  %v583 = vsel %vm551, %v116, %v487
  %v584 = vsel %vm552, %v117, %v488
  %v585 = vsel %vm553, %v118, %v489
  %v586 = vsel %vm554, %v119, %v490
  %v587 = vmul.f32 %v24, %v88
  %v588 = vmul.f32 %v25, %v89
  %v589 = vmul.f32 %v26, %v90
  %v590 = vmul.f32 %v27, %v91
  %v591 = vmul.f32 %v28, %v92
  %v592 = vmul.f32 %v29, %v93
  %v593 = vmul.f32 %v30, %v94
  %v594 = vmul.f32 %v31, %v95
  %v595 = vmul.f32 %v32, %v96
  %v596 = vmul.f32 %v33, %v97
  %v597 = vmul.f32 %v34, %v98
  %v598 = vmul.f32 %v35, %v99
  %v599 = vmul.f32 %v36, %v100
  %v600 = vmul.f32 %v37, %v101
  %v601 = vmul.f32 %v38, %v102
  %v602 = vmul.f32 %v39, %v103
  %v603 = vmul.f32 %v40, %v104
  %v604 = vmul.f32 %v41, %v105
  %v605 = vmul.f32 %v42, %v106
  %v606 = vmul.f32 %v43, %v107
  %v607 = vmul.f32 %v44, %v108
  %v608 = vmul.f32 %v45, %v109
  %v609 = vmul.f32 %v46, %v110
  %v610 = vmul.f32 %v47, %v111
  %v611 = vmul.f32 %v48, %v112
  %v612 = vmul.f32 %v49, %v113
  %v613 = vmul.f32 %v50, %v114
  %v614 = vmul.f32 %v51, %v115
  %v615 = vmul.f32 %v52, %v116
  %v616 = vmul.f32 %v53, %v117
  %v617 = vmul.f32 %v54, %v118
  %v618 = vmul.f32 %v55, %v119
  %v619 = vadd.f32 %v24, %v56
  %v620 = vadd.f32 %v25, %v57
  %v621 = vadd.f32 %v26, %v58
  %v622 = vadd.f32 %v27, %v59
  %v623 = vadd.f32 %v28, %v60
  %v624 = vadd.f32 %v29, %v61
  %v625 = vadd.f32 %v30, %v62
  %v626 = vadd.f32 %v31, %v63
  %v627 = vadd.f32 %v32, %v64
  %v628 = vadd.f32 %v33, %v65
  %v629 = vadd.f32 %v34, %v66
  %v630 = vadd.f32 %v35, %v67
  %v631 = vadd.f32 %v36, %v68
  %v632 = vadd.f32 %v37, %v69
  %v633 = vadd.f32 %v38, %v70
  %v634 = vadd.f32 %v39, %v71
  %v635 = vadd.f32 %v40, %v72
  %v636 = vadd.f32 %v41, %v73
  %v637 = vadd.f32 %v42, %v74
  %v638 = vadd.f32 %v43, %v75
  %v639 = vadd.f32 %v44, %v76
  %v640 = vadd.f32 %v45, %v77
  %v641 = vadd.f32 %v46, %v78
  %v642 = vadd.f32 %v47, %v79
  %v643 = vadd.f32 %v48, %v80
  %v644 = vadd.f32 %v49, %v81
  %v645 = vadd.f32 %v50, %v82
  %v646 = vadd.f32 %v51, %v83
  %v647 = vadd.f32 %v52, %v84
  %v648 = vadd.f32 %v53, %v85
  %v649 = vadd.f32 %v54, %v86
  %v650 = vadd.f32 %v55, %v87
  %v651 = vmul.f32 %v619, %v555
  %v652 = vmul.f32 %v620, %v556
  %v653 = vmul.f32 %v621, %v557
  %v654 = vmul.f32 %v622, %v558
  %v655 = vmul.f32 %v623, %v559
  %v656 = vmul.f32 %v624, %v560
  %v657 = vmul.f32 %v625, %v561
  %v658 = vmul.f32 %v626, %v562
  %v659 = vmul.f32 %v627, %v563
  %v660 = vmul.f32 %v628, %v564
  %v661 = vmul.f32 %v629, %v565
  %v662 = vmul.f32 %v630, %v566
  %v663 = vmul.f32 %v631, %v567
  %v664 = vmul.f32 %v632, %v568
  %v665 = vmul.f32 %v633, %v569
  %v666 = vmul.f32 %v634, %v570
  %v667 = vmul.f32 %v635, %v571
  %v668 = vmul.f32 %v636, %v572
  %v669 = vmul.f32 %v637, %v573
  %v670 = vmul.f32 %v638, %v574
  %v671 = vmul.f32 %v639, %v575
  %v672 = vmul.f32 %v640, %v576
  %v673 = vmul.f32 %v641, %v577
  %v674 = vmul.f32 %v642, %v578
  %v675 = vmul.f32 %v643, %v579
  %v676 = vmul.f32 %v644, %v580
  %v677 = vmul.f32 %v645, %v581
  %v678 = vmul.f32 %v646, %v582
  %v679 = vmul.f32 %v647, %v583
  %v680 = vmul.f32 %v648, %v584
  %v681 = vmul.f32 %v649, %v585
  %v682 = vmul.f32 %v650, %v586
  %v683 = vadd.f32 %v587, %v651
  %v684 = vadd.f32 %v588, %v652
  %v685 = vadd.f32 %v589, %v653
  %v686 = vadd.f32 %v590, %v654
  %v687 = vadd.f32 %v591, %v655
  %v688 = vadd.f32 %v592, %v656
  %v689 = vadd.f32 %v593, %v657
  %v690 = vadd.f32 %v594, %v658
  %v691 = vadd.f32 %v595, %v659
  %v692 = vadd.f32 %v596, %v660
  %v693 = vadd.f32 %v597, %v661
  %v694 = vadd.f32 %v598, %v662
  %v695 = vadd.f32 %v599, %v663
  %v696 = vadd.f32 %v600, %v664
  %v697 = vadd.f32 %v601, %v665
  %v698 = vadd.f32 %v602, %v666
  %v699 = vadd.f32 %v603, %v667
  %v700 = vadd.f32 %v604, %v668
  %v701 = vadd.f32 %v605, %v669
  %v702 = vadd.f32 %v606, %v670
  %v703 = vadd.f32 %v607, %v671
  %v704 = vadd.f32 %v608, %v672
  %v705 = vadd.f32 %v609, %v673
  %v706 = vadd.f32 %v610, %v674
  %v707 = vadd.f32 %v611, %v675
  %v708 = vadd.f32 %v612, %v676
  %v709 = vadd.f32 %v613, %v677
  %v710 = vadd.f32 %v614, %v678
  %v711 = vadd.f32 %v615, %v679
  %v712 = vadd.f32 %v616, %v680
  %v713 = vadd.f32 %v617, %v681
  %v714 = vadd.f32 %v618, %v682
  %v715 = vsub.f32 %v683, %v56
  %v716 = vsub.f32 %v684, %v57
  %v717 = vsub.f32 %v685, %v58
  %v718 = vsub.f32 %v686, %v59
  %v719 = vsub.f32 %v687, %v60
  %v720 = vsub.f32 %v688, %v61
  %v721 = vsub.f32 %v689, %v62
  %v722 = vsub.f32 %v690, %v63
  %v723 = vsub.f32 %v691, %v64
  %v724 = vsub.f32 %v692, %v65
  %v725 = vsub.f32 %v693, %v66
  %v726 = vsub.f32 %v694, %v67
  %v727 = vsub.f32 %v695, %v68
  %v728 = vsub.f32 %v696, %v69
  %v729 = vsub.f32 %v697, %v70
  %v730 = vsub.f32 %v698, %v71
  %v731 = vsub.f32 %v699, %v72
  %v732 = vsub.f32 %v700, %v73
  %v733 = vsub.f32 %v701, %v74
  %v734 = vsub.f32 %v702, %v75
  %v735 = vsub.f32 %v703, %v76
  %v736 = vsub.f32 %v704, %v77
  %v737 = vsub.f32 %v705, %v78
  %v738 = vsub.f32 %v706, %v79
  %v739 = vsub.f32 %v707, %v80
  %v740 = vsub.f32 %v708, %v81
  %v741 = vsub.f32 %v709, %v82
  %v742 = vsub.f32 %v710, %v83
  %v743 = vsub.f32 %v711, %v84
  %v744 = vsub.f32 %v712, %v85
  %v745 = vsub.f32 %v713, %v86
  %v746 = vsub.f32 %v714, %v87
  %v747 = vmul.f32 %v715, %v715
  %v748 = vmul.f32 %v716, %v716
  %v749 = vmul.f32 %v717, %v717
  %v750 = vmul.f32 %v718, %v718
  %v751 = vmul.f32 %v719, %v719
  %v752 = vmul.f32 %v720, %v720
  %v753 = vmul.f32 %v721, %v721
  %v754 = vmul.f32 %v722, %v722
  %v755 = vmul.f32 %v723, %v723
  %v756 = vmul.f32 %v724, %v724
  %v757 = vmul.f32 %v725, %v725
  %v758 = vmul.f32 %v726, %v726
  %v759 = vmul.f32 %v727, %v727
  %v760 = vmul.f32 %v728, %v728
  %v761 = vmul.f32 %v729, %v729
  %v762 = vmul.f32 %v730, %v730
  %v763 = vmul.f32 %v731, %v731
  %v764 = vmul.f32 %v732, %v732
  %v765 = vmul.f32 %v733, %v733
  %v766 = vmul.f32 %v734, %v734
  %v767 = vmul.f32 %v735, %v735
  %v768 = vmul.f32 %v736, %v736
  %v769 = vmul.f32 %v737, %v737
  %v770 = vmul.f32 %v738, %v738
  %v771 = vmul.f32 %v739, %v739
  %v772 = vmul.f32 %v740, %v740
  %v773 = vmul.f32 %v741, %v741
  %v774 = vmul.f32 %v742, %v742
  %v775 = vmul.f32 %v743, %v743
  %v776 = vmul.f32 %v744, %v744
  %v777 = vmul.f32 %v745, %v745
  %v778 = vmul.f32 %v746, %v746
  %v779 = vsel %vm137, %v747, 0.0
  %780 = vadd.xlane.f32.xlu0 %v779
  %v781 = vpop.xlane.xlu0 %780
  %v782 = vsel %vm137, %v748, 0.0
  %783 = vadd.xlane.f32.xlu0 %v782
  %v784 = vpop.xlane.xlu0 %783
  %v785 = vsel %vm137, %v749, 0.0
  %786 = vadd.xlane.f32.xlu0 %v785
  %v787 = vpop.xlane.xlu0 %786
  %v788 = vsel %vm137, %v750, 0.0
  %789 = vadd.xlane.f32.xlu0 %v788
  %v790 = vpop.xlane.xlu0 %789
  %v791 = vsel %vm137, %v751, 0.0
  %792 = vadd.xlane.f32.xlu0 %v791
  %v793 = vpop.xlane.xlu0 %792
  %v794 = vsel %vm137, %v752, 0.0
  %795 = vadd.xlane.f32.xlu0 %v794
  %v796 = vpop.xlane.xlu0 %795
  %v797 = vsel %vm137, %v753, 0.0
  %798 = vadd.xlane.f32.xlu0 %v797
  %v799 = vpop.xlane.xlu0 %798
  %v800 = vsel %vm137, %v754, 0.0
  %801 = vadd.xlane.f32.xlu0 %v800
  %v802 = vpop.xlane.xlu0 %801
  %v803 = vsel %vm137, %v755, 0.0
  %804 = vadd.xlane.f32.xlu0 %v803
  %v805 = vpop.xlane.xlu0 %804
  %v806 = vsel %vm137, %v756, 0.0
  %807 = vadd.xlane.f32.xlu0 %v806
  %v808 = vpop.xlane.xlu0 %807
  %v809 = vsel %vm137, %v757, 0.0
  %810 = vadd.xlane.f32.xlu0 %v809
  %v811 = vpop.xlane.xlu0 %810
  %v812 = vsel %vm137, %v758, 0.0
  %813 = vadd.xlane.f32.xlu0 %v812
  %v814 = vpop.xlane.xlu0 %813
  %v815 = vsel %vm137, %v759, 0.0
  %816 = vadd.xlane.f32.xlu0 %v815
  %v817 = vpop.xlane.xlu0 %816
  %v818 = vsel %vm137, %v760, 0.0
  %819 = vadd.xlane.f32.xlu0 %v818
  %v820 = vpop.xlane.xlu0 %819
  %v821 = vsel %vm137, %v761, 0.0
  %822 = vadd.xlane.f32.xlu0 %v821
  %v823 = vpop.xlane.xlu0 %822
  %v824 = vsel %vm137, %v762, 0.0
  %825 = vadd.xlane.f32.xlu0 %v824
  %v826 = vpop.xlane.xlu0 %825
  %v827 = vsel %vm137, %v763, 0.0
  %828 = vadd.xlane.f32.xlu0 %v827
  %v829 = vpop.xlane.xlu0 %828
  %v830 = vsel %vm137, %v764, 0.0
  %831 = vadd.xlane.f32.xlu0 %v830
  %v832 = vpop.xlane.xlu0 %831
  %v833 = vsel %vm137, %v765, 0.0
  %834 = vadd.xlane.f32.xlu0 %v833
  %v835 = vpop.xlane.xlu0 %834
  %v836 = vsel %vm137, %v766, 0.0
  %837 = vadd.xlane.f32.xlu0 %v836
  %v838 = vpop.xlane.xlu0 %837
  %v839 = vsel %vm137, %v767, 0.0
  %840 = vadd.xlane.f32.xlu0 %v839
  %v841 = vpop.xlane.xlu0 %840
  %v842 = vsel %vm137, %v768, 0.0
  %843 = vadd.xlane.f32.xlu0 %v842
  %v844 = vpop.xlane.xlu0 %843
  %v845 = vsel %vm137, %v769, 0.0
  %846 = vadd.xlane.f32.xlu0 %v845
  %v847 = vpop.xlane.xlu0 %846
  %v848 = vsel %vm137, %v770, 0.0
  %849 = vadd.xlane.f32.xlu0 %v848
  %v850 = vpop.xlane.xlu0 %849
  %v851 = vsel %vm137, %v771, 0.0
  %852 = vadd.xlane.f32.xlu0 %v851
  %v853 = vpop.xlane.xlu0 %852
  %v854 = vsel %vm137, %v772, 0.0
  %855 = vadd.xlane.f32.xlu0 %v854
  %v856 = vpop.xlane.xlu0 %855
  %v857 = vsel %vm137, %v773, 0.0
  %858 = vadd.xlane.f32.xlu0 %v857
  %v859 = vpop.xlane.xlu0 %858
  %v860 = vsel %vm137, %v774, 0.0
  %861 = vadd.xlane.f32.xlu0 %v860
  %v862 = vpop.xlane.xlu0 %861
  %v863 = vsel %vm137, %v775, 0.0
  %864 = vadd.xlane.f32.xlu0 %v863
  %v865 = vpop.xlane.xlu0 %864
  %v866 = vsel %vm137, %v776, 0.0
  %867 = vadd.xlane.f32.xlu0 %v866
  %v868 = vpop.xlane.xlu0 %867
  %v869 = vsel %vm137, %v777, 0.0
  %870 = vadd.xlane.f32.xlu0 %v869
  %v871 = vpop.xlane.xlu0 %870
  %v872 = vsel %vm137, %v778, 0.0
  %873 = vadd.xlane.f32.xlu0 %v872
  %v874 = vpop.xlane.xlu0 %873
  %v876 = vlaneseq
  %v877 = vshrl.u32 %v876, 7
  %v878 = vsub.s32 0, %v877
  %v879 = vrot.slane %v129, %v878
  %v882 = vsel %vm137, %v24, 0
  %v885 = vsel %vm137, %v25, 0
  %v888 = vsel %vm137, %v26, 0
  %v891 = vsel %vm137, %v27, 0
  %v894 = vsel %vm137, %v28, 0
  %v897 = vsel %vm137, %v29, 0
  %v900 = vsel %vm137, %v30, 0
  %v903 = vsel %vm137, %v31, 0
  %v906 = vsel %vm137, %v32, 0
  %v909 = vsel %vm137, %v33, 0
  %v912 = vsel %vm137, %v34, 0
  %v915 = vsel %vm137, %v35, 0
  %v918 = vsel %vm137, %v36, 0
  %v921 = vsel %vm137, %v37, 0
  %v924 = vsel %vm137, %v38, 0
  %v927 = vsel %vm137, %v39, 0
  %v930 = vsel %vm137, %v40, 0
  %v933 = vsel %vm137, %v41, 0
  %v936 = vsel %vm137, %v42, 0
  %v939 = vsel %vm137, %v43, 0
  %v942 = vsel %vm137, %v44, 0
  %v945 = vsel %vm137, %v45, 0
  %v948 = vsel %vm137, %v46, 0
  %v951 = vsel %vm137, %v47, 0
  %v954 = vsel %vm137, %v48, 0
  %v957 = vsel %vm137, %v49, 0
  %v960 = vsel %vm137, %v50, 0
  %v963 = vsel %vm137, %v51, 0
  %v966 = vsel %vm137, %v52, 0
  %v969 = vsel %vm137, %v53, 0
  %v972 = vsel %vm137, %v54, 0
  %v975 = vsel %vm137, %v55, 0
  %v978 = vsel %vm137, %v56, 0
  %v981 = vsel %vm137, %v57, 0
  %v984 = vsel %vm137, %v58, 0
  %v987 = vsel %vm137, %v59, 0
  %v990 = vsel %vm137, %v60, 0
  %v993 = vsel %vm137, %v61, 0
  %v996 = vsel %vm137, %v62, 0
  %v999 = vsel %vm137, %v63, 0
  %v1002 = vsel %vm137, %v64, 0
  %v1005 = vsel %vm137, %v65, 0
  %v1008 = vsel %vm137, %v66, 0
  %v1011 = vsel %vm137, %v67, 0
  %v1014 = vsel %vm137, %v68, 0
  %v1017 = vsel %vm137, %v69, 0
  %v1020 = vsel %vm137, %v70, 0
  %v1023 = vsel %vm137, %v71, 0
  %v1026 = vsel %vm137, %v72, 0
  %v1029 = vsel %vm137, %v73, 0
  %v1032 = vsel %vm137, %v74, 0
  %v1035 = vsel %vm137, %v75, 0
  %v1038 = vsel %vm137, %v76, 0
  %v1041 = vsel %vm137, %v77, 0
  %v1044 = vsel %vm137, %v78, 0
  %v1047 = vsel %vm137, %v79, 0
  %v1050 = vsel %vm137, %v80, 0
  %v1053 = vsel %vm137, %v81, 0
  %v1056 = vsel %vm137, %v82, 0
  %v1059 = vsel %vm137, %v83, 0
  %v1062 = vsel %vm137, %v84, 0
  %v1065 = vsel %vm137, %v85, 0
  %v1068 = vsel %vm137, %v86, 0
  %v1071 = vsel %vm137, %v87, 0
  %1073 = vmatprep.subr.mxu0 0.0
  %1074 = vmatpush1.msra.mxu0 0.0
  %1075 = vmatprep.subr.mxu0 0.0
  %1076 = vmatpush1.msra.mxu0 0.0
  %1077 = vmatprep.subr.mxu0 0.0
  %1078 = vmatpush1.msra.mxu0 0.0
  %1079 = vmatprep.subr.mxu0 0.0
  %1080 = vmatpush1.msra.mxu0 0.0
  %1081 = vmatprep.subr.mxu0 0.0
  %1082 = vmatpush1.msra.mxu0 0.0
  %1083 = vmatprep.subr.mxu0 0.0
  %1084 = vmatpush1.msra.mxu0 0.0
  %1085 = vmatprep.subr.mxu0 0.0
  %1086 = vmatpush1.msra.mxu0 0.0
  %1087 = vmatprep.subr.mxu0 0.0
  %1088 = vmatpush1.msra.mxu0 0.0
  %1089 = vmatprep.subr.mxu0 0.0
  %1090 = vmatpush1.msra.mxu0 0.0
  %1091 = vmatprep.subr.mxu0 0.0
  %1092 = vmatpush1.msra.mxu0 0.0
  %1093 = vmatprep.subr.mxu0 0.0
  %1094 = vmatpush1.msra.mxu0 0.0
  %1095 = vmatprep.subr.mxu0 0.0
  %1096 = vmatpush1.msra.mxu0 0.0
  %1097 = vmatprep.subr.mxu0 0.0
  %1098 = vmatpush1.msra.mxu0 %v128
  %1099 = vmatprep.subr.mxu0 0.0
  %1100 = vmatpush1.msra.mxu0 %v127
  %1101 = vmatprep.subr.mxu0 0.0
  %1102 = vmatpush1.msra.mxu0 %v126
  %1103 = vmatprep.subr.mxu0 0.0
  %1104 = vmatpush1.msra.mxu0 %v125
  %1105 = vmatprep.subr.mxu0 0.0
  %1106 = vmatpush2.msra.mxu0 0.0
  %1107 = vmatprep.subr.mxu0 0.0
  %1108 = vmatpush2.msra.mxu0 0.0
  %1109 = vmatprep.subr.mxu0 0.0
  %1110 = vmatpush2.msra.mxu0 0.0
  %1111 = vmatprep.subr.mxu0 0.0
  %1112 = vmatpush2.msra.mxu0 0.0
  %1113 = vmatprep.subr.mxu0 0.0
  %1114 = vmatpush2.msra.mxu0 0.0
  %1115 = vmatprep.subr.mxu0 0.0
  %1116 = vmatpush2.msra.mxu0 0.0
  %1117 = vmatprep.subr.mxu0 0.0
  %1118 = vmatpush2.msra.mxu0 0.0
  %1119 = vmatprep.subr.mxu0 0.0
  %1120 = vmatpush2.msra.mxu0 0.0
  %1121 = vmatprep.subr.mxu0 0.0
  %1122 = vmatpush2.msra.mxu0 0.0
  %1123 = vmatprep.subr.mxu0 0.0
  %1124 = vmatpush2.msra.mxu0 0.0
  %1125 = vmatprep.subr.mxu0 0.0
  %1126 = vmatpush2.msra.mxu0 0.0
  %1127 = vmatprep.subr.mxu0 0.0
  %1128 = vmatpush2.msra.mxu0 0.0
  %1129 = vmatprep.subr.mxu0 0.0
  %1130 = vmatpush2.msra.mxu0 0.0
  %1131 = vmatprep.subr.mxu0 0.0
  %1132 = vmatpush2.msra.mxu0 0.0
  %1133 = vmatprep.subr.mxu0 0.0
  %1134 = vmatpush2.msra.mxu0 0.0
  %1135 = vmatprep.subr.mxu0 0.0
  %1136 = vmatpush2.msra.mxu0 0.0
  %1137 = vmatprep.mubr.f32.mxu0 0.0
  %1138 = vmatmul.mubr.f32.gmra.mxu0 %v882
  %v1139 = vpop.f32.mrf.mxu0
  %v1140 = vadd.f32 %v879, %v1139
  %v1141 = vpop.f32.mrf.mxu0
  %1142 = vmatprep.mubr.f32.mxu0 0.0
  %1143 = vmatmul.mubr.f32.gmra.mxu0 %v885
  %v1144 = vpop.f32.mrf.mxu0
  %v1145 = vadd.f32 %v879, %v1144
  %v1146 = vpop.f32.mrf.mxu0
  %1147 = vmatprep.mubr.f32.mxu0 0.0
  %1148 = vmatmul.mubr.f32.gmra.mxu0 %v888
  %v1149 = vpop.f32.mrf.mxu0
  %v1150 = vadd.f32 %v879, %v1149
  %v1151 = vpop.f32.mrf.mxu0
  %1152 = vmatprep.mubr.f32.mxu0 0.0
  %1153 = vmatmul.mubr.f32.gmra.mxu0 %v891
  %v1154 = vpop.f32.mrf.mxu0
  %v1155 = vadd.f32 %v879, %v1154
  %v1156 = vpop.f32.mrf.mxu0
  %1157 = vmatprep.mubr.f32.mxu0 0.0
  %1158 = vmatmul.mubr.f32.gmra.mxu0 %v894
  %v1159 = vpop.f32.mrf.mxu0
  %v1160 = vadd.f32 %v879, %v1159
  %v1161 = vpop.f32.mrf.mxu0
  %1162 = vmatprep.mubr.f32.mxu0 0.0
  %1163 = vmatmul.mubr.f32.gmra.mxu0 %v897
  %v1164 = vpop.f32.mrf.mxu0
  %v1165 = vadd.f32 %v879, %v1164
  %v1166 = vpop.f32.mrf.mxu0
  %1167 = vmatprep.mubr.f32.mxu0 0.0
  %1168 = vmatmul.mubr.f32.gmra.mxu0 %v900
  %v1169 = vpop.f32.mrf.mxu0
  %v1170 = vadd.f32 %v879, %v1169
  %v1171 = vpop.f32.mrf.mxu0
  %1172 = vmatprep.mubr.f32.mxu0 0.0
  %1173 = vmatmul.mubr.f32.gmra.mxu0 %v903
  %v1174 = vpop.f32.mrf.mxu0
  %v1175 = vadd.f32 %v879, %v1174
  %v1176 = vpop.f32.mrf.mxu0
  %1177 = vmatprep.mubr.f32.mxu0 0.0
  %1178 = vmatmul.mubr.f32.gmra.mxu0 %v906
  %v1179 = vpop.f32.mrf.mxu0
  %v1180 = vadd.f32 %v879, %v1179
  %v1181 = vpop.f32.mrf.mxu0
  %1182 = vmatprep.mubr.f32.mxu0 0.0
  %1183 = vmatmul.mubr.f32.gmra.mxu0 %v909
  %v1184 = vpop.f32.mrf.mxu0
  %v1185 = vadd.f32 %v879, %v1184
  %v1186 = vpop.f32.mrf.mxu0
  %1187 = vmatprep.mubr.f32.mxu0 0.0
  %1188 = vmatmul.mubr.f32.gmra.mxu0 %v912
  %v1189 = vpop.f32.mrf.mxu0
  %v1190 = vadd.f32 %v879, %v1189
  %v1191 = vpop.f32.mrf.mxu0
  %1192 = vmatprep.mubr.f32.mxu0 0.0
  %1193 = vmatmul.mubr.f32.gmra.mxu0 %v915
  %v1194 = vpop.f32.mrf.mxu0
  %v1195 = vadd.f32 %v879, %v1194
  %v1196 = vpop.f32.mrf.mxu0
  %1197 = vmatprep.mubr.f32.mxu0 0.0
  %1198 = vmatmul.mubr.f32.gmra.mxu0 %v918
  %v1199 = vpop.f32.mrf.mxu0
  %v1200 = vadd.f32 %v879, %v1199
  %v1201 = vpop.f32.mrf.mxu0
  %1202 = vmatprep.mubr.f32.mxu0 0.0
  %1203 = vmatmul.mubr.f32.gmra.mxu0 %v921
  %v1204 = vpop.f32.mrf.mxu0
  %v1205 = vadd.f32 %v879, %v1204
  %v1206 = vpop.f32.mrf.mxu0
  %1207 = vmatprep.mubr.f32.mxu0 0.0
  %1208 = vmatmul.mubr.f32.gmra.mxu0 %v924
  %v1209 = vpop.f32.mrf.mxu0
  %v1210 = vadd.f32 %v879, %v1209
  %v1211 = vpop.f32.mrf.mxu0
  %1212 = vmatprep.mubr.f32.mxu0 0.0
  %1213 = vmatmul.mubr.f32.gmra.mxu0 %v927
  %v1214 = vpop.f32.mrf.mxu0
  %v1215 = vadd.f32 %v879, %v1214
  %v1216 = vpop.f32.mrf.mxu0
  %1217 = vmatprep.mubr.f32.mxu0 0.0
  %1218 = vmatmul.mubr.f32.gmra.mxu0 %v930
  %v1219 = vpop.f32.mrf.mxu0
  %v1220 = vadd.f32 %v879, %v1219
  %v1221 = vpop.f32.mrf.mxu0
  %1222 = vmatprep.mubr.f32.mxu0 0.0
  %1223 = vmatmul.mubr.f32.gmra.mxu0 %v933
  %v1224 = vpop.f32.mrf.mxu0
  %v1225 = vadd.f32 %v879, %v1224
  %v1226 = vpop.f32.mrf.mxu0
  %1227 = vmatprep.mubr.f32.mxu0 0.0
  %1228 = vmatmul.mubr.f32.gmra.mxu0 %v936
  %v1229 = vpop.f32.mrf.mxu0
  %v1230 = vadd.f32 %v879, %v1229
  %v1231 = vpop.f32.mrf.mxu0
  %1232 = vmatprep.mubr.f32.mxu0 0.0
  %1233 = vmatmul.mubr.f32.gmra.mxu0 %v939
  %v1234 = vpop.f32.mrf.mxu0
  %v1235 = vadd.f32 %v879, %v1234
  %v1236 = vpop.f32.mrf.mxu0
  %1237 = vmatprep.mubr.f32.mxu0 0.0
  %1238 = vmatmul.mubr.f32.gmra.mxu0 %v942
  %v1239 = vpop.f32.mrf.mxu0
  %v1240 = vadd.f32 %v879, %v1239
  %v1241 = vpop.f32.mrf.mxu0
  %1242 = vmatprep.mubr.f32.mxu0 0.0
  %1243 = vmatmul.mubr.f32.gmra.mxu0 %v945
  %v1244 = vpop.f32.mrf.mxu0
  %v1245 = vadd.f32 %v879, %v1244
  %v1246 = vpop.f32.mrf.mxu0
  %1247 = vmatprep.mubr.f32.mxu0 0.0
  %1248 = vmatmul.mubr.f32.gmra.mxu0 %v948
  %v1249 = vpop.f32.mrf.mxu0
  %v1250 = vadd.f32 %v879, %v1249
  %v1251 = vpop.f32.mrf.mxu0
  %1252 = vmatprep.mubr.f32.mxu0 0.0
  %1253 = vmatmul.mubr.f32.gmra.mxu0 %v951
  %v1254 = vpop.f32.mrf.mxu0
  %v1255 = vadd.f32 %v879, %v1254
  %v1256 = vpop.f32.mrf.mxu0
  %1257 = vmatprep.mubr.f32.mxu0 0.0
  %1258 = vmatmul.mubr.f32.gmra.mxu0 %v954
  %v1259 = vpop.f32.mrf.mxu0
  %v1260 = vadd.f32 %v879, %v1259
  %v1261 = vpop.f32.mrf.mxu0
  %1262 = vmatprep.mubr.f32.mxu0 0.0
  %1263 = vmatmul.mubr.f32.gmra.mxu0 %v957
  %v1264 = vpop.f32.mrf.mxu0
  %v1265 = vadd.f32 %v879, %v1264
  %v1266 = vpop.f32.mrf.mxu0
  %1267 = vmatprep.mubr.f32.mxu0 0.0
  %1268 = vmatmul.mubr.f32.gmra.mxu0 %v960
  %v1269 = vpop.f32.mrf.mxu0
  %v1270 = vadd.f32 %v879, %v1269
  %v1271 = vpop.f32.mrf.mxu0
  %1272 = vmatprep.mubr.f32.mxu0 0.0
  %1273 = vmatmul.mubr.f32.gmra.mxu0 %v963
  %v1274 = vpop.f32.mrf.mxu0
  %v1275 = vadd.f32 %v879, %v1274
  %v1276 = vpop.f32.mrf.mxu0
  %1277 = vmatprep.mubr.f32.mxu0 0.0
  %1278 = vmatmul.mubr.f32.gmra.mxu0 %v966
  %v1279 = vpop.f32.mrf.mxu0
  %v1280 = vadd.f32 %v879, %v1279
  %v1281 = vpop.f32.mrf.mxu0
  %1282 = vmatprep.mubr.f32.mxu0 0.0
  %1283 = vmatmul.mubr.f32.gmra.mxu0 %v969
  %v1284 = vpop.f32.mrf.mxu0
  %v1285 = vadd.f32 %v879, %v1284
  %v1286 = vpop.f32.mrf.mxu0
  %1287 = vmatprep.mubr.f32.mxu0 0.0
  %1288 = vmatmul.mubr.f32.gmra.mxu0 %v972
  %v1289 = vpop.f32.mrf.mxu0
  %v1290 = vadd.f32 %v879, %v1289
  %v1291 = vpop.f32.mrf.mxu0
  %1292 = vmatprep.mubr.f32.mxu0 0.0
  %1293 = vmatmul.mubr.f32.gmra.mxu0 %v975
  %v1294 = vpop.f32.mrf.mxu0
  %v1295 = vadd.f32 %v879, %v1294
  %v1296 = vpop.f32.mrf.mxu0
  %1297 = vmatprep.mubr.f32.mxu0 0.0
  %1298 = vmatmul.mubr.f32.gmra.mxu0 %v978
  %v1299 = vpop.f32.mrf.mxu0
  %v1300 = vadd.f32 %v879, %v1299
  %v1301 = vpop.f32.mrf.mxu0
  %1302 = vmatprep.mubr.f32.mxu0 0.0
  %1303 = vmatmul.mubr.f32.gmra.mxu0 %v981
  %v1304 = vpop.f32.mrf.mxu0
  %v1305 = vadd.f32 %v879, %v1304
  %v1306 = vpop.f32.mrf.mxu0
  %1307 = vmatprep.mubr.f32.mxu0 0.0
  %1308 = vmatmul.mubr.f32.gmra.mxu0 %v984
  %v1309 = vpop.f32.mrf.mxu0
  %v1310 = vadd.f32 %v879, %v1309
  %v1311 = vpop.f32.mrf.mxu0
  %1312 = vmatprep.mubr.f32.mxu0 0.0
  %1313 = vmatmul.mubr.f32.gmra.mxu0 %v987
  %v1314 = vpop.f32.mrf.mxu0
  %v1315 = vadd.f32 %v879, %v1314
  %v1316 = vpop.f32.mrf.mxu0
  %1317 = vmatprep.mubr.f32.mxu0 0.0
  %1318 = vmatmul.mubr.f32.gmra.mxu0 %v990
  %v1319 = vpop.f32.mrf.mxu0
  %v1320 = vadd.f32 %v879, %v1319
  %v1321 = vpop.f32.mrf.mxu0
  %1322 = vmatprep.mubr.f32.mxu0 0.0
  %1323 = vmatmul.mubr.f32.gmra.mxu0 %v993
  %v1324 = vpop.f32.mrf.mxu0
  %v1325 = vadd.f32 %v879, %v1324
  %v1326 = vpop.f32.mrf.mxu0
  %1327 = vmatprep.mubr.f32.mxu0 0.0
  %1328 = vmatmul.mubr.f32.gmra.mxu0 %v996
  %v1329 = vpop.f32.mrf.mxu0
  %v1330 = vadd.f32 %v879, %v1329
  %v1331 = vpop.f32.mrf.mxu0
  %1332 = vmatprep.mubr.f32.mxu0 0.0
  %1333 = vmatmul.mubr.f32.gmra.mxu0 %v999
  %v1334 = vpop.f32.mrf.mxu0
  %v1335 = vadd.f32 %v879, %v1334
  %v1336 = vpop.f32.mrf.mxu0
  %1337 = vmatprep.mubr.f32.mxu0 0.0
  %1338 = vmatmul.mubr.f32.gmra.mxu0 %v1002
  %v1339 = vpop.f32.mrf.mxu0
  %v1340 = vadd.f32 %v879, %v1339
  %v1341 = vpop.f32.mrf.mxu0
  %1342 = vmatprep.mubr.f32.mxu0 0.0
  %1343 = vmatmul.mubr.f32.gmra.mxu0 %v1005
  %v1344 = vpop.f32.mrf.mxu0
  %v1345 = vadd.f32 %v879, %v1344
  %v1346 = vpop.f32.mrf.mxu0
  %1347 = vmatprep.mubr.f32.mxu0 0.0
  %1348 = vmatmul.mubr.f32.gmra.mxu0 %v1008
  %v1349 = vpop.f32.mrf.mxu0
  %v1350 = vadd.f32 %v879, %v1349
  %v1351 = vpop.f32.mrf.mxu0
  %1352 = vmatprep.mubr.f32.mxu0 0.0
  %1353 = vmatmul.mubr.f32.gmra.mxu0 %v1011
  %v1354 = vpop.f32.mrf.mxu0
  %v1355 = vadd.f32 %v879, %v1354
  %v1356 = vpop.f32.mrf.mxu0
  %1357 = vmatprep.mubr.f32.mxu0 0.0
  %1358 = vmatmul.mubr.f32.gmra.mxu0 %v1014
  %v1359 = vpop.f32.mrf.mxu0
  %v1360 = vadd.f32 %v879, %v1359
  %v1361 = vpop.f32.mrf.mxu0
  %1362 = vmatprep.mubr.f32.mxu0 0.0
  %1363 = vmatmul.mubr.f32.gmra.mxu0 %v1017
  %v1364 = vpop.f32.mrf.mxu0
  %v1365 = vadd.f32 %v879, %v1364
  %v1366 = vpop.f32.mrf.mxu0
  %1367 = vmatprep.mubr.f32.mxu0 0.0
  %1368 = vmatmul.mubr.f32.gmra.mxu0 %v1020
  %v1369 = vpop.f32.mrf.mxu0
  %v1370 = vadd.f32 %v879, %v1369
  %v1371 = vpop.f32.mrf.mxu0
  %1372 = vmatprep.mubr.f32.mxu0 0.0
  %1373 = vmatmul.mubr.f32.gmra.mxu0 %v1023
  %v1374 = vpop.f32.mrf.mxu0
  %v1375 = vadd.f32 %v879, %v1374
  %v1376 = vpop.f32.mrf.mxu0
  %1377 = vmatprep.mubr.f32.mxu0 0.0
  %1378 = vmatmul.mubr.f32.gmra.mxu0 %v1026
  %v1379 = vpop.f32.mrf.mxu0
  %v1380 = vadd.f32 %v879, %v1379
  %v1381 = vpop.f32.mrf.mxu0
  %1382 = vmatprep.mubr.f32.mxu0 0.0
  %1383 = vmatmul.mubr.f32.gmra.mxu0 %v1029
  %v1384 = vpop.f32.mrf.mxu0
  %v1385 = vadd.f32 %v879, %v1384
  %v1386 = vpop.f32.mrf.mxu0
  %1387 = vmatprep.mubr.f32.mxu0 0.0
  %1388 = vmatmul.mubr.f32.gmra.mxu0 %v1032
  %v1389 = vpop.f32.mrf.mxu0
  %v1390 = vadd.f32 %v879, %v1389
  %v1391 = vpop.f32.mrf.mxu0
  %1392 = vmatprep.mubr.f32.mxu0 0.0
  %1393 = vmatmul.mubr.f32.gmra.mxu0 %v1035
  %v1394 = vpop.f32.mrf.mxu0
  %v1395 = vadd.f32 %v879, %v1394
  %v1396 = vpop.f32.mrf.mxu0
  %1397 = vmatprep.mubr.f32.mxu0 0.0
  %1398 = vmatmul.mubr.f32.gmra.mxu0 %v1038
  %v1399 = vpop.f32.mrf.mxu0
  %v1400 = vadd.f32 %v879, %v1399
  %v1401 = vpop.f32.mrf.mxu0
  %1402 = vmatprep.mubr.f32.mxu0 0.0
  %1403 = vmatmul.mubr.f32.gmra.mxu0 %v1041
  %v1404 = vpop.f32.mrf.mxu0
  %v1405 = vadd.f32 %v879, %v1404
  %v1406 = vpop.f32.mrf.mxu0
  %1407 = vmatprep.mubr.f32.mxu0 0.0
  %1408 = vmatmul.mubr.f32.gmra.mxu0 %v1044
  %v1409 = vpop.f32.mrf.mxu0
  %v1410 = vadd.f32 %v879, %v1409
  %v1411 = vpop.f32.mrf.mxu0
  %1412 = vmatprep.mubr.f32.mxu0 0.0
  %1413 = vmatmul.mubr.f32.gmra.mxu0 %v1047
  %v1414 = vpop.f32.mrf.mxu0
  %v1415 = vadd.f32 %v879, %v1414
  %v1416 = vpop.f32.mrf.mxu0
  %1417 = vmatprep.mubr.f32.mxu0 0.0
  %1418 = vmatmul.mubr.f32.gmra.mxu0 %v1050
  %v1419 = vpop.f32.mrf.mxu0
  %v1420 = vadd.f32 %v879, %v1419
  %v1421 = vpop.f32.mrf.mxu0
  %1422 = vmatprep.mubr.f32.mxu0 0.0
  %1423 = vmatmul.mubr.f32.gmra.mxu0 %v1053
  %v1424 = vpop.f32.mrf.mxu0
  %v1425 = vadd.f32 %v879, %v1424
  %v1426 = vpop.f32.mrf.mxu0
  %1427 = vmatprep.mubr.f32.mxu0 0.0
  %1428 = vmatmul.mubr.f32.gmra.mxu0 %v1056
  %v1429 = vpop.f32.mrf.mxu0
  %v1430 = vadd.f32 %v879, %v1429
  %v1431 = vpop.f32.mrf.mxu0
  %1432 = vmatprep.mubr.f32.mxu0 0.0
  %1433 = vmatmul.mubr.f32.gmra.mxu0 %v1059
  %v1434 = vpop.f32.mrf.mxu0
  %v1435 = vadd.f32 %v879, %v1434
  %v1436 = vpop.f32.mrf.mxu0
  %1437 = vmatprep.mubr.f32.mxu0 0.0
  %1438 = vmatmul.mubr.f32.gmra.mxu0 %v1062
  %v1439 = vpop.f32.mrf.mxu0
  %v1440 = vadd.f32 %v879, %v1439
  %v1441 = vpop.f32.mrf.mxu0
  %1442 = vmatprep.mubr.f32.mxu0 0.0
  %1443 = vmatmul.mubr.f32.gmra.mxu0 %v1065
  %v1444 = vpop.f32.mrf.mxu0
  %v1445 = vadd.f32 %v879, %v1444
  %v1446 = vpop.f32.mrf.mxu0
  %1447 = vmatprep.mubr.f32.mxu0 0.0
  %1448 = vmatmul.mubr.f32.gmra.mxu0 %v1068
  %v1449 = vpop.f32.mrf.mxu0
  %v1450 = vadd.f32 %v879, %v1449
  %v1451 = vpop.f32.mrf.mxu0
  %1452 = vmatprep.mubr.f32.mxu0 0.0
  %1453 = vmatmul.mubr.f32.gmra.mxu0 %v1071
  %v1454 = vpop.f32.mrf.mxu0
  %v1455 = vadd.f32 %v879, %v1454
  %v1456 = vpop.f32.mrf.mxu0
  %1457 = vmatprep.mubr.f32.mxu0 0.0
  %1458 = vmatmul.mubr.f32.gmra.mxu0 %v139
  %v1459 = vpop.f32.mrf.mxu0
  %v1460 = vadd.f32 %v879, %v1459
  %v1461 = vpop.f32.mrf.mxu0
  %1462 = vmatprep.mubr.f32.mxu0 0.0
  %1463 = vmatmul.mubr.f32.gmra.mxu0 %v142
  %v1464 = vpop.f32.mrf.mxu0
  %v1465 = vadd.f32 %v879, %v1464
  %v1466 = vpop.f32.mrf.mxu0
  %1467 = vmatprep.mubr.f32.mxu0 0.0
  %1468 = vmatmul.mubr.f32.gmra.mxu0 %v145
  %v1469 = vpop.f32.mrf.mxu0
  %v1470 = vadd.f32 %v879, %v1469
  %v1471 = vpop.f32.mrf.mxu0
  %1472 = vmatprep.mubr.f32.mxu0 0.0
  %1473 = vmatmul.mubr.f32.gmra.mxu0 %v148
  %v1474 = vpop.f32.mrf.mxu0
  %v1475 = vadd.f32 %v879, %v1474
  %v1476 = vpop.f32.mrf.mxu0
  %1477 = vmatprep.mubr.f32.mxu0 0.0
  %1478 = vmatmul.mubr.f32.gmra.mxu0 %v151
  %v1479 = vpop.f32.mrf.mxu0
  %v1480 = vadd.f32 %v879, %v1479
  %v1481 = vpop.f32.mrf.mxu0
  %1482 = vmatprep.mubr.f32.mxu0 0.0
  %1483 = vmatmul.mubr.f32.gmra.mxu0 %v154
  %v1484 = vpop.f32.mrf.mxu0
  %v1485 = vadd.f32 %v879, %v1484
  %v1486 = vpop.f32.mrf.mxu0
  %1487 = vmatprep.mubr.f32.mxu0 0.0
  %1488 = vmatmul.mubr.f32.gmra.mxu0 %v157
  %v1489 = vpop.f32.mrf.mxu0
  %v1490 = vadd.f32 %v879, %v1489
  %v1491 = vpop.f32.mrf.mxu0
  %1492 = vmatprep.mubr.f32.mxu0 0.0
  %1493 = vmatmul.mubr.f32.gmra.mxu0 %v160
  %v1494 = vpop.f32.mrf.mxu0
  %v1495 = vadd.f32 %v879, %v1494
  %v1496 = vpop.f32.mrf.mxu0
  %1497 = vmatprep.mubr.f32.mxu0 0.0
  %1498 = vmatmul.mubr.f32.gmra.mxu0 %v163
  %v1499 = vpop.f32.mrf.mxu0
  %v1500 = vadd.f32 %v879, %v1499
  %v1501 = vpop.f32.mrf.mxu0
  %1502 = vmatprep.mubr.f32.mxu0 0.0
  %1503 = vmatmul.mubr.f32.gmra.mxu0 %v166
  %v1504 = vpop.f32.mrf.mxu0
  %v1505 = vadd.f32 %v879, %v1504
  %v1506 = vpop.f32.mrf.mxu0
  %1507 = vmatprep.mubr.f32.mxu0 0.0
  %1508 = vmatmul.mubr.f32.gmra.mxu0 %v169
  %v1509 = vpop.f32.mrf.mxu0
  %v1510 = vadd.f32 %v879, %v1509
  %v1511 = vpop.f32.mrf.mxu0
  %1512 = vmatprep.mubr.f32.mxu0 0.0
  %1513 = vmatmul.mubr.f32.gmra.mxu0 %v172
  %v1514 = vpop.f32.mrf.mxu0
  %v1515 = vadd.f32 %v879, %v1514
  %v1516 = vpop.f32.mrf.mxu0
  %1517 = vmatprep.mubr.f32.mxu0 0.0
  %1518 = vmatmul.mubr.f32.gmra.mxu0 %v175
  %v1519 = vpop.f32.mrf.mxu0
  %v1520 = vadd.f32 %v879, %v1519
  %v1521 = vpop.f32.mrf.mxu0
  %1522 = vmatprep.mubr.f32.mxu0 0.0
  %1523 = vmatmul.mubr.f32.gmra.mxu0 %v178
  %v1524 = vpop.f32.mrf.mxu0
  %v1525 = vadd.f32 %v879, %v1524
  %v1526 = vpop.f32.mrf.mxu0
  %1527 = vmatprep.mubr.f32.mxu0 0.0
  %1528 = vmatmul.mubr.f32.gmra.mxu0 %v181
  %v1529 = vpop.f32.mrf.mxu0
  %v1530 = vadd.f32 %v879, %v1529
  %v1531 = vpop.f32.mrf.mxu0
  %1532 = vmatprep.mubr.f32.mxu0 0.0
  %1533 = vmatmul.mubr.f32.gmra.mxu0 %v184
  %v1534 = vpop.f32.mrf.mxu0
  %v1535 = vadd.f32 %v879, %v1534
  %v1536 = vpop.f32.mrf.mxu0
  %1537 = vmatprep.mubr.f32.mxu0 0.0
  %1538 = vmatmul.mubr.f32.gmra.mxu0 %v187
  %v1539 = vpop.f32.mrf.mxu0
  %v1540 = vadd.f32 %v879, %v1539
  %v1541 = vpop.f32.mrf.mxu0
  %1542 = vmatprep.mubr.f32.mxu0 0.0
  %1543 = vmatmul.mubr.f32.gmra.mxu0 %v190
  %v1544 = vpop.f32.mrf.mxu0
  %v1545 = vadd.f32 %v879, %v1544
  %v1546 = vpop.f32.mrf.mxu0
  %1547 = vmatprep.mubr.f32.mxu0 0.0
  %1548 = vmatmul.mubr.f32.gmra.mxu0 %v193
  %v1549 = vpop.f32.mrf.mxu0
  %v1550 = vadd.f32 %v879, %v1549
  %v1551 = vpop.f32.mrf.mxu0
  %1552 = vmatprep.mubr.f32.mxu0 0.0
  %1553 = vmatmul.mubr.f32.gmra.mxu0 %v196
  %v1554 = vpop.f32.mrf.mxu0
  %v1555 = vadd.f32 %v879, %v1554
  %v1556 = vpop.f32.mrf.mxu0
  %1557 = vmatprep.mubr.f32.mxu0 0.0
  %1558 = vmatmul.mubr.f32.gmra.mxu0 %v199
  %v1559 = vpop.f32.mrf.mxu0
  %v1560 = vadd.f32 %v879, %v1559
  %v1561 = vpop.f32.mrf.mxu0
  %1562 = vmatprep.mubr.f32.mxu0 0.0
  %1563 = vmatmul.mubr.f32.gmra.mxu0 %v202
  %v1564 = vpop.f32.mrf.mxu0
  %v1565 = vadd.f32 %v879, %v1564
  %v1566 = vpop.f32.mrf.mxu0
  %1567 = vmatprep.mubr.f32.mxu0 0.0
  %1568 = vmatmul.mubr.f32.gmra.mxu0 %v205
  %v1569 = vpop.f32.mrf.mxu0
  %v1570 = vadd.f32 %v879, %v1569
  %v1571 = vpop.f32.mrf.mxu0
  %1572 = vmatprep.mubr.f32.mxu0 0.0
  %1573 = vmatmul.mubr.f32.gmra.mxu0 %v208
  %v1574 = vpop.f32.mrf.mxu0
  %v1575 = vadd.f32 %v879, %v1574
  %v1576 = vpop.f32.mrf.mxu0
  %1577 = vmatprep.mubr.f32.mxu0 0.0
  %1578 = vmatmul.mubr.f32.gmra.mxu0 %v211
  %v1579 = vpop.f32.mrf.mxu0
  %v1580 = vadd.f32 %v879, %v1579
  %v1581 = vpop.f32.mrf.mxu0
  %1582 = vmatprep.mubr.f32.mxu0 0.0
  %1583 = vmatmul.mubr.f32.gmra.mxu0 %v214
  %v1584 = vpop.f32.mrf.mxu0
  %v1585 = vadd.f32 %v879, %v1584
  %v1586 = vpop.f32.mrf.mxu0
  %1587 = vmatprep.mubr.f32.mxu0 0.0
  %1588 = vmatmul.mubr.f32.gmra.mxu0 %v217
  %v1589 = vpop.f32.mrf.mxu0
  %v1590 = vadd.f32 %v879, %v1589
  %v1591 = vpop.f32.mrf.mxu0
  %1592 = vmatprep.mubr.f32.mxu0 0.0
  %1593 = vmatmul.mubr.f32.gmra.mxu0 %v220
  %v1594 = vpop.f32.mrf.mxu0
  %v1595 = vadd.f32 %v879, %v1594
  %v1596 = vpop.f32.mrf.mxu0
  %1597 = vmatprep.mubr.f32.mxu0 0.0
  %1598 = vmatmul.mubr.f32.gmra.mxu0 %v223
  %v1599 = vpop.f32.mrf.mxu0
  %v1600 = vadd.f32 %v879, %v1599
  %v1601 = vpop.f32.mrf.mxu0
  %1602 = vmatprep.mubr.f32.mxu0 0.0
  %1603 = vmatmul.mubr.f32.gmra.mxu0 %v226
  %v1604 = vpop.f32.mrf.mxu0
  %v1605 = vadd.f32 %v879, %v1604
  %v1606 = vpop.f32.mrf.mxu0
  %1607 = vmatprep.mubr.f32.mxu0 0.0
  %1608 = vmatmul.mubr.f32.gmra.mxu0 %v229
  %v1609 = vpop.f32.mrf.mxu0
  %v1610 = vadd.f32 %v879, %v1609
  %v1611 = vpop.f32.mrf.mxu0
  %1612 = vmatprep.mubr.f32.mxu0 0.0
  %1613 = vmatmul.mubr.f32.gmra.mxu0 %v232
  %v1614 = vpop.f32.mrf.mxu0
  %v1615 = vadd.f32 %v879, %v1614
  %v1616 = vpop.f32.mrf.mxu0
  %1617 = vdwg.mxu0
  %v1618 = vmul.f32 %v1140, %v1140
  %v1619 = vmul.f32 %v1145, %v1145
  %v1620 = vmul.f32 %v1150, %v1150
  %v1621 = vmul.f32 %v1155, %v1155
  %v1622 = vmul.f32 %v1160, %v1160
  %v1623 = vmul.f32 %v1165, %v1165
  %v1624 = vmul.f32 %v1170, %v1170
  %v1625 = vmul.f32 %v1175, %v1175
  %v1626 = vmul.f32 %v1180, %v1180
  %v1627 = vmul.f32 %v1185, %v1185
  %v1628 = vmul.f32 %v1190, %v1190
  %v1629 = vmul.f32 %v1195, %v1195
  %v1630 = vmul.f32 %v1200, %v1200
  %v1631 = vmul.f32 %v1205, %v1205
  %v1632 = vmul.f32 %v1210, %v1210
  %v1633 = vmul.f32 %v1215, %v1215
  %v1634 = vmul.f32 %v1220, %v1220
  %v1635 = vmul.f32 %v1225, %v1225
  %v1636 = vmul.f32 %v1230, %v1230
  %v1637 = vmul.f32 %v1235, %v1235
  %v1638 = vmul.f32 %v1240, %v1240
  %v1639 = vmul.f32 %v1245, %v1245
  %v1640 = vmul.f32 %v1250, %v1250
  %v1641 = vmul.f32 %v1255, %v1255
  %v1642 = vmul.f32 %v1260, %v1260
  %v1643 = vmul.f32 %v1265, %v1265
  %v1644 = vmul.f32 %v1270, %v1270
  %v1645 = vmul.f32 %v1275, %v1275
  %v1646 = vmul.f32 %v1280, %v1280
  %v1647 = vmul.f32 %v1285, %v1285
  %v1648 = vmul.f32 %v1290, %v1290
  %v1649 = vmul.f32 %v1295, %v1295
  %v1650 = vsub.f32 1.0, %v1618
  %v1651 = vsub.f32 1.0, %v1619
  %v1652 = vsub.f32 1.0, %v1620
  %v1653 = vsub.f32 1.0, %v1621
  %v1654 = vsub.f32 1.0, %v1622
  %v1655 = vsub.f32 1.0, %v1623
  %v1656 = vsub.f32 1.0, %v1624
  %v1657 = vsub.f32 1.0, %v1625
  %v1658 = vsub.f32 1.0, %v1626
  %v1659 = vsub.f32 1.0, %v1627
  %v1660 = vsub.f32 1.0, %v1628
  %v1661 = vsub.f32 1.0, %v1629
  %v1662 = vsub.f32 1.0, %v1630
  %v1663 = vsub.f32 1.0, %v1631
  %v1664 = vsub.f32 1.0, %v1632
  %v1665 = vsub.f32 1.0, %v1633
  %v1666 = vsub.f32 1.0, %v1634
  %v1667 = vsub.f32 1.0, %v1635
  %v1668 = vsub.f32 1.0, %v1636
  %v1669 = vsub.f32 1.0, %v1637
  %v1670 = vsub.f32 1.0, %v1638
  %v1671 = vsub.f32 1.0, %v1639
  %v1672 = vsub.f32 1.0, %v1640
  %v1673 = vsub.f32 1.0, %v1641
  %v1674 = vsub.f32 1.0, %v1642
  %v1675 = vsub.f32 1.0, %v1643
  %v1676 = vsub.f32 1.0, %v1644
  %v1677 = vsub.f32 1.0, %v1645
  %v1678 = vsub.f32 1.0, %v1646
  %v1679 = vsub.f32 1.0, %v1647
  %v1680 = vsub.f32 1.0, %v1648
  %v1681 = vsub.f32 1.0, %v1649
  %v1682 = vrsqrt.pop %v1650
  %v1683 = vmul.f32 %v1650, %v1682
  %vm1684 = vcmp.eq.f32.partialorder %v1650, inf
  %v1685 = vsel %vm1684, %v1650, %v1683
  %vm1686 = vcmp.eq.f32.partialorder %v1650, 0.0
  %v1687 = vand.u32 %v1650, 2147483648
  %v1688 = vsel %vm1686, %v1687, %v1685
  %v1689 = vrsqrt.pop %v1651
  %v1690 = vmul.f32 %v1651, %v1689
  %vm1691 = vcmp.eq.f32.partialorder %v1651, inf
  %v1692 = vsel %vm1691, %v1651, %v1690
  %vm1693 = vcmp.eq.f32.partialorder %v1651, 0.0
  %v1694 = vand.u32 %v1651, 2147483648
  %v1695 = vsel %vm1693, %v1694, %v1692
  %v1696 = vrsqrt.pop %v1652
  %v1697 = vmul.f32 %v1652, %v1696
  %vm1698 = vcmp.eq.f32.partialorder %v1652, inf
  %v1699 = vsel %vm1698, %v1652, %v1697
  %vm1700 = vcmp.eq.f32.partialorder %v1652, 0.0
  %v1701 = vand.u32 %v1652, 2147483648
  %v1702 = vsel %vm1700, %v1701, %v1699
  %v1703 = vrsqrt.pop %v1653
  %v1704 = vmul.f32 %v1653, %v1703
  %vm1705 = vcmp.eq.f32.partialorder %v1653, inf
  %v1706 = vsel %vm1705, %v1653, %v1704
  %vm1707 = vcmp.eq.f32.partialorder %v1653, 0.0
  %v1708 = vand.u32 %v1653, 2147483648
  %v1709 = vsel %vm1707, %v1708, %v1706
  %v1710 = vrsqrt.pop %v1654
  %v1711 = vmul.f32 %v1654, %v1710
  %vm1712 = vcmp.eq.f32.partialorder %v1654, inf
  %v1713 = vsel %vm1712, %v1654, %v1711
  %vm1714 = vcmp.eq.f32.partialorder %v1654, 0.0
  %v1715 = vand.u32 %v1654, 2147483648
  %v1716 = vsel %vm1714, %v1715, %v1713
  %v1717 = vrsqrt.pop %v1655
  %v1718 = vmul.f32 %v1655, %v1717
  %vm1719 = vcmp.eq.f32.partialorder %v1655, inf
  %v1720 = vsel %vm1719, %v1655, %v1718
  %vm1721 = vcmp.eq.f32.partialorder %v1655, 0.0
  %v1722 = vand.u32 %v1655, 2147483648
  %v1723 = vsel %vm1721, %v1722, %v1720
  %v1724 = vrsqrt.pop %v1656
  %v1725 = vmul.f32 %v1656, %v1724
  %vm1726 = vcmp.eq.f32.partialorder %v1656, inf
  %v1727 = vsel %vm1726, %v1656, %v1725
  %vm1728 = vcmp.eq.f32.partialorder %v1656, 0.0
  %v1729 = vand.u32 %v1656, 2147483648
  %v1730 = vsel %vm1728, %v1729, %v1727
  %v1731 = vrsqrt.pop %v1657
  %v1732 = vmul.f32 %v1657, %v1731
  %vm1733 = vcmp.eq.f32.partialorder %v1657, inf
  %v1734 = vsel %vm1733, %v1657, %v1732
  %vm1735 = vcmp.eq.f32.partialorder %v1657, 0.0
  %v1736 = vand.u32 %v1657, 2147483648
  %v1737 = vsel %vm1735, %v1736, %v1734
  %v1738 = vrsqrt.pop %v1658
  %v1739 = vmul.f32 %v1658, %v1738
  %vm1740 = vcmp.eq.f32.partialorder %v1658, inf
  %v1741 = vsel %vm1740, %v1658, %v1739
  %vm1742 = vcmp.eq.f32.partialorder %v1658, 0.0
  %v1743 = vand.u32 %v1658, 2147483648
  %v1744 = vsel %vm1742, %v1743, %v1741
  %v1745 = vrsqrt.pop %v1659
  %v1746 = vmul.f32 %v1659, %v1745
  %vm1747 = vcmp.eq.f32.partialorder %v1659, inf
  %v1748 = vsel %vm1747, %v1659, %v1746
  %vm1749 = vcmp.eq.f32.partialorder %v1659, 0.0
  %v1750 = vand.u32 %v1659, 2147483648
  %v1751 = vsel %vm1749, %v1750, %v1748
  %v1752 = vrsqrt.pop %v1660
  %v1753 = vmul.f32 %v1660, %v1752
  %vm1754 = vcmp.eq.f32.partialorder %v1660, inf
  %v1755 = vsel %vm1754, %v1660, %v1753
  %vm1756 = vcmp.eq.f32.partialorder %v1660, 0.0
  %v1757 = vand.u32 %v1660, 2147483648
  %v1758 = vsel %vm1756, %v1757, %v1755
  %v1759 = vrsqrt.pop %v1661
  %v1760 = vmul.f32 %v1661, %v1759
  %vm1761 = vcmp.eq.f32.partialorder %v1661, inf
  %v1762 = vsel %vm1761, %v1661, %v1760
  %vm1763 = vcmp.eq.f32.partialorder %v1661, 0.0
  %v1764 = vand.u32 %v1661, 2147483648
  %v1765 = vsel %vm1763, %v1764, %v1762
  %v1766 = vrsqrt.pop %v1662
  %v1767 = vmul.f32 %v1662, %v1766
  %vm1768 = vcmp.eq.f32.partialorder %v1662, inf
  %v1769 = vsel %vm1768, %v1662, %v1767
  %vm1770 = vcmp.eq.f32.partialorder %v1662, 0.0
  %v1771 = vand.u32 %v1662, 2147483648
  %v1772 = vsel %vm1770, %v1771, %v1769
  %v1773 = vrsqrt.pop %v1663
  %v1774 = vmul.f32 %v1663, %v1773
  %vm1775 = vcmp.eq.f32.partialorder %v1663, inf
  %v1776 = vsel %vm1775, %v1663, %v1774
  %vm1777 = vcmp.eq.f32.partialorder %v1663, 0.0
  %v1778 = vand.u32 %v1663, 2147483648
  %v1779 = vsel %vm1777, %v1778, %v1776
  %v1780 = vrsqrt.pop %v1664
  %v1781 = vmul.f32 %v1664, %v1780
  %vm1782 = vcmp.eq.f32.partialorder %v1664, inf
  %v1783 = vsel %vm1782, %v1664, %v1781
  %vm1784 = vcmp.eq.f32.partialorder %v1664, 0.0
  %v1785 = vand.u32 %v1664, 2147483648
  %v1786 = vsel %vm1784, %v1785, %v1783
  %v1787 = vrsqrt.pop %v1665
  %v1788 = vmul.f32 %v1665, %v1787
  %vm1789 = vcmp.eq.f32.partialorder %v1665, inf
  %v1790 = vsel %vm1789, %v1665, %v1788
  %vm1791 = vcmp.eq.f32.partialorder %v1665, 0.0
  %v1792 = vand.u32 %v1665, 2147483648
  %v1793 = vsel %vm1791, %v1792, %v1790
  %v1794 = vrsqrt.pop %v1666
  %v1795 = vmul.f32 %v1666, %v1794
  %vm1796 = vcmp.eq.f32.partialorder %v1666, inf
  %v1797 = vsel %vm1796, %v1666, %v1795
  %vm1798 = vcmp.eq.f32.partialorder %v1666, 0.0
  %v1799 = vand.u32 %v1666, 2147483648
  %v1800 = vsel %vm1798, %v1799, %v1797
  %v1801 = vrsqrt.pop %v1667
  %v1802 = vmul.f32 %v1667, %v1801
  %vm1803 = vcmp.eq.f32.partialorder %v1667, inf
  %v1804 = vsel %vm1803, %v1667, %v1802
  %vm1805 = vcmp.eq.f32.partialorder %v1667, 0.0
  %v1806 = vand.u32 %v1667, 2147483648
  %v1807 = vsel %vm1805, %v1806, %v1804
  %v1808 = vrsqrt.pop %v1668
  %v1809 = vmul.f32 %v1668, %v1808
  %vm1810 = vcmp.eq.f32.partialorder %v1668, inf
  %v1811 = vsel %vm1810, %v1668, %v1809
  %vm1812 = vcmp.eq.f32.partialorder %v1668, 0.0
  %v1813 = vand.u32 %v1668, 2147483648
  %v1814 = vsel %vm1812, %v1813, %v1811
  %v1815 = vrsqrt.pop %v1669
  %v1816 = vmul.f32 %v1669, %v1815
  %vm1817 = vcmp.eq.f32.partialorder %v1669, inf
  %v1818 = vsel %vm1817, %v1669, %v1816
  %vm1819 = vcmp.eq.f32.partialorder %v1669, 0.0
  %v1820 = vand.u32 %v1669, 2147483648
  %v1821 = vsel %vm1819, %v1820, %v1818
  %v1822 = vrsqrt.pop %v1670
  %v1823 = vmul.f32 %v1670, %v1822
  %vm1824 = vcmp.eq.f32.partialorder %v1670, inf
  %v1825 = vsel %vm1824, %v1670, %v1823
  %vm1826 = vcmp.eq.f32.partialorder %v1670, 0.0
  %v1827 = vand.u32 %v1670, 2147483648
  %v1828 = vsel %vm1826, %v1827, %v1825
  %v1829 = vrsqrt.pop %v1671
  %v1830 = vmul.f32 %v1671, %v1829
  %vm1831 = vcmp.eq.f32.partialorder %v1671, inf
  %v1832 = vsel %vm1831, %v1671, %v1830
  %vm1833 = vcmp.eq.f32.partialorder %v1671, 0.0
  %v1834 = vand.u32 %v1671, 2147483648
  %v1835 = vsel %vm1833, %v1834, %v1832
  %v1836 = vrsqrt.pop %v1672
  %v1837 = vmul.f32 %v1672, %v1836
  %vm1838 = vcmp.eq.f32.partialorder %v1672, inf
  %v1839 = vsel %vm1838, %v1672, %v1837
  %vm1840 = vcmp.eq.f32.partialorder %v1672, 0.0
  %v1841 = vand.u32 %v1672, 2147483648
  %v1842 = vsel %vm1840, %v1841, %v1839
  %v1843 = vrsqrt.pop %v1673
  %v1844 = vmul.f32 %v1673, %v1843
  %vm1845 = vcmp.eq.f32.partialorder %v1673, inf
  %v1846 = vsel %vm1845, %v1673, %v1844
  %vm1847 = vcmp.eq.f32.partialorder %v1673, 0.0
  %v1848 = vand.u32 %v1673, 2147483648
  %v1849 = vsel %vm1847, %v1848, %v1846
  %v1850 = vrsqrt.pop %v1674
  %v1851 = vmul.f32 %v1674, %v1850
  %vm1852 = vcmp.eq.f32.partialorder %v1674, inf
  %v1853 = vsel %vm1852, %v1674, %v1851
  %vm1854 = vcmp.eq.f32.partialorder %v1674, 0.0
  %v1855 = vand.u32 %v1674, 2147483648
  %v1856 = vsel %vm1854, %v1855, %v1853
  %v1857 = vrsqrt.pop %v1675
  %v1858 = vmul.f32 %v1675, %v1857
  %vm1859 = vcmp.eq.f32.partialorder %v1675, inf
  %v1860 = vsel %vm1859, %v1675, %v1858
  %vm1861 = vcmp.eq.f32.partialorder %v1675, 0.0
  %v1862 = vand.u32 %v1675, 2147483648
  %v1863 = vsel %vm1861, %v1862, %v1860
  %v1864 = vrsqrt.pop %v1676
  %v1865 = vmul.f32 %v1676, %v1864
  %vm1866 = vcmp.eq.f32.partialorder %v1676, inf
  %v1867 = vsel %vm1866, %v1676, %v1865
  %vm1868 = vcmp.eq.f32.partialorder %v1676, 0.0
  %v1869 = vand.u32 %v1676, 2147483648
  %v1870 = vsel %vm1868, %v1869, %v1867
  %v1871 = vrsqrt.pop %v1677
  %v1872 = vmul.f32 %v1677, %v1871
  %vm1873 = vcmp.eq.f32.partialorder %v1677, inf
  %v1874 = vsel %vm1873, %v1677, %v1872
  %vm1875 = vcmp.eq.f32.partialorder %v1677, 0.0
  %v1876 = vand.u32 %v1677, 2147483648
  %v1877 = vsel %vm1875, %v1876, %v1874
  %v1878 = vrsqrt.pop %v1678
  %v1879 = vmul.f32 %v1678, %v1878
  %vm1880 = vcmp.eq.f32.partialorder %v1678, inf
  %v1881 = vsel %vm1880, %v1678, %v1879
  %vm1882 = vcmp.eq.f32.partialorder %v1678, 0.0
  %v1883 = vand.u32 %v1678, 2147483648
  %v1884 = vsel %vm1882, %v1883, %v1881
  %v1885 = vrsqrt.pop %v1679
  %v1886 = vmul.f32 %v1679, %v1885
  %vm1887 = vcmp.eq.f32.partialorder %v1679, inf
  %v1888 = vsel %vm1887, %v1679, %v1886
  %vm1889 = vcmp.eq.f32.partialorder %v1679, 0.0
  %v1890 = vand.u32 %v1679, 2147483648
  %v1891 = vsel %vm1889, %v1890, %v1888
  %v1892 = vrsqrt.pop %v1680
  %v1893 = vmul.f32 %v1680, %v1892
  %vm1894 = vcmp.eq.f32.partialorder %v1680, inf
  %v1895 = vsel %vm1894, %v1680, %v1893
  %vm1896 = vcmp.eq.f32.partialorder %v1680, 0.0
  %v1897 = vand.u32 %v1680, 2147483648
  %v1898 = vsel %vm1896, %v1897, %v1895
  %v1899 = vrsqrt.pop %v1681
  %v1900 = vmul.f32 %v1681, %v1899
  %vm1901 = vcmp.eq.f32.partialorder %v1681, inf
  %v1902 = vsel %vm1901, %v1681, %v1900
  %vm1903 = vcmp.eq.f32.partialorder %v1681, 0.0
  %v1904 = vand.u32 %v1681, 2147483648
  %v1905 = vsel %vm1903, %v1904, %v1902
  %v1906 = vmul.f32 %v1460, %v1460
  %v1907 = vmul.f32 %v1465, %v1465
  %v1908 = vmul.f32 %v1470, %v1470
  %v1909 = vmul.f32 %v1475, %v1475
  %v1910 = vmul.f32 %v1480, %v1480
  %v1911 = vmul.f32 %v1485, %v1485
  %v1912 = vmul.f32 %v1490, %v1490
  %v1913 = vmul.f32 %v1495, %v1495
  %v1914 = vmul.f32 %v1500, %v1500
  %v1915 = vmul.f32 %v1505, %v1505
  %v1916 = vmul.f32 %v1510, %v1510
  %v1917 = vmul.f32 %v1515, %v1515
  %v1918 = vmul.f32 %v1520, %v1520
  %v1919 = vmul.f32 %v1525, %v1525
  %v1920 = vmul.f32 %v1530, %v1530
  %v1921 = vmul.f32 %v1535, %v1535
  %v1922 = vmul.f32 %v1540, %v1540
  %v1923 = vmul.f32 %v1545, %v1545
  %v1924 = vmul.f32 %v1550, %v1550
  %v1925 = vmul.f32 %v1555, %v1555
  %v1926 = vmul.f32 %v1560, %v1560
  %v1927 = vmul.f32 %v1565, %v1565
  %v1928 = vmul.f32 %v1570, %v1570
  %v1929 = vmul.f32 %v1575, %v1575
  %v1930 = vmul.f32 %v1580, %v1580
  %v1931 = vmul.f32 %v1585, %v1585
  %v1932 = vmul.f32 %v1590, %v1590
  %v1933 = vmul.f32 %v1595, %v1595
  %v1934 = vmul.f32 %v1600, %v1600
  %v1935 = vmul.f32 %v1605, %v1605
  %v1936 = vmul.f32 %v1610, %v1610
  %v1937 = vmul.f32 %v1615, %v1615
  %v1938 = vsub.f32 1.0, %v1906
  %v1939 = vsub.f32 1.0, %v1907
  %v1940 = vsub.f32 1.0, %v1908
  %v1941 = vsub.f32 1.0, %v1909
  %v1942 = vsub.f32 1.0, %v1910
  %v1943 = vsub.f32 1.0, %v1911
  %v1944 = vsub.f32 1.0, %v1912
  %v1945 = vsub.f32 1.0, %v1913
  %v1946 = vsub.f32 1.0, %v1914
  %v1947 = vsub.f32 1.0, %v1915
  %v1948 = vsub.f32 1.0, %v1916
  %v1949 = vsub.f32 1.0, %v1917
  %v1950 = vsub.f32 1.0, %v1918
  %v1951 = vsub.f32 1.0, %v1919
  %v1952 = vsub.f32 1.0, %v1920
  %v1953 = vsub.f32 1.0, %v1921
  %v1954 = vsub.f32 1.0, %v1922
  %v1955 = vsub.f32 1.0, %v1923
  %v1956 = vsub.f32 1.0, %v1924
  %v1957 = vsub.f32 1.0, %v1925
  %v1958 = vsub.f32 1.0, %v1926
  %v1959 = vsub.f32 1.0, %v1927
  %v1960 = vsub.f32 1.0, %v1928
  %v1961 = vsub.f32 1.0, %v1929
  %v1962 = vsub.f32 1.0, %v1930
  %v1963 = vsub.f32 1.0, %v1931
  %v1964 = vsub.f32 1.0, %v1932
  %v1965 = vsub.f32 1.0, %v1933
  %v1966 = vsub.f32 1.0, %v1934
  %v1967 = vsub.f32 1.0, %v1935
  %v1968 = vsub.f32 1.0, %v1936
  %v1969 = vsub.f32 1.0, %v1937
  %v1970 = vrsqrt.pop %v1938
  %v1971 = vmul.f32 %v1938, %v1970
  %vm1972 = vcmp.eq.f32.partialorder %v1938, inf
  %v1973 = vsel %vm1972, %v1938, %v1971
  %vm1974 = vcmp.eq.f32.partialorder %v1938, 0.0
  %v1975 = vand.u32 %v1938, 2147483648
  %v1976 = vsel %vm1974, %v1975, %v1973
  %v1977 = vrsqrt.pop %v1939
  %v1978 = vmul.f32 %v1939, %v1977
  %vm1979 = vcmp.eq.f32.partialorder %v1939, inf
  %v1980 = vsel %vm1979, %v1939, %v1978
  %vm1981 = vcmp.eq.f32.partialorder %v1939, 0.0
  %v1982 = vand.u32 %v1939, 2147483648
  %v1983 = vsel %vm1981, %v1982, %v1980
  %v1984 = vrsqrt.pop %v1940
  %v1985 = vmul.f32 %v1940, %v1984
  %vm1986 = vcmp.eq.f32.partialorder %v1940, inf
  %v1987 = vsel %vm1986, %v1940, %v1985
  %vm1988 = vcmp.eq.f32.partialorder %v1940, 0.0
  %v1989 = vand.u32 %v1940, 2147483648
  %v1990 = vsel %vm1988, %v1989, %v1987
  %v1991 = vrsqrt.pop %v1941
  %v1992 = vmul.f32 %v1941, %v1991
  %vm1993 = vcmp.eq.f32.partialorder %v1941, inf
  %v1994 = vsel %vm1993, %v1941, %v1992
  %vm1995 = vcmp.eq.f32.partialorder %v1941, 0.0
  %v1996 = vand.u32 %v1941, 2147483648
  %v1997 = vsel %vm1995, %v1996, %v1994
  %v1998 = vrsqrt.pop %v1942
  %v1999 = vmul.f32 %v1942, %v1998
  %vm2000 = vcmp.eq.f32.partialorder %v1942, inf
  %v2001 = vsel %vm2000, %v1942, %v1999
  %vm2002 = vcmp.eq.f32.partialorder %v1942, 0.0
  %v2003 = vand.u32 %v1942, 2147483648
  %v2004 = vsel %vm2002, %v2003, %v2001
  %v2005 = vrsqrt.pop %v1943
  %v2006 = vmul.f32 %v1943, %v2005
  %vm2007 = vcmp.eq.f32.partialorder %v1943, inf
  %v2008 = vsel %vm2007, %v1943, %v2006
  %vm2009 = vcmp.eq.f32.partialorder %v1943, 0.0
  %v2010 = vand.u32 %v1943, 2147483648
  %v2011 = vsel %vm2009, %v2010, %v2008
  %v2012 = vrsqrt.pop %v1944
  %v2013 = vmul.f32 %v1944, %v2012
  %vm2014 = vcmp.eq.f32.partialorder %v1944, inf
  %v2015 = vsel %vm2014, %v1944, %v2013
  %vm2016 = vcmp.eq.f32.partialorder %v1944, 0.0
  %v2017 = vand.u32 %v1944, 2147483648
  %v2018 = vsel %vm2016, %v2017, %v2015
  %v2019 = vrsqrt.pop %v1945
  %v2020 = vmul.f32 %v1945, %v2019
  %vm2021 = vcmp.eq.f32.partialorder %v1945, inf
  %v2022 = vsel %vm2021, %v1945, %v2020
  %vm2023 = vcmp.eq.f32.partialorder %v1945, 0.0
  %v2024 = vand.u32 %v1945, 2147483648
  %v2025 = vsel %vm2023, %v2024, %v2022
  %v2026 = vrsqrt.pop %v1946
  %v2027 = vmul.f32 %v1946, %v2026
  %vm2028 = vcmp.eq.f32.partialorder %v1946, inf
  %v2029 = vsel %vm2028, %v1946, %v2027
  %vm2030 = vcmp.eq.f32.partialorder %v1946, 0.0
  %v2031 = vand.u32 %v1946, 2147483648
  %v2032 = vsel %vm2030, %v2031, %v2029
  %v2033 = vrsqrt.pop %v1947
  %v2034 = vmul.f32 %v1947, %v2033
  %vm2035 = vcmp.eq.f32.partialorder %v1947, inf
  %v2036 = vsel %vm2035, %v1947, %v2034
  %vm2037 = vcmp.eq.f32.partialorder %v1947, 0.0
  %v2038 = vand.u32 %v1947, 2147483648
  %v2039 = vsel %vm2037, %v2038, %v2036
  %v2040 = vrsqrt.pop %v1948
  %v2041 = vmul.f32 %v1948, %v2040
  %vm2042 = vcmp.eq.f32.partialorder %v1948, inf
  %v2043 = vsel %vm2042, %v1948, %v2041
  %vm2044 = vcmp.eq.f32.partialorder %v1948, 0.0
  %v2045 = vand.u32 %v1948, 2147483648
  %v2046 = vsel %vm2044, %v2045, %v2043
  %v2047 = vrsqrt.pop %v1949
  %v2048 = vmul.f32 %v1949, %v2047
  %vm2049 = vcmp.eq.f32.partialorder %v1949, inf
  %v2050 = vsel %vm2049, %v1949, %v2048
  %vm2051 = vcmp.eq.f32.partialorder %v1949, 0.0
  %v2052 = vand.u32 %v1949, 2147483648
  %v2053 = vsel %vm2051, %v2052, %v2050
  %v2054 = vrsqrt.pop %v1950
  %v2055 = vmul.f32 %v1950, %v2054
  %vm2056 = vcmp.eq.f32.partialorder %v1950, inf
  %v2057 = vsel %vm2056, %v1950, %v2055
  %vm2058 = vcmp.eq.f32.partialorder %v1950, 0.0
  %v2059 = vand.u32 %v1950, 2147483648
  %v2060 = vsel %vm2058, %v2059, %v2057
  %v2061 = vrsqrt.pop %v1951
  %v2062 = vmul.f32 %v1951, %v2061
  %vm2063 = vcmp.eq.f32.partialorder %v1951, inf
  %v2064 = vsel %vm2063, %v1951, %v2062
  %vm2065 = vcmp.eq.f32.partialorder %v1951, 0.0
  %v2066 = vand.u32 %v1951, 2147483648
  %v2067 = vsel %vm2065, %v2066, %v2064
  %v2068 = vrsqrt.pop %v1952
  %v2069 = vmul.f32 %v1952, %v2068
  %vm2070 = vcmp.eq.f32.partialorder %v1952, inf
  %v2071 = vsel %vm2070, %v1952, %v2069
  %vm2072 = vcmp.eq.f32.partialorder %v1952, 0.0
  %v2073 = vand.u32 %v1952, 2147483648
  %v2074 = vsel %vm2072, %v2073, %v2071
  %v2075 = vrsqrt.pop %v1953
  %v2076 = vmul.f32 %v1953, %v2075
  %vm2077 = vcmp.eq.f32.partialorder %v1953, inf
  %v2078 = vsel %vm2077, %v1953, %v2076
  %vm2079 = vcmp.eq.f32.partialorder %v1953, 0.0
  %v2080 = vand.u32 %v1953, 2147483648
  %v2081 = vsel %vm2079, %v2080, %v2078
  %v2082 = vrsqrt.pop %v1954
  %v2083 = vmul.f32 %v1954, %v2082
  %vm2084 = vcmp.eq.f32.partialorder %v1954, inf
  %v2085 = vsel %vm2084, %v1954, %v2083
  %vm2086 = vcmp.eq.f32.partialorder %v1954, 0.0
  %v2087 = vand.u32 %v1954, 2147483648
  %v2088 = vsel %vm2086, %v2087, %v2085
  %v2089 = vrsqrt.pop %v1955
  %v2090 = vmul.f32 %v1955, %v2089
  %vm2091 = vcmp.eq.f32.partialorder %v1955, inf
  %v2092 = vsel %vm2091, %v1955, %v2090
  %vm2093 = vcmp.eq.f32.partialorder %v1955, 0.0
  %v2094 = vand.u32 %v1955, 2147483648
  %v2095 = vsel %vm2093, %v2094, %v2092
  %v2096 = vrsqrt.pop %v1956
  %v2097 = vmul.f32 %v1956, %v2096
  %vm2098 = vcmp.eq.f32.partialorder %v1956, inf
  %v2099 = vsel %vm2098, %v1956, %v2097
  %vm2100 = vcmp.eq.f32.partialorder %v1956, 0.0
  %v2101 = vand.u32 %v1956, 2147483648
  %v2102 = vsel %vm2100, %v2101, %v2099
  %v2103 = vrsqrt.pop %v1957
  %v2104 = vmul.f32 %v1957, %v2103
  %vm2105 = vcmp.eq.f32.partialorder %v1957, inf
  %v2106 = vsel %vm2105, %v1957, %v2104
  %vm2107 = vcmp.eq.f32.partialorder %v1957, 0.0
  %v2108 = vand.u32 %v1957, 2147483648
  %v2109 = vsel %vm2107, %v2108, %v2106
  %v2110 = vrsqrt.pop %v1958
  %v2111 = vmul.f32 %v1958, %v2110
  %vm2112 = vcmp.eq.f32.partialorder %v1958, inf
  %v2113 = vsel %vm2112, %v1958, %v2111
  %vm2114 = vcmp.eq.f32.partialorder %v1958, 0.0
  %v2115 = vand.u32 %v1958, 2147483648
  %v2116 = vsel %vm2114, %v2115, %v2113
  %v2117 = vrsqrt.pop %v1959
  %v2118 = vmul.f32 %v1959, %v2117
  %vm2119 = vcmp.eq.f32.partialorder %v1959, inf
  %v2120 = vsel %vm2119, %v1959, %v2118
  %vm2121 = vcmp.eq.f32.partialorder %v1959, 0.0
  %v2122 = vand.u32 %v1959, 2147483648
  %v2123 = vsel %vm2121, %v2122, %v2120
  %v2124 = vrsqrt.pop %v1960
  %v2125 = vmul.f32 %v1960, %v2124
  %vm2126 = vcmp.eq.f32.partialorder %v1960, inf
  %v2127 = vsel %vm2126, %v1960, %v2125
  %vm2128 = vcmp.eq.f32.partialorder %v1960, 0.0
  %v2129 = vand.u32 %v1960, 2147483648
  %v2130 = vsel %vm2128, %v2129, %v2127
  %v2131 = vrsqrt.pop %v1961
  %v2132 = vmul.f32 %v1961, %v2131
  %vm2133 = vcmp.eq.f32.partialorder %v1961, inf
  %v2134 = vsel %vm2133, %v1961, %v2132
  %vm2135 = vcmp.eq.f32.partialorder %v1961, 0.0
  %v2136 = vand.u32 %v1961, 2147483648
  %v2137 = vsel %vm2135, %v2136, %v2134
  %v2138 = vrsqrt.pop %v1962
  %v2139 = vmul.f32 %v1962, %v2138
  %vm2140 = vcmp.eq.f32.partialorder %v1962, inf
  %v2141 = vsel %vm2140, %v1962, %v2139
  %vm2142 = vcmp.eq.f32.partialorder %v1962, 0.0
  %v2143 = vand.u32 %v1962, 2147483648
  %v2144 = vsel %vm2142, %v2143, %v2141
  %v2145 = vrsqrt.pop %v1963
  %v2146 = vmul.f32 %v1963, %v2145
  %vm2147 = vcmp.eq.f32.partialorder %v1963, inf
  %v2148 = vsel %vm2147, %v1963, %v2146
  %vm2149 = vcmp.eq.f32.partialorder %v1963, 0.0
  %v2150 = vand.u32 %v1963, 2147483648
  %v2151 = vsel %vm2149, %v2150, %v2148
  %v2152 = vrsqrt.pop %v1964
  %v2153 = vmul.f32 %v1964, %v2152
  %vm2154 = vcmp.eq.f32.partialorder %v1964, inf
  %v2155 = vsel %vm2154, %v1964, %v2153
  %vm2156 = vcmp.eq.f32.partialorder %v1964, 0.0
  %v2157 = vand.u32 %v1964, 2147483648
  %v2158 = vsel %vm2156, %v2157, %v2155
  %v2159 = vrsqrt.pop %v1965
  %v2160 = vmul.f32 %v1965, %v2159
  %vm2161 = vcmp.eq.f32.partialorder %v1965, inf
  %v2162 = vsel %vm2161, %v1965, %v2160
  %vm2163 = vcmp.eq.f32.partialorder %v1965, 0.0
  %v2164 = vand.u32 %v1965, 2147483648
  %v2165 = vsel %vm2163, %v2164, %v2162
  %v2166 = vrsqrt.pop %v1966
  %v2167 = vmul.f32 %v1966, %v2166
  %vm2168 = vcmp.eq.f32.partialorder %v1966, inf
  %v2169 = vsel %vm2168, %v1966, %v2167
  %vm2170 = vcmp.eq.f32.partialorder %v1966, 0.0
  %v2171 = vand.u32 %v1966, 2147483648
  %v2172 = vsel %vm2170, %v2171, %v2169
  %v2173 = vrsqrt.pop %v1967
  %v2174 = vmul.f32 %v1967, %v2173
  %vm2175 = vcmp.eq.f32.partialorder %v1967, inf
  %v2176 = vsel %vm2175, %v1967, %v2174
  %vm2177 = vcmp.eq.f32.partialorder %v1967, 0.0
  %v2178 = vand.u32 %v1967, 2147483648
  %v2179 = vsel %vm2177, %v2178, %v2176
  %v2180 = vrsqrt.pop %v1968
  %v2181 = vmul.f32 %v1968, %v2180
  %vm2182 = vcmp.eq.f32.partialorder %v1968, inf
  %v2183 = vsel %vm2182, %v1968, %v2181
  %vm2184 = vcmp.eq.f32.partialorder %v1968, 0.0
  %v2185 = vand.u32 %v1968, 2147483648
  %v2186 = vsel %vm2184, %v2185, %v2183
  %v2187 = vrsqrt.pop %v1969
  %v2188 = vmul.f32 %v1969, %v2187
  %vm2189 = vcmp.eq.f32.partialorder %v1969, inf
  %v2190 = vsel %vm2189, %v1969, %v2188
  %vm2191 = vcmp.eq.f32.partialorder %v1969, 0.0
  %v2192 = vand.u32 %v1969, 2147483648
  %v2193 = vsel %vm2191, %v2192, %v2190
  %v2194 = vmul.f32 %v1300, %v1300
  %v2195 = vmul.f32 %v1305, %v1305
  %v2196 = vmul.f32 %v1310, %v1310
  %v2197 = vmul.f32 %v1315, %v1315
  %v2198 = vmul.f32 %v1320, %v1320
  %v2199 = vmul.f32 %v1325, %v1325
  %v2200 = vmul.f32 %v1330, %v1330
  %v2201 = vmul.f32 %v1335, %v1335
  %v2202 = vmul.f32 %v1340, %v1340
  %v2203 = vmul.f32 %v1345, %v1345
  %v2204 = vmul.f32 %v1350, %v1350
  %v2205 = vmul.f32 %v1355, %v1355
  %v2206 = vmul.f32 %v1360, %v1360
  %v2207 = vmul.f32 %v1365, %v1365
  %v2208 = vmul.f32 %v1370, %v1370
  %v2209 = vmul.f32 %v1375, %v1375
  %v2210 = vmul.f32 %v1380, %v1380
  %v2211 = vmul.f32 %v1385, %v1385
  %v2212 = vmul.f32 %v1390, %v1390
  %v2213 = vmul.f32 %v1395, %v1395
  %v2214 = vmul.f32 %v1400, %v1400
  %v2215 = vmul.f32 %v1405, %v1405
  %v2216 = vmul.f32 %v1410, %v1410
  %v2217 = vmul.f32 %v1415, %v1415
  %v2218 = vmul.f32 %v1420, %v1420
  %v2219 = vmul.f32 %v1425, %v1425
  %v2220 = vmul.f32 %v1430, %v1430
  %v2221 = vmul.f32 %v1435, %v1435
  %v2222 = vmul.f32 %v1440, %v1440
  %v2223 = vmul.f32 %v1445, %v1445
  %v2224 = vmul.f32 %v1450, %v1450
  %v2225 = vmul.f32 %v1455, %v1455
  %v2226 = vsub.f32 1.0, %v2194
  %v2227 = vsub.f32 1.0, %v2195
  %v2228 = vsub.f32 1.0, %v2196
  %v2229 = vsub.f32 1.0, %v2197
  %v2230 = vsub.f32 1.0, %v2198
  %v2231 = vsub.f32 1.0, %v2199
  %v2232 = vsub.f32 1.0, %v2200
  %v2233 = vsub.f32 1.0, %v2201
  %v2234 = vsub.f32 1.0, %v2202
  %v2235 = vsub.f32 1.0, %v2203
  %v2236 = vsub.f32 1.0, %v2204
  %v2237 = vsub.f32 1.0, %v2205
  %v2238 = vsub.f32 1.0, %v2206
  %v2239 = vsub.f32 1.0, %v2207
  %v2240 = vsub.f32 1.0, %v2208
  %v2241 = vsub.f32 1.0, %v2209
  %v2242 = vsub.f32 1.0, %v2210
  %v2243 = vsub.f32 1.0, %v2211
  %v2244 = vsub.f32 1.0, %v2212
  %v2245 = vsub.f32 1.0, %v2213
  %v2246 = vsub.f32 1.0, %v2214
  %v2247 = vsub.f32 1.0, %v2215
  %v2248 = vsub.f32 1.0, %v2216
  %v2249 = vsub.f32 1.0, %v2217
  %v2250 = vsub.f32 1.0, %v2218
  %v2251 = vsub.f32 1.0, %v2219
  %v2252 = vsub.f32 1.0, %v2220
  %v2253 = vsub.f32 1.0, %v2221
  %v2254 = vsub.f32 1.0, %v2222
  %v2255 = vsub.f32 1.0, %v2223
  %v2256 = vsub.f32 1.0, %v2224
  %v2257 = vsub.f32 1.0, %v2225
  %v2258 = vrsqrt.pop %v2226
  %v2259 = vmul.f32 %v2226, %v2258
  %vm2260 = vcmp.eq.f32.partialorder %v2226, inf
  %v2261 = vsel %vm2260, %v2226, %v2259
  %vm2262 = vcmp.eq.f32.partialorder %v2226, 0.0
  %v2263 = vand.u32 %v2226, 2147483648
  %v2264 = vsel %vm2262, %v2263, %v2261
  %v2265 = vrsqrt.pop %v2227
  %v2266 = vmul.f32 %v2227, %v2265
  %vm2267 = vcmp.eq.f32.partialorder %v2227, inf
  %v2268 = vsel %vm2267, %v2227, %v2266
  %vm2269 = vcmp.eq.f32.partialorder %v2227, 0.0
  %v2270 = vand.u32 %v2227, 2147483648
  %v2271 = vsel %vm2269, %v2270, %v2268
  %v2272 = vrsqrt.pop %v2228
  %v2273 = vmul.f32 %v2228, %v2272
  %vm2274 = vcmp.eq.f32.partialorder %v2228, inf
  %v2275 = vsel %vm2274, %v2228, %v2273
  %vm2276 = vcmp.eq.f32.partialorder %v2228, 0.0
  %v2277 = vand.u32 %v2228, 2147483648
  %v2278 = vsel %vm2276, %v2277, %v2275
  %v2279 = vrsqrt.pop %v2229
  %v2280 = vmul.f32 %v2229, %v2279
  %vm2281 = vcmp.eq.f32.partialorder %v2229, inf
  %v2282 = vsel %vm2281, %v2229, %v2280
  %vm2283 = vcmp.eq.f32.partialorder %v2229, 0.0
  %v2284 = vand.u32 %v2229, 2147483648
  %v2285 = vsel %vm2283, %v2284, %v2282
  %v2286 = vrsqrt.pop %v2230
  %v2287 = vmul.f32 %v2230, %v2286
  %vm2288 = vcmp.eq.f32.partialorder %v2230, inf
  %v2289 = vsel %vm2288, %v2230, %v2287
  %vm2290 = vcmp.eq.f32.partialorder %v2230, 0.0
  %v2291 = vand.u32 %v2230, 2147483648
  %v2292 = vsel %vm2290, %v2291, %v2289
  %v2293 = vrsqrt.pop %v2231
  %v2294 = vmul.f32 %v2231, %v2293
  %vm2295 = vcmp.eq.f32.partialorder %v2231, inf
  %v2296 = vsel %vm2295, %v2231, %v2294
  %vm2297 = vcmp.eq.f32.partialorder %v2231, 0.0
  %v2298 = vand.u32 %v2231, 2147483648
  %v2299 = vsel %vm2297, %v2298, %v2296
  %v2300 = vrsqrt.pop %v2232
  %v2301 = vmul.f32 %v2232, %v2300
  %vm2302 = vcmp.eq.f32.partialorder %v2232, inf
  %v2303 = vsel %vm2302, %v2232, %v2301
  %vm2304 = vcmp.eq.f32.partialorder %v2232, 0.0
  %v2305 = vand.u32 %v2232, 2147483648
  %v2306 = vsel %vm2304, %v2305, %v2303
  %v2307 = vrsqrt.pop %v2233
  %v2308 = vmul.f32 %v2233, %v2307
  %vm2309 = vcmp.eq.f32.partialorder %v2233, inf
  %v2310 = vsel %vm2309, %v2233, %v2308
  %vm2311 = vcmp.eq.f32.partialorder %v2233, 0.0
  %v2312 = vand.u32 %v2233, 2147483648
  %v2313 = vsel %vm2311, %v2312, %v2310
  %v2314 = vrsqrt.pop %v2234
  %v2315 = vmul.f32 %v2234, %v2314
  %vm2316 = vcmp.eq.f32.partialorder %v2234, inf
  %v2317 = vsel %vm2316, %v2234, %v2315
  %vm2318 = vcmp.eq.f32.partialorder %v2234, 0.0
  %v2319 = vand.u32 %v2234, 2147483648
  %v2320 = vsel %vm2318, %v2319, %v2317
  %v2321 = vrsqrt.pop %v2235
  %v2322 = vmul.f32 %v2235, %v2321
  %vm2323 = vcmp.eq.f32.partialorder %v2235, inf
  %v2324 = vsel %vm2323, %v2235, %v2322
  %vm2325 = vcmp.eq.f32.partialorder %v2235, 0.0
  %v2326 = vand.u32 %v2235, 2147483648
  %v2327 = vsel %vm2325, %v2326, %v2324
  %v2328 = vrsqrt.pop %v2236
  %v2329 = vmul.f32 %v2236, %v2328
  %vm2330 = vcmp.eq.f32.partialorder %v2236, inf
  %v2331 = vsel %vm2330, %v2236, %v2329
  %vm2332 = vcmp.eq.f32.partialorder %v2236, 0.0
  %v2333 = vand.u32 %v2236, 2147483648
  %v2334 = vsel %vm2332, %v2333, %v2331
  %v2335 = vrsqrt.pop %v2237
  %v2336 = vmul.f32 %v2237, %v2335
  %vm2337 = vcmp.eq.f32.partialorder %v2237, inf
  %v2338 = vsel %vm2337, %v2237, %v2336
  %vm2339 = vcmp.eq.f32.partialorder %v2237, 0.0
  %v2340 = vand.u32 %v2237, 2147483648
  %v2341 = vsel %vm2339, %v2340, %v2338
  %v2342 = vrsqrt.pop %v2238
  %v2343 = vmul.f32 %v2238, %v2342
  %vm2344 = vcmp.eq.f32.partialorder %v2238, inf
  %v2345 = vsel %vm2344, %v2238, %v2343
  %vm2346 = vcmp.eq.f32.partialorder %v2238, 0.0
  %v2347 = vand.u32 %v2238, 2147483648
  %v2348 = vsel %vm2346, %v2347, %v2345
  %v2349 = vrsqrt.pop %v2239
  %v2350 = vmul.f32 %v2239, %v2349
  %vm2351 = vcmp.eq.f32.partialorder %v2239, inf
  %v2352 = vsel %vm2351, %v2239, %v2350
  %vm2353 = vcmp.eq.f32.partialorder %v2239, 0.0
  %v2354 = vand.u32 %v2239, 2147483648
  %v2355 = vsel %vm2353, %v2354, %v2352
  %v2356 = vrsqrt.pop %v2240
  %v2357 = vmul.f32 %v2240, %v2356
  %vm2358 = vcmp.eq.f32.partialorder %v2240, inf
  %v2359 = vsel %vm2358, %v2240, %v2357
  %vm2360 = vcmp.eq.f32.partialorder %v2240, 0.0
  %v2361 = vand.u32 %v2240, 2147483648
  %v2362 = vsel %vm2360, %v2361, %v2359
  %v2363 = vrsqrt.pop %v2241
  %v2364 = vmul.f32 %v2241, %v2363
  %vm2365 = vcmp.eq.f32.partialorder %v2241, inf
  %v2366 = vsel %vm2365, %v2241, %v2364
  %vm2367 = vcmp.eq.f32.partialorder %v2241, 0.0
  %v2368 = vand.u32 %v2241, 2147483648
  %v2369 = vsel %vm2367, %v2368, %v2366
  %v2370 = vrsqrt.pop %v2242
  %v2371 = vmul.f32 %v2242, %v2370
  %vm2372 = vcmp.eq.f32.partialorder %v2242, inf
  %v2373 = vsel %vm2372, %v2242, %v2371
  %vm2374 = vcmp.eq.f32.partialorder %v2242, 0.0
  %v2375 = vand.u32 %v2242, 2147483648
  %v2376 = vsel %vm2374, %v2375, %v2373
  %v2377 = vrsqrt.pop %v2243
  %v2378 = vmul.f32 %v2243, %v2377
  %vm2379 = vcmp.eq.f32.partialorder %v2243, inf
  %v2380 = vsel %vm2379, %v2243, %v2378
  %vm2381 = vcmp.eq.f32.partialorder %v2243, 0.0
  %v2382 = vand.u32 %v2243, 2147483648
  %v2383 = vsel %vm2381, %v2382, %v2380
  %v2384 = vrsqrt.pop %v2244
  %v2385 = vmul.f32 %v2244, %v2384
  %vm2386 = vcmp.eq.f32.partialorder %v2244, inf
  %v2387 = vsel %vm2386, %v2244, %v2385
  %vm2388 = vcmp.eq.f32.partialorder %v2244, 0.0
  %v2389 = vand.u32 %v2244, 2147483648
  %v2390 = vsel %vm2388, %v2389, %v2387
  %v2391 = vrsqrt.pop %v2245
  %v2392 = vmul.f32 %v2245, %v2391
  %vm2393 = vcmp.eq.f32.partialorder %v2245, inf
  %v2394 = vsel %vm2393, %v2245, %v2392
  %vm2395 = vcmp.eq.f32.partialorder %v2245, 0.0
  %v2396 = vand.u32 %v2245, 2147483648
  %v2397 = vsel %vm2395, %v2396, %v2394
  %v2398 = vrsqrt.pop %v2246
  %v2399 = vmul.f32 %v2246, %v2398
  %vm2400 = vcmp.eq.f32.partialorder %v2246, inf
  %v2401 = vsel %vm2400, %v2246, %v2399
  %vm2402 = vcmp.eq.f32.partialorder %v2246, 0.0
  %v2403 = vand.u32 %v2246, 2147483648
  %v2404 = vsel %vm2402, %v2403, %v2401
  %v2405 = vrsqrt.pop %v2247
  %v2406 = vmul.f32 %v2247, %v2405
  %vm2407 = vcmp.eq.f32.partialorder %v2247, inf
  %v2408 = vsel %vm2407, %v2247, %v2406
  %vm2409 = vcmp.eq.f32.partialorder %v2247, 0.0
  %v2410 = vand.u32 %v2247, 2147483648
  %v2411 = vsel %vm2409, %v2410, %v2408
  %v2412 = vrsqrt.pop %v2248
  %v2413 = vmul.f32 %v2248, %v2412
  %vm2414 = vcmp.eq.f32.partialorder %v2248, inf
  %v2415 = vsel %vm2414, %v2248, %v2413
  %vm2416 = vcmp.eq.f32.partialorder %v2248, 0.0
  %v2417 = vand.u32 %v2248, 2147483648
  %v2418 = vsel %vm2416, %v2417, %v2415
  %v2419 = vrsqrt.pop %v2249
  %v2420 = vmul.f32 %v2249, %v2419
  %vm2421 = vcmp.eq.f32.partialorder %v2249, inf
  %v2422 = vsel %vm2421, %v2249, %v2420
  %vm2423 = vcmp.eq.f32.partialorder %v2249, 0.0
  %v2424 = vand.u32 %v2249, 2147483648
  %v2425 = vsel %vm2423, %v2424, %v2422
  %v2426 = vrsqrt.pop %v2250
  %v2427 = vmul.f32 %v2250, %v2426
  %vm2428 = vcmp.eq.f32.partialorder %v2250, inf
  %v2429 = vsel %vm2428, %v2250, %v2427
  %vm2430 = vcmp.eq.f32.partialorder %v2250, 0.0
  %v2431 = vand.u32 %v2250, 2147483648
  %v2432 = vsel %vm2430, %v2431, %v2429
  %v2433 = vrsqrt.pop %v2251
  %v2434 = vmul.f32 %v2251, %v2433
  %vm2435 = vcmp.eq.f32.partialorder %v2251, inf
  %v2436 = vsel %vm2435, %v2251, %v2434
  %vm2437 = vcmp.eq.f32.partialorder %v2251, 0.0
  %v2438 = vand.u32 %v2251, 2147483648
  %v2439 = vsel %vm2437, %v2438, %v2436
  %v2440 = vrsqrt.pop %v2252
  %v2441 = vmul.f32 %v2252, %v2440
  %vm2442 = vcmp.eq.f32.partialorder %v2252, inf
  %v2443 = vsel %vm2442, %v2252, %v2441
  %vm2444 = vcmp.eq.f32.partialorder %v2252, 0.0
  %v2445 = vand.u32 %v2252, 2147483648
  %v2446 = vsel %vm2444, %v2445, %v2443
  %v2447 = vrsqrt.pop %v2253
  %v2448 = vmul.f32 %v2253, %v2447
  %vm2449 = vcmp.eq.f32.partialorder %v2253, inf
  %v2450 = vsel %vm2449, %v2253, %v2448
  %vm2451 = vcmp.eq.f32.partialorder %v2253, 0.0
  %v2452 = vand.u32 %v2253, 2147483648
  %v2453 = vsel %vm2451, %v2452, %v2450
  %v2454 = vrsqrt.pop %v2254
  %v2455 = vmul.f32 %v2254, %v2454
  %vm2456 = vcmp.eq.f32.partialorder %v2254, inf
  %v2457 = vsel %vm2456, %v2254, %v2455
  %vm2458 = vcmp.eq.f32.partialorder %v2254, 0.0
  %v2459 = vand.u32 %v2254, 2147483648
  %v2460 = vsel %vm2458, %v2459, %v2457
  %v2461 = vrsqrt.pop %v2255
  %v2462 = vmul.f32 %v2255, %v2461
  %vm2463 = vcmp.eq.f32.partialorder %v2255, inf
  %v2464 = vsel %vm2463, %v2255, %v2462
  %vm2465 = vcmp.eq.f32.partialorder %v2255, 0.0
  %v2466 = vand.u32 %v2255, 2147483648
  %v2467 = vsel %vm2465, %v2466, %v2464
  %v2468 = vrsqrt.pop %v2256
  %v2469 = vmul.f32 %v2256, %v2468
  %vm2470 = vcmp.eq.f32.partialorder %v2256, inf
  %v2471 = vsel %vm2470, %v2256, %v2469
  %vm2472 = vcmp.eq.f32.partialorder %v2256, 0.0
  %v2473 = vand.u32 %v2256, 2147483648
  %v2474 = vsel %vm2472, %v2473, %v2471
  %v2475 = vrsqrt.pop %v2257
  %v2476 = vmul.f32 %v2257, %v2475
  %vm2477 = vcmp.eq.f32.partialorder %v2257, inf
  %v2478 = vsel %vm2477, %v2257, %v2476
  %vm2479 = vcmp.eq.f32.partialorder %v2257, 0.0
  %v2480 = vand.u32 %v2257, 2147483648
  %v2481 = vsel %vm2479, %v2480, %v2478
  %v2482 = vmul.f32 %v1688, %v1460
  %v2483 = vmul.f32 %v1695, %v1465
  %v2484 = vmul.f32 %v1702, %v1470
  %v2485 = vmul.f32 %v1709, %v1475
  %v2486 = vmul.f32 %v1716, %v1480
  %v2487 = vmul.f32 %v1723, %v1485
  %v2488 = vmul.f32 %v1730, %v1490
  %v2489 = vmul.f32 %v1737, %v1495
  %v2490 = vmul.f32 %v1744, %v1500
  %v2491 = vmul.f32 %v1751, %v1505
  %v2492 = vmul.f32 %v1758, %v1510
  %v2493 = vmul.f32 %v1765, %v1515
  %v2494 = vmul.f32 %v1772, %v1520
  %v2495 = vmul.f32 %v1779, %v1525
  %v2496 = vmul.f32 %v1786, %v1530
  %v2497 = vmul.f32 %v1793, %v1535
  %v2498 = vmul.f32 %v1800, %v1540
  %v2499 = vmul.f32 %v1807, %v1545
  %v2500 = vmul.f32 %v1814, %v1550
  %v2501 = vmul.f32 %v1821, %v1555
  %v2502 = vmul.f32 %v1828, %v1560
  %v2503 = vmul.f32 %v1835, %v1565
  %v2504 = vmul.f32 %v1842, %v1570
  %v2505 = vmul.f32 %v1849, %v1575
  %v2506 = vmul.f32 %v1856, %v1580
  %v2507 = vmul.f32 %v1863, %v1585
  %v2508 = vmul.f32 %v1870, %v1590
  %v2509 = vmul.f32 %v1877, %v1595
  %v2510 = vmul.f32 %v1884, %v1600
  %v2511 = vmul.f32 %v1891, %v1605
  %v2512 = vmul.f32 %v1898, %v1610
  %v2513 = vmul.f32 %v1905, %v1615
  %v2514 = vmul.f32 %v1140, %v1976
  %v2515 = vmul.f32 %v1145, %v1983
  %v2516 = vmul.f32 %v1150, %v1990
  %v2517 = vmul.f32 %v1155, %v1997
  %v2518 = vmul.f32 %v1160, %v2004
  %v2519 = vmul.f32 %v1165, %v2011
  %v2520 = vmul.f32 %v1170, %v2018
  %v2521 = vmul.f32 %v1175, %v2025
  %v2522 = vmul.f32 %v1180, %v2032
  %v2523 = vmul.f32 %v1185, %v2039
  %v2524 = vmul.f32 %v1190, %v2046
  %v2525 = vmul.f32 %v1195, %v2053
  %v2526 = vmul.f32 %v1200, %v2060
  %v2527 = vmul.f32 %v1205, %v2067
  %v2528 = vmul.f32 %v1210, %v2074
  %v2529 = vmul.f32 %v1215, %v2081
  %v2530 = vmul.f32 %v1220, %v2088
  %v2531 = vmul.f32 %v1225, %v2095
  %v2532 = vmul.f32 %v1230, %v2102
  %v2533 = vmul.f32 %v1235, %v2109
  %v2534 = vmul.f32 %v1240, %v2116
  %v2535 = vmul.f32 %v1245, %v2123
  %v2536 = vmul.f32 %v1250, %v2130
  %v2537 = vmul.f32 %v1255, %v2137
  %v2538 = vmul.f32 %v1260, %v2144
  %v2539 = vmul.f32 %v1265, %v2151
  %v2540 = vmul.f32 %v1270, %v2158
  %v2541 = vmul.f32 %v1275, %v2165
  %v2542 = vmul.f32 %v1280, %v2172
  %v2543 = vmul.f32 %v1285, %v2179
  %v2544 = vmul.f32 %v1290, %v2186
  %v2545 = vmul.f32 %v1295, %v2193
  %v2546 = vadd.f32 %v2482, %v2514
  %v2547 = vadd.f32 %v2483, %v2515
  %v2548 = vadd.f32 %v2484, %v2516
  %v2549 = vadd.f32 %v2485, %v2517
  %v2550 = vadd.f32 %v2486, %v2518
  %v2551 = vadd.f32 %v2487, %v2519
  %v2552 = vadd.f32 %v2488, %v2520
  %v2553 = vadd.f32 %v2489, %v2521
  %v2554 = vadd.f32 %v2490, %v2522
  %v2555 = vadd.f32 %v2491, %v2523
  %v2556 = vadd.f32 %v2492, %v2524
  %v2557 = vadd.f32 %v2493, %v2525
  %v2558 = vadd.f32 %v2494, %v2526
  %v2559 = vadd.f32 %v2495, %v2527
  %v2560 = vadd.f32 %v2496, %v2528
  %v2561 = vadd.f32 %v2497, %v2529
  %v2562 = vadd.f32 %v2498, %v2530
  %v2563 = vadd.f32 %v2499, %v2531
  %v2564 = vadd.f32 %v2500, %v2532
  %v2565 = vadd.f32 %v2501, %v2533
  %v2566 = vadd.f32 %v2502, %v2534
  %v2567 = vadd.f32 %v2503, %v2535
  %v2568 = vadd.f32 %v2504, %v2536
  %v2569 = vadd.f32 %v2505, %v2537
  %v2570 = vadd.f32 %v2506, %v2538
  %v2571 = vadd.f32 %v2507, %v2539
  %v2572 = vadd.f32 %v2508, %v2540
  %v2573 = vadd.f32 %v2509, %v2541
  %v2574 = vadd.f32 %v2510, %v2542
  %v2575 = vadd.f32 %v2511, %v2543
  %v2576 = vadd.f32 %v2512, %v2544
  %v2577 = vadd.f32 %v2513, %v2545
  %v2578 = vmul.f32 %v2546, %v1300
  %v2579 = vmul.f32 %v2547, %v1305
  %v2580 = vmul.f32 %v2548, %v1310
  %v2581 = vmul.f32 %v2549, %v1315
  %v2582 = vmul.f32 %v2550, %v1320
  %v2583 = vmul.f32 %v2551, %v1325
  %v2584 = vmul.f32 %v2552, %v1330
  %v2585 = vmul.f32 %v2553, %v1335
  %v2586 = vmul.f32 %v2554, %v1340
  %v2587 = vmul.f32 %v2555, %v1345
  %v2588 = vmul.f32 %v2556, %v1350
  %v2589 = vmul.f32 %v2557, %v1355
  %v2590 = vmul.f32 %v2558, %v1360
  %v2591 = vmul.f32 %v2559, %v1365
  %v2592 = vmul.f32 %v2560, %v1370
  %v2593 = vmul.f32 %v2561, %v1375
  %v2594 = vmul.f32 %v2562, %v1380
  %v2595 = vmul.f32 %v2563, %v1385
  %v2596 = vmul.f32 %v2564, %v1390
  %v2597 = vmul.f32 %v2565, %v1395
  %v2598 = vmul.f32 %v2566, %v1400
  %v2599 = vmul.f32 %v2567, %v1405
  %v2600 = vmul.f32 %v2568, %v1410
  %v2601 = vmul.f32 %v2569, %v1415
  %v2602 = vmul.f32 %v2570, %v1420
  %v2603 = vmul.f32 %v2571, %v1425
  %v2604 = vmul.f32 %v2572, %v1430
  %v2605 = vmul.f32 %v2573, %v1435
  %v2606 = vmul.f32 %v2574, %v1440
  %v2607 = vmul.f32 %v2575, %v1445
  %v2608 = vmul.f32 %v2576, %v1450
  %v2609 = vmul.f32 %v2577, %v1455
  %v2610 = vmul.f32 %v1140, %v1460
  %v2611 = vmul.f32 %v1145, %v1465
  %v2612 = vmul.f32 %v1150, %v1470
  %v2613 = vmul.f32 %v1155, %v1475
  %v2614 = vmul.f32 %v1160, %v1480
  %v2615 = vmul.f32 %v1165, %v1485
  %v2616 = vmul.f32 %v1170, %v1490
  %v2617 = vmul.f32 %v1175, %v1495
  %v2618 = vmul.f32 %v1180, %v1500
  %v2619 = vmul.f32 %v1185, %v1505
  %v2620 = vmul.f32 %v1190, %v1510
  %v2621 = vmul.f32 %v1195, %v1515
  %v2622 = vmul.f32 %v1200, %v1520
  %v2623 = vmul.f32 %v1205, %v1525
  %v2624 = vmul.f32 %v1210, %v1530
  %v2625 = vmul.f32 %v1215, %v1535
  %v2626 = vmul.f32 %v1220, %v1540
  %v2627 = vmul.f32 %v1225, %v1545
  %v2628 = vmul.f32 %v1230, %v1550
  %v2629 = vmul.f32 %v1235, %v1555
  %v2630 = vmul.f32 %v1240, %v1560
  %v2631 = vmul.f32 %v1245, %v1565
  %v2632 = vmul.f32 %v1250, %v1570
  %v2633 = vmul.f32 %v1255, %v1575
  %v2634 = vmul.f32 %v1260, %v1580
  %v2635 = vmul.f32 %v1265, %v1585
  %v2636 = vmul.f32 %v1270, %v1590
  %v2637 = vmul.f32 %v1275, %v1595
  %v2638 = vmul.f32 %v1280, %v1600
  %v2639 = vmul.f32 %v1285, %v1605
  %v2640 = vmul.f32 %v1290, %v1610
  %v2641 = vmul.f32 %v1295, %v1615
  %v2642 = vmul.f32 %v1688, %v1976
  %v2643 = vmul.f32 %v1695, %v1983
  %v2644 = vmul.f32 %v1702, %v1990
  %v2645 = vmul.f32 %v1709, %v1997
  %v2646 = vmul.f32 %v1716, %v2004
  %v2647 = vmul.f32 %v1723, %v2011
  %v2648 = vmul.f32 %v1730, %v2018
  %v2649 = vmul.f32 %v1737, %v2025
  %v2650 = vmul.f32 %v1744, %v2032
  %v2651 = vmul.f32 %v1751, %v2039
  %v2652 = vmul.f32 %v1758, %v2046
  %v2653 = vmul.f32 %v1765, %v2053
  %v2654 = vmul.f32 %v1772, %v2060
  %v2655 = vmul.f32 %v1779, %v2067
  %v2656 = vmul.f32 %v1786, %v2074
  %v2657 = vmul.f32 %v1793, %v2081
  %v2658 = vmul.f32 %v1800, %v2088
  %v2659 = vmul.f32 %v1807, %v2095
  %v2660 = vmul.f32 %v1814, %v2102
  %v2661 = vmul.f32 %v1821, %v2109
  %v2662 = vmul.f32 %v1828, %v2116
  %v2663 = vmul.f32 %v1835, %v2123
  %v2664 = vmul.f32 %v1842, %v2130
  %v2665 = vmul.f32 %v1849, %v2137
  %v2666 = vmul.f32 %v1856, %v2144
  %v2667 = vmul.f32 %v1863, %v2151
  %v2668 = vmul.f32 %v1870, %v2158
  %v2669 = vmul.f32 %v1877, %v2165
  %v2670 = vmul.f32 %v1884, %v2172
  %v2671 = vmul.f32 %v1891, %v2179
  %v2672 = vmul.f32 %v1898, %v2186
  %v2673 = vmul.f32 %v1905, %v2193
  %v2674 = vsub.f32 %v2610, %v2642
  %v2675 = vsub.f32 %v2611, %v2643
  %v2676 = vsub.f32 %v2612, %v2644
  %v2677 = vsub.f32 %v2613, %v2645
  %v2678 = vsub.f32 %v2614, %v2646
  %v2679 = vsub.f32 %v2615, %v2647
  %v2680 = vsub.f32 %v2616, %v2648
  %v2681 = vsub.f32 %v2617, %v2649
  %v2682 = vsub.f32 %v2618, %v2650
  %v2683 = vsub.f32 %v2619, %v2651
  %v2684 = vsub.f32 %v2620, %v2652
  %v2685 = vsub.f32 %v2621, %v2653
  %v2686 = vsub.f32 %v2622, %v2654
  %v2687 = vsub.f32 %v2623, %v2655
  %v2688 = vsub.f32 %v2624, %v2656
  %v2689 = vsub.f32 %v2625, %v2657
  %v2690 = vsub.f32 %v2626, %v2658
  %v2691 = vsub.f32 %v2627, %v2659
  %v2692 = vsub.f32 %v2628, %v2660
  %v2693 = vsub.f32 %v2629, %v2661
  %v2694 = vsub.f32 %v2630, %v2662
  %v2695 = vsub.f32 %v2631, %v2663
  %v2696 = vsub.f32 %v2632, %v2664
  %v2697 = vsub.f32 %v2633, %v2665
  %v2698 = vsub.f32 %v2634, %v2666
  %v2699 = vsub.f32 %v2635, %v2667
  %v2700 = vsub.f32 %v2636, %v2668
  %v2701 = vsub.f32 %v2637, %v2669
  %v2702 = vsub.f32 %v2638, %v2670
  %v2703 = vsub.f32 %v2639, %v2671
  %v2704 = vsub.f32 %v2640, %v2672
  %v2705 = vsub.f32 %v2641, %v2673
  %v2706 = vmul.f32 %v2674, %v2264
  %v2707 = vmul.f32 %v2675, %v2271
  %v2708 = vmul.f32 %v2676, %v2278
  %v2709 = vmul.f32 %v2677, %v2285
  %v2710 = vmul.f32 %v2678, %v2292
  %v2711 = vmul.f32 %v2679, %v2299
  %v2712 = vmul.f32 %v2680, %v2306
  %v2713 = vmul.f32 %v2681, %v2313
  %v2714 = vmul.f32 %v2682, %v2320
  %v2715 = vmul.f32 %v2683, %v2327
  %v2716 = vmul.f32 %v2684, %v2334
  %v2717 = vmul.f32 %v2685, %v2341
  %v2718 = vmul.f32 %v2686, %v2348
  %v2719 = vmul.f32 %v2687, %v2355
  %v2720 = vmul.f32 %v2688, %v2362
  %v2721 = vmul.f32 %v2689, %v2369
  %v2722 = vmul.f32 %v2690, %v2376
  %v2723 = vmul.f32 %v2691, %v2383
  %v2724 = vmul.f32 %v2692, %v2390
  %v2725 = vmul.f32 %v2693, %v2397
  %v2726 = vmul.f32 %v2694, %v2404
  %v2727 = vmul.f32 %v2695, %v2411
  %v2728 = vmul.f32 %v2696, %v2418
  %v2729 = vmul.f32 %v2697, %v2425
  %v2730 = vmul.f32 %v2698, %v2432
  %v2731 = vmul.f32 %v2699, %v2439
  %v2732 = vmul.f32 %v2700, %v2446
  %v2733 = vmul.f32 %v2701, %v2453
  %v2734 = vmul.f32 %v2702, %v2460
  %v2735 = vmul.f32 %v2703, %v2467
  %v2736 = vmul.f32 %v2704, %v2474
  %v2737 = vmul.f32 %v2705, %v2481
  %v2738 = vsub.f32 %v2578, %v2706
  %v2739 = vsub.f32 %v2579, %v2707
  %v2740 = vsub.f32 %v2580, %v2708
  %v2741 = vsub.f32 %v2581, %v2709
  %v2742 = vsub.f32 %v2582, %v2710
  %v2743 = vsub.f32 %v2583, %v2711
  %v2744 = vsub.f32 %v2584, %v2712
  %v2745 = vsub.f32 %v2585, %v2713
  %v2746 = vsub.f32 %v2586, %v2714
  %v2747 = vsub.f32 %v2587, %v2715
  %v2748 = vsub.f32 %v2588, %v2716
  %v2749 = vsub.f32 %v2589, %v2717
  %v2750 = vsub.f32 %v2590, %v2718
  %v2751 = vsub.f32 %v2591, %v2719
  %v2752 = vsub.f32 %v2592, %v2720
  %v2753 = vsub.f32 %v2593, %v2721
  %v2754 = vsub.f32 %v2594, %v2722
  %v2755 = vsub.f32 %v2595, %v2723
  %v2756 = vsub.f32 %v2596, %v2724
  %v2757 = vsub.f32 %v2597, %v2725
  %v2758 = vsub.f32 %v2598, %v2726
  %v2759 = vsub.f32 %v2599, %v2727
  %v2760 = vsub.f32 %v2600, %v2728
  %v2761 = vsub.f32 %v2601, %v2729
  %v2762 = vsub.f32 %v2602, %v2730
  %v2763 = vsub.f32 %v2603, %v2731
  %v2764 = vsub.f32 %v2604, %v2732
  %v2765 = vsub.f32 %v2605, %v2733
  %v2766 = vsub.f32 %v2606, %v2734
  %v2767 = vsub.f32 %v2607, %v2735
  %v2768 = vsub.f32 %v2608, %v2736
  %v2769 = vsub.f32 %v2609, %v2737
  %v2770 = vand.u32 2147483647, %v2738
  %v2771 = vand.u32 2147483647, %v2739
  %v2772 = vand.u32 2147483647, %v2740
  %v2773 = vand.u32 2147483647, %v2741
  %v2774 = vand.u32 2147483647, %v2742
  %v2775 = vand.u32 2147483647, %v2743
  %v2776 = vand.u32 2147483647, %v2744
  %v2777 = vand.u32 2147483647, %v2745
  %v2778 = vand.u32 2147483647, %v2746
  %v2779 = vand.u32 2147483647, %v2747
  %v2780 = vand.u32 2147483647, %v2748
  %v2781 = vand.u32 2147483647, %v2749
  %v2782 = vand.u32 2147483647, %v2750
  %v2783 = vand.u32 2147483647, %v2751
  %v2784 = vand.u32 2147483647, %v2752
  %v2785 = vand.u32 2147483647, %v2753
  %v2786 = vand.u32 2147483647, %v2754
  %v2787 = vand.u32 2147483647, %v2755
  %v2788 = vand.u32 2147483647, %v2756
  %v2789 = vand.u32 2147483647, %v2757
  %v2790 = vand.u32 2147483647, %v2758
  %v2791 = vand.u32 2147483647, %v2759
  %v2792 = vand.u32 2147483647, %v2760
  %v2793 = vand.u32 2147483647, %v2761
  %v2794 = vand.u32 2147483647, %v2762
  %v2795 = vand.u32 2147483647, %v2763
  %v2796 = vand.u32 2147483647, %v2764
  %v2797 = vand.u32 2147483647, %v2765
  %v2798 = vand.u32 2147483647, %v2766
  %v2799 = vand.u32 2147483647, %v2767
  %v2800 = vand.u32 2147483647, %v2768
  %v2801 = vand.u32 2147483647, %v2769
  %v2802 = vsel %vm137, %v2770, 0.0
  %2803 = vadd.xlane.f32.xlu0 %v2802
  %v2804 = vpop.xlane.xlu0 %2803
  %v2805 = vsel %vm137, %v2771, 0.0
  %2806 = vadd.xlane.f32.xlu0 %v2805
  %v2807 = vpop.xlane.xlu0 %2806
  %v2808 = vsel %vm137, %v2772, 0.0
  %2809 = vadd.xlane.f32.xlu0 %v2808
  %v2810 = vpop.xlane.xlu0 %2809
  %v2811 = vsel %vm137, %v2773, 0.0
  %2812 = vadd.xlane.f32.xlu0 %v2811
  %v2813 = vpop.xlane.xlu0 %2812
  %v2814 = vsel %vm137, %v2774, 0.0
  %2815 = vadd.xlane.f32.xlu0 %v2814
  %v2816 = vpop.xlane.xlu0 %2815
  %v2817 = vsel %vm137, %v2775, 0.0
  %2818 = vadd.xlane.f32.xlu0 %v2817
  %v2819 = vpop.xlane.xlu0 %2818
  %v2820 = vsel %vm137, %v2776, 0.0
  %2821 = vadd.xlane.f32.xlu0 %v2820
  %v2822 = vpop.xlane.xlu0 %2821
  %v2823 = vsel %vm137, %v2777, 0.0
  %2824 = vadd.xlane.f32.xlu0 %v2823
  %v2825 = vpop.xlane.xlu0 %2824
  %v2826 = vsel %vm137, %v2778, 0.0
  %2827 = vadd.xlane.f32.xlu0 %v2826
  %v2828 = vpop.xlane.xlu0 %2827
  %v2829 = vsel %vm137, %v2779, 0.0
  %2830 = vadd.xlane.f32.xlu0 %v2829
  %v2831 = vpop.xlane.xlu0 %2830
  %v2832 = vsel %vm137, %v2780, 0.0
  %2833 = vadd.xlane.f32.xlu0 %v2832
  %v2834 = vpop.xlane.xlu0 %2833
  %v2835 = vsel %vm137, %v2781, 0.0
  %2836 = vadd.xlane.f32.xlu0 %v2835
  %v2837 = vpop.xlane.xlu0 %2836
  %v2838 = vsel %vm137, %v2782, 0.0
  %2839 = vadd.xlane.f32.xlu0 %v2838
  %v2840 = vpop.xlane.xlu0 %2839
  %v2841 = vsel %vm137, %v2783, 0.0
  %2842 = vadd.xlane.f32.xlu0 %v2841
  %v2843 = vpop.xlane.xlu0 %2842
  %v2844 = vsel %vm137, %v2784, 0.0
  %2845 = vadd.xlane.f32.xlu0 %v2844
  %v2846 = vpop.xlane.xlu0 %2845
  %v2847 = vsel %vm137, %v2785, 0.0
  %2848 = vadd.xlane.f32.xlu0 %v2847
  %v2849 = vpop.xlane.xlu0 %2848
  %v2850 = vsel %vm137, %v2786, 0.0
  %2851 = vadd.xlane.f32.xlu0 %v2850
  %v2852 = vpop.xlane.xlu0 %2851
  %v2853 = vsel %vm137, %v2787, 0.0
  %2854 = vadd.xlane.f32.xlu0 %v2853
  %v2855 = vpop.xlane.xlu0 %2854
  %v2856 = vsel %vm137, %v2788, 0.0
  %2857 = vadd.xlane.f32.xlu0 %v2856
  %v2858 = vpop.xlane.xlu0 %2857
  %v2859 = vsel %vm137, %v2789, 0.0
  %2860 = vadd.xlane.f32.xlu0 %v2859
  %v2861 = vpop.xlane.xlu0 %2860
  %v2862 = vsel %vm137, %v2790, 0.0
  %2863 = vadd.xlane.f32.xlu0 %v2862
  %v2864 = vpop.xlane.xlu0 %2863
  %v2865 = vsel %vm137, %v2791, 0.0
  %2866 = vadd.xlane.f32.xlu0 %v2865
  %v2867 = vpop.xlane.xlu0 %2866
  %v2868 = vsel %vm137, %v2792, 0.0
  %2869 = vadd.xlane.f32.xlu0 %v2868
  %v2870 = vpop.xlane.xlu0 %2869
  %v2871 = vsel %vm137, %v2793, 0.0
  %2872 = vadd.xlane.f32.xlu0 %v2871
  %v2873 = vpop.xlane.xlu0 %2872
  %v2874 = vsel %vm137, %v2794, 0.0
  %2875 = vadd.xlane.f32.xlu0 %v2874
  %v2876 = vpop.xlane.xlu0 %2875
  %v2877 = vsel %vm137, %v2795, 0.0
  %2878 = vadd.xlane.f32.xlu0 %v2877
  %v2879 = vpop.xlane.xlu0 %2878
  %v2880 = vsel %vm137, %v2796, 0.0
  %2881 = vadd.xlane.f32.xlu0 %v2880
  %v2882 = vpop.xlane.xlu0 %2881
  %v2883 = vsel %vm137, %v2797, 0.0
  %2884 = vadd.xlane.f32.xlu0 %v2883
  %v2885 = vpop.xlane.xlu0 %2884
  %v2886 = vsel %vm137, %v2798, 0.0
  %2887 = vadd.xlane.f32.xlu0 %v2886
  %v2888 = vpop.xlane.xlu0 %2887
  %v2889 = vsel %vm137, %v2799, 0.0
  %2890 = vadd.xlane.f32.xlu0 %v2889
  %v2891 = vpop.xlane.xlu0 %2890
  %v2892 = vsel %vm137, %v2800, 0.0
  %2893 = vadd.xlane.f32.xlu0 %v2892
  %v2894 = vpop.xlane.xlu0 %2893
  %v2895 = vsel %vm137, %v2801, 0.0
  %2896 = vadd.xlane.f32.xlu0 %v2895
  %v2897 = vpop.xlane.xlu0 %2896
  %v2898 = vrsqrt.pop %v781
  %v2899 = vmul.f32 %v781, %v2898
  %vm2900 = vcmp.eq.f32.partialorder %v781, inf
  %v2901 = vsel %vm2900, %v781, %v2899
  %vm2902 = vcmp.eq.f32.partialorder %v781, 0.0
  %v2903 = vand.u32 %v781, 2147483648
  %v2904 = vsel %vm2902, %v2903, %v2901
  %v2905 = vrsqrt.pop %v784
  %v2906 = vmul.f32 %v784, %v2905
  %vm2907 = vcmp.eq.f32.partialorder %v784, inf
  %v2908 = vsel %vm2907, %v784, %v2906
  %vm2909 = vcmp.eq.f32.partialorder %v784, 0.0
  %v2910 = vand.u32 %v784, 2147483648
  %v2911 = vsel %vm2909, %v2910, %v2908
  %v2912 = vrsqrt.pop %v787
  %v2913 = vmul.f32 %v787, %v2912
  %vm2914 = vcmp.eq.f32.partialorder %v787, inf
  %v2915 = vsel %vm2914, %v787, %v2913
  %vm2916 = vcmp.eq.f32.partialorder %v787, 0.0
  %v2917 = vand.u32 %v787, 2147483648
  %v2918 = vsel %vm2916, %v2917, %v2915
  %v2919 = vrsqrt.pop %v790
  %v2920 = vmul.f32 %v790, %v2919
  %vm2921 = vcmp.eq.f32.partialorder %v790, inf
  %v2922 = vsel %vm2921, %v790, %v2920
  %vm2923 = vcmp.eq.f32.partialorder %v790, 0.0
  %v2924 = vand.u32 %v790, 2147483648
  %v2925 = vsel %vm2923, %v2924, %v2922
  %v2926 = vrsqrt.pop %v793
  %v2927 = vmul.f32 %v793, %v2926
  %vm2928 = vcmp.eq.f32.partialorder %v793, inf
  %v2929 = vsel %vm2928, %v793, %v2927
  %vm2930 = vcmp.eq.f32.partialorder %v793, 0.0
  %v2931 = vand.u32 %v793, 2147483648
  %v2932 = vsel %vm2930, %v2931, %v2929
  %v2933 = vrsqrt.pop %v796
  %v2934 = vmul.f32 %v796, %v2933
  %vm2935 = vcmp.eq.f32.partialorder %v796, inf
  %v2936 = vsel %vm2935, %v796, %v2934
  %vm2937 = vcmp.eq.f32.partialorder %v796, 0.0
  %v2938 = vand.u32 %v796, 2147483648
  %v2939 = vsel %vm2937, %v2938, %v2936
  %v2940 = vrsqrt.pop %v799
  %v2941 = vmul.f32 %v799, %v2940
  %vm2942 = vcmp.eq.f32.partialorder %v799, inf
  %v2943 = vsel %vm2942, %v799, %v2941
  %vm2944 = vcmp.eq.f32.partialorder %v799, 0.0
  %v2945 = vand.u32 %v799, 2147483648
  %v2946 = vsel %vm2944, %v2945, %v2943
  %v2947 = vrsqrt.pop %v802
  %v2948 = vmul.f32 %v802, %v2947
  %vm2949 = vcmp.eq.f32.partialorder %v802, inf
  %v2950 = vsel %vm2949, %v802, %v2948
  %vm2951 = vcmp.eq.f32.partialorder %v802, 0.0
  %v2952 = vand.u32 %v802, 2147483648
  %v2953 = vsel %vm2951, %v2952, %v2950
  %v2954 = vrsqrt.pop %v805
  %v2955 = vmul.f32 %v805, %v2954
  %vm2956 = vcmp.eq.f32.partialorder %v805, inf
  %v2957 = vsel %vm2956, %v805, %v2955
  %vm2958 = vcmp.eq.f32.partialorder %v805, 0.0
  %v2959 = vand.u32 %v805, 2147483648
  %v2960 = vsel %vm2958, %v2959, %v2957
  %v2961 = vrsqrt.pop %v808
  %v2962 = vmul.f32 %v808, %v2961
  %vm2963 = vcmp.eq.f32.partialorder %v808, inf
  %v2964 = vsel %vm2963, %v808, %v2962
  %vm2965 = vcmp.eq.f32.partialorder %v808, 0.0
  %v2966 = vand.u32 %v808, 2147483648
  %v2967 = vsel %vm2965, %v2966, %v2964
  %v2968 = vrsqrt.pop %v811
  %v2969 = vmul.f32 %v811, %v2968
  %vm2970 = vcmp.eq.f32.partialorder %v811, inf
  %v2971 = vsel %vm2970, %v811, %v2969
  %vm2972 = vcmp.eq.f32.partialorder %v811, 0.0
  %v2973 = vand.u32 %v811, 2147483648
  %v2974 = vsel %vm2972, %v2973, %v2971
  %v2975 = vrsqrt.pop %v814
  %v2976 = vmul.f32 %v814, %v2975
  %vm2977 = vcmp.eq.f32.partialorder %v814, inf
  %v2978 = vsel %vm2977, %v814, %v2976
  %vm2979 = vcmp.eq.f32.partialorder %v814, 0.0
  %v2980 = vand.u32 %v814, 2147483648
  %v2981 = vsel %vm2979, %v2980, %v2978
  %v2982 = vrsqrt.pop %v817
  %v2983 = vmul.f32 %v817, %v2982
  %vm2984 = vcmp.eq.f32.partialorder %v817, inf
  %v2985 = vsel %vm2984, %v817, %v2983
  %vm2986 = vcmp.eq.f32.partialorder %v817, 0.0
  %v2987 = vand.u32 %v817, 2147483648
  %v2988 = vsel %vm2986, %v2987, %v2985
  %v2989 = vrsqrt.pop %v820
  %v2990 = vmul.f32 %v820, %v2989
  %vm2991 = vcmp.eq.f32.partialorder %v820, inf
  %v2992 = vsel %vm2991, %v820, %v2990
  %vm2993 = vcmp.eq.f32.partialorder %v820, 0.0
  %v2994 = vand.u32 %v820, 2147483648
  %v2995 = vsel %vm2993, %v2994, %v2992
  %v2996 = vrsqrt.pop %v823
  %v2997 = vmul.f32 %v823, %v2996
  %vm2998 = vcmp.eq.f32.partialorder %v823, inf
  %v2999 = vsel %vm2998, %v823, %v2997
  %vm3000 = vcmp.eq.f32.partialorder %v823, 0.0
  %v3001 = vand.u32 %v823, 2147483648
  %v3002 = vsel %vm3000, %v3001, %v2999
  %v3003 = vrsqrt.pop %v826
  %v3004 = vmul.f32 %v826, %v3003
  %vm3005 = vcmp.eq.f32.partialorder %v826, inf
  %v3006 = vsel %vm3005, %v826, %v3004
  %vm3007 = vcmp.eq.f32.partialorder %v826, 0.0
  %v3008 = vand.u32 %v826, 2147483648
  %v3009 = vsel %vm3007, %v3008, %v3006
  %v3010 = vrsqrt.pop %v829
  %v3011 = vmul.f32 %v829, %v3010
  %vm3012 = vcmp.eq.f32.partialorder %v829, inf
  %v3013 = vsel %vm3012, %v829, %v3011
  %vm3014 = vcmp.eq.f32.partialorder %v829, 0.0
  %v3015 = vand.u32 %v829, 2147483648
  %v3016 = vsel %vm3014, %v3015, %v3013
  %v3017 = vrsqrt.pop %v832
  %v3018 = vmul.f32 %v832, %v3017
  %vm3019 = vcmp.eq.f32.partialorder %v832, inf
  %v3020 = vsel %vm3019, %v832, %v3018
  %vm3021 = vcmp.eq.f32.partialorder %v832, 0.0
  %v3022 = vand.u32 %v832, 2147483648
  %v3023 = vsel %vm3021, %v3022, %v3020
  %v3024 = vrsqrt.pop %v835
  %v3025 = vmul.f32 %v835, %v3024
  %vm3026 = vcmp.eq.f32.partialorder %v835, inf
  %v3027 = vsel %vm3026, %v835, %v3025
  %vm3028 = vcmp.eq.f32.partialorder %v835, 0.0
  %v3029 = vand.u32 %v835, 2147483648
  %v3030 = vsel %vm3028, %v3029, %v3027
  %v3031 = vrsqrt.pop %v838
  %v3032 = vmul.f32 %v838, %v3031
  %vm3033 = vcmp.eq.f32.partialorder %v838, inf
  %v3034 = vsel %vm3033, %v838, %v3032
  %vm3035 = vcmp.eq.f32.partialorder %v838, 0.0
  %v3036 = vand.u32 %v838, 2147483648
  %v3037 = vsel %vm3035, %v3036, %v3034
  %v3038 = vrsqrt.pop %v841
  %v3039 = vmul.f32 %v841, %v3038
  %vm3040 = vcmp.eq.f32.partialorder %v841, inf
  %v3041 = vsel %vm3040, %v841, %v3039
  %vm3042 = vcmp.eq.f32.partialorder %v841, 0.0
  %v3043 = vand.u32 %v841, 2147483648
  %v3044 = vsel %vm3042, %v3043, %v3041
  %v3045 = vrsqrt.pop %v844
  %v3046 = vmul.f32 %v844, %v3045
  %vm3047 = vcmp.eq.f32.partialorder %v844, inf
  %v3048 = vsel %vm3047, %v844, %v3046
  %vm3049 = vcmp.eq.f32.partialorder %v844, 0.0
  %v3050 = vand.u32 %v844, 2147483648
  %v3051 = vsel %vm3049, %v3050, %v3048
  %v3052 = vrsqrt.pop %v847
  %v3053 = vmul.f32 %v847, %v3052
  %vm3054 = vcmp.eq.f32.partialorder %v847, inf
  %v3055 = vsel %vm3054, %v847, %v3053
  %vm3056 = vcmp.eq.f32.partialorder %v847, 0.0
  %v3057 = vand.u32 %v847, 2147483648
  %v3058 = vsel %vm3056, %v3057, %v3055
  %v3059 = vrsqrt.pop %v850
  %v3060 = vmul.f32 %v850, %v3059
  %vm3061 = vcmp.eq.f32.partialorder %v850, inf
  %v3062 = vsel %vm3061, %v850, %v3060
  %vm3063 = vcmp.eq.f32.partialorder %v850, 0.0
  %v3064 = vand.u32 %v850, 2147483648
  %v3065 = vsel %vm3063, %v3064, %v3062
  %v3066 = vrsqrt.pop %v853
  %v3067 = vmul.f32 %v853, %v3066
  %vm3068 = vcmp.eq.f32.partialorder %v853, inf
  %v3069 = vsel %vm3068, %v853, %v3067
  %vm3070 = vcmp.eq.f32.partialorder %v853, 0.0
  %v3071 = vand.u32 %v853, 2147483648
  %v3072 = vsel %vm3070, %v3071, %v3069
  %v3073 = vrsqrt.pop %v856
  %v3074 = vmul.f32 %v856, %v3073
  %vm3075 = vcmp.eq.f32.partialorder %v856, inf
  %v3076 = vsel %vm3075, %v856, %v3074
  %vm3077 = vcmp.eq.f32.partialorder %v856, 0.0
  %v3078 = vand.u32 %v856, 2147483648
  %v3079 = vsel %vm3077, %v3078, %v3076
  %v3080 = vrsqrt.pop %v859
  %v3081 = vmul.f32 %v859, %v3080
  %vm3082 = vcmp.eq.f32.partialorder %v859, inf
  %v3083 = vsel %vm3082, %v859, %v3081
  %vm3084 = vcmp.eq.f32.partialorder %v859, 0.0
  %v3085 = vand.u32 %v859, 2147483648
  %v3086 = vsel %vm3084, %v3085, %v3083
  %v3087 = vrsqrt.pop %v862
  %v3088 = vmul.f32 %v862, %v3087
  %vm3089 = vcmp.eq.f32.partialorder %v862, inf
  %v3090 = vsel %vm3089, %v862, %v3088
  %vm3091 = vcmp.eq.f32.partialorder %v862, 0.0
  %v3092 = vand.u32 %v862, 2147483648
  %v3093 = vsel %vm3091, %v3092, %v3090
  %v3094 = vrsqrt.pop %v865
  %v3095 = vmul.f32 %v865, %v3094
  %vm3096 = vcmp.eq.f32.partialorder %v865, inf
  %v3097 = vsel %vm3096, %v865, %v3095
  %vm3098 = vcmp.eq.f32.partialorder %v865, 0.0
  %v3099 = vand.u32 %v865, 2147483648
  %v3100 = vsel %vm3098, %v3099, %v3097
  %v3101 = vrsqrt.pop %v868
  %v3102 = vmul.f32 %v868, %v3101
  %vm3103 = vcmp.eq.f32.partialorder %v868, inf
  %v3104 = vsel %vm3103, %v868, %v3102
  %vm3105 = vcmp.eq.f32.partialorder %v868, 0.0
  %v3106 = vand.u32 %v868, 2147483648
  %v3107 = vsel %vm3105, %v3106, %v3104
  %v3108 = vrsqrt.pop %v871
  %v3109 = vmul.f32 %v871, %v3108
  %vm3110 = vcmp.eq.f32.partialorder %v871, inf
  %v3111 = vsel %vm3110, %v871, %v3109
  %vm3112 = vcmp.eq.f32.partialorder %v871, 0.0
  %v3113 = vand.u32 %v871, 2147483648
  %v3114 = vsel %vm3112, %v3113, %v3111
  %v3115 = vrsqrt.pop %v874
  %v3116 = vmul.f32 %v874, %v3115
  %vm3117 = vcmp.eq.f32.partialorder %v874, inf
  %v3118 = vsel %vm3117, %v874, %v3116
  %vm3119 = vcmp.eq.f32.partialorder %v874, 0.0
  %v3120 = vand.u32 %v874, 2147483648
  %v3121 = vsel %vm3119, %v3120, %v3118
  %v3122 = vstv %s130
  %v3123 = vmul.f32 %v3122, %v2804
  %v3124 = vmul.f32 %v3122, %v2807
  %v3125 = vmul.f32 %v3122, %v2810
  %v3126 = vmul.f32 %v3122, %v2813
  %v3127 = vmul.f32 %v3122, %v2816
  %v3128 = vmul.f32 %v3122, %v2819
  %v3129 = vmul.f32 %v3122, %v2822
  %v3130 = vmul.f32 %v3122, %v2825
  %v3131 = vmul.f32 %v3122, %v2828
  %v3132 = vmul.f32 %v3122, %v2831
  %v3133 = vmul.f32 %v3122, %v2834
  %v3134 = vmul.f32 %v3122, %v2837
  %v3135 = vmul.f32 %v3122, %v2840
  %v3136 = vmul.f32 %v3122, %v2843
  %v3137 = vmul.f32 %v3122, %v2846
  %v3138 = vmul.f32 %v3122, %v2849
  %v3139 = vmul.f32 %v3122, %v2852
  %v3140 = vmul.f32 %v3122, %v2855
  %v3141 = vmul.f32 %v3122, %v2858
  %v3142 = vmul.f32 %v3122, %v2861
  %v3143 = vmul.f32 %v3122, %v2864
  %v3144 = vmul.f32 %v3122, %v2867
  %v3145 = vmul.f32 %v3122, %v2870
  %v3146 = vmul.f32 %v3122, %v2873
  %v3147 = vmul.f32 %v3122, %v2876
  %v3148 = vmul.f32 %v3122, %v2879
  %v3149 = vmul.f32 %v3122, %v2882
  %v3150 = vmul.f32 %v3122, %v2885
  %v3151 = vmul.f32 %v3122, %v2888
  %v3152 = vmul.f32 %v3122, %v2891
  %v3153 = vmul.f32 %v3122, %v2894
  %v3154 = vmul.f32 %v3122, %v2897
  %v3155 = vadd.f32 %v2904, %v3123
  %v3156 = vadd.f32 %v2911, %v3124
  %v3157 = vadd.f32 %v2918, %v3125
  %v3158 = vadd.f32 %v2925, %v3126
  %v3159 = vadd.f32 %v2932, %v3127
  %v3160 = vadd.f32 %v2939, %v3128
  %v3161 = vadd.f32 %v2946, %v3129
  %v3162 = vadd.f32 %v2953, %v3130
  %v3163 = vadd.f32 %v2960, %v3131
  %v3164 = vadd.f32 %v2967, %v3132
  %v3165 = vadd.f32 %v2974, %v3133
  %v3166 = vadd.f32 %v2981, %v3134
  %v3167 = vadd.f32 %v2988, %v3135
  %v3168 = vadd.f32 %v2995, %v3136
  %v3169 = vadd.f32 %v3002, %v3137
  %v3170 = vadd.f32 %v3009, %v3138
  %v3171 = vadd.f32 %v3016, %v3139
  %v3172 = vadd.f32 %v3023, %v3140
  %v3173 = vadd.f32 %v3030, %v3141
  %v3174 = vadd.f32 %v3037, %v3142
  %v3175 = vadd.f32 %v3044, %v3143
  %v3176 = vadd.f32 %v3051, %v3144
  %v3177 = vadd.f32 %v3058, %v3145
  %v3178 = vadd.f32 %v3065, %v3146
  %v3179 = vadd.f32 %v3072, %v3147
  %v3180 = vadd.f32 %v3079, %v3148
  %v3181 = vadd.f32 %v3086, %v3149
  %v3182 = vadd.f32 %v3093, %v3150
  %v3183 = vadd.f32 %v3100, %v3151
  %v3184 = vadd.f32 %v3107, %v3152
  %v3185 = vadd.f32 %v3114, %v3153
  %v3186 = vadd.f32 %v3121, %v3154
  %v3219 = vlaneseq
  %v3220 = vshrl.u32 %v3219, 7
  %v3221 = vsub.s32 0, %v3220
  %v3222 = vrot.slane %v3155, %v3221
  %v3223 = vlaneseq
  %v3224 = vshrl.u32 %v3223, 7
  %v3225 = vsub.s32 1, %v3224
  %v3226 = vrot.slane %v3155, %v3225
  %v3227 = vlaneseq
  %v3228 = vshrl.u32 %v3227, 7
  %v3229 = vsub.s32 2, %v3228
  %v3230 = vrot.slane %v3155, %v3229
  %v3231 = vlaneseq
  %v3232 = vshrl.u32 %v3231, 7
  %v3233 = vsub.s32 3, %v3232
  %v3234 = vrot.slane %v3155, %v3233
  %v3235 = vlaneseq
  %v3236 = vshrl.u32 %v3235, 7
  %v3237 = vsub.s32 4, %v3236
  %v3238 = vrot.slane %v3155, %v3237
  %v3239 = vlaneseq
  %v3240 = vshrl.u32 %v3239, 7
  %v3241 = vsub.s32 5, %v3240
  %v3242 = vrot.slane %v3155, %v3241
  %v3243 = vlaneseq
  %v3244 = vshrl.u32 %v3243, 7
  %v3245 = vsub.s32 6, %v3244
  %v3246 = vrot.slane %v3155, %v3245
  %v3247 = vlaneseq
  %v3248 = vshrl.u32 %v3247, 7
  %v3249 = vsub.s32 7, %v3248
  %v3250 = vrot.slane %v3155, %v3249
  %v3251 = vlaneseq
  %v3252 = vshrl.u32 %v3251, 7
  %v3253 = vsub.s32 0, %v3252
  %v3254 = vrot.slane %v3156, %v3253
  %v3255 = vlaneseq
  %v3256 = vshrl.u32 %v3255, 7
  %v3257 = vsub.s32 1, %v3256
  %v3258 = vrot.slane %v3156, %v3257
  %v3259 = vlaneseq
  %v3260 = vshrl.u32 %v3259, 7
  %v3261 = vsub.s32 2, %v3260
  %v3262 = vrot.slane %v3156, %v3261
  %v3263 = vlaneseq
  %v3264 = vshrl.u32 %v3263, 7
  %v3265 = vsub.s32 3, %v3264
  %v3266 = vrot.slane %v3156, %v3265
  %v3267 = vlaneseq
  %v3268 = vshrl.u32 %v3267, 7
  %v3269 = vsub.s32 4, %v3268
  %v3270 = vrot.slane %v3156, %v3269
  %v3271 = vlaneseq
  %v3272 = vshrl.u32 %v3271, 7
  %v3273 = vsub.s32 5, %v3272
  %v3274 = vrot.slane %v3156, %v3273
  %v3275 = vlaneseq
  %v3276 = vshrl.u32 %v3275, 7
  %v3277 = vsub.s32 6, %v3276
  %v3278 = vrot.slane %v3156, %v3277
  %v3279 = vlaneseq
  %v3280 = vshrl.u32 %v3279, 7
  %v3281 = vsub.s32 7, %v3280
  %v3282 = vrot.slane %v3156, %v3281
  %v3283 = vlaneseq
  %v3284 = vshrl.u32 %v3283, 7
  %v3285 = vsub.s32 0, %v3284
  %v3286 = vrot.slane %v3157, %v3285
  %v3287 = vlaneseq
  %v3288 = vshrl.u32 %v3287, 7
  %v3289 = vsub.s32 1, %v3288
  %v3290 = vrot.slane %v3157, %v3289
  %v3291 = vlaneseq
  %v3292 = vshrl.u32 %v3291, 7
  %v3293 = vsub.s32 2, %v3292
  %v3294 = vrot.slane %v3157, %v3293
  %v3295 = vlaneseq
  %v3296 = vshrl.u32 %v3295, 7
  %v3297 = vsub.s32 3, %v3296
  %v3298 = vrot.slane %v3157, %v3297
  %v3299 = vlaneseq
  %v3300 = vshrl.u32 %v3299, 7
  %v3301 = vsub.s32 4, %v3300
  %v3302 = vrot.slane %v3157, %v3301
  %v3303 = vlaneseq
  %v3304 = vshrl.u32 %v3303, 7
  %v3305 = vsub.s32 5, %v3304
  %v3306 = vrot.slane %v3157, %v3305
  %v3307 = vlaneseq
  %v3308 = vshrl.u32 %v3307, 7
  %v3309 = vsub.s32 6, %v3308
  %v3310 = vrot.slane %v3157, %v3309
  %v3311 = vlaneseq
  %v3312 = vshrl.u32 %v3311, 7
  %v3313 = vsub.s32 7, %v3312
  %v3314 = vrot.slane %v3157, %v3313
  %v3315 = vlaneseq
  %v3316 = vshrl.u32 %v3315, 7
  %v3317 = vsub.s32 0, %v3316
  %v3318 = vrot.slane %v3158, %v3317
  %v3319 = vlaneseq
  %v3320 = vshrl.u32 %v3319, 7
  %v3321 = vsub.s32 1, %v3320
  %v3322 = vrot.slane %v3158, %v3321
  %v3323 = vlaneseq
  %v3324 = vshrl.u32 %v3323, 7
  %v3325 = vsub.s32 2, %v3324
  %v3326 = vrot.slane %v3158, %v3325
  %v3327 = vlaneseq
  %v3328 = vshrl.u32 %v3327, 7
  %v3329 = vsub.s32 3, %v3328
  %v3330 = vrot.slane %v3158, %v3329
  %v3331 = vlaneseq
  %v3332 = vshrl.u32 %v3331, 7
  %v3333 = vsub.s32 4, %v3332
  %v3334 = vrot.slane %v3158, %v3333
  %v3335 = vlaneseq
  %v3336 = vshrl.u32 %v3335, 7
  %v3337 = vsub.s32 5, %v3336
  %v3338 = vrot.slane %v3158, %v3337
  %v3339 = vlaneseq
  %v3340 = vshrl.u32 %v3339, 7
  %v3341 = vsub.s32 6, %v3340
  %v3342 = vrot.slane %v3158, %v3341
  %v3343 = vlaneseq
  %v3344 = vshrl.u32 %v3343, 7
  %v3345 = vsub.s32 7, %v3344
  %v3346 = vrot.slane %v3158, %v3345
  %v3347 = vlaneseq
  %v3348 = vshrl.u32 %v3347, 7
  %v3349 = vsub.s32 0, %v3348
  %v3350 = vrot.slane %v3159, %v3349
  %v3351 = vlaneseq
  %v3352 = vshrl.u32 %v3351, 7
  %v3353 = vsub.s32 1, %v3352
  %v3354 = vrot.slane %v3159, %v3353
  %v3355 = vlaneseq
  %v3356 = vshrl.u32 %v3355, 7
  %v3357 = vsub.s32 2, %v3356
  %v3358 = vrot.slane %v3159, %v3357
  %v3359 = vlaneseq
  %v3360 = vshrl.u32 %v3359, 7
  %v3361 = vsub.s32 3, %v3360
  %v3362 = vrot.slane %v3159, %v3361
  %v3363 = vlaneseq
  %v3364 = vshrl.u32 %v3363, 7
  %v3365 = vsub.s32 4, %v3364
  %v3366 = vrot.slane %v3159, %v3365
  %v3367 = vlaneseq
  %v3368 = vshrl.u32 %v3367, 7
  %v3369 = vsub.s32 5, %v3368
  %v3370 = vrot.slane %v3159, %v3369
  %v3371 = vlaneseq
  %v3372 = vshrl.u32 %v3371, 7
  %v3373 = vsub.s32 6, %v3372
  %v3374 = vrot.slane %v3159, %v3373
  %v3375 = vlaneseq
  %v3376 = vshrl.u32 %v3375, 7
  %v3377 = vsub.s32 7, %v3376
  %v3378 = vrot.slane %v3159, %v3377
  %v3379 = vlaneseq
  %v3380 = vshrl.u32 %v3379, 7
  %v3381 = vsub.s32 0, %v3380
  %v3382 = vrot.slane %v3160, %v3381
  %v3383 = vlaneseq
  %v3384 = vshrl.u32 %v3383, 7
  %v3385 = vsub.s32 1, %v3384
  %v3386 = vrot.slane %v3160, %v3385
  %v3387 = vlaneseq
  %v3388 = vshrl.u32 %v3387, 7
  %v3389 = vsub.s32 2, %v3388
  %v3390 = vrot.slane %v3160, %v3389
  %v3391 = vlaneseq
  %v3392 = vshrl.u32 %v3391, 7
  %v3393 = vsub.s32 3, %v3392
  %v3394 = vrot.slane %v3160, %v3393
  %v3395 = vlaneseq
  %v3396 = vshrl.u32 %v3395, 7
  %v3397 = vsub.s32 4, %v3396
  %v3398 = vrot.slane %v3160, %v3397
  %v3399 = vlaneseq
  %v3400 = vshrl.u32 %v3399, 7
  %v3401 = vsub.s32 5, %v3400
  %v3402 = vrot.slane %v3160, %v3401
  %v3403 = vlaneseq
  %v3404 = vshrl.u32 %v3403, 7
  %v3405 = vsub.s32 6, %v3404
  %v3406 = vrot.slane %v3160, %v3405
  %v3407 = vlaneseq
  %v3408 = vshrl.u32 %v3407, 7
  %v3409 = vsub.s32 7, %v3408
  %v3410 = vrot.slane %v3160, %v3409
  %v3411 = vlaneseq
  %v3412 = vshrl.u32 %v3411, 7
  %v3413 = vsub.s32 0, %v3412
  %v3414 = vrot.slane %v3161, %v3413
  %v3415 = vlaneseq
  %v3416 = vshrl.u32 %v3415, 7
  %v3417 = vsub.s32 1, %v3416
  %v3418 = vrot.slane %v3161, %v3417
  %v3419 = vlaneseq
  %v3420 = vshrl.u32 %v3419, 7
  %v3421 = vsub.s32 2, %v3420
  %v3422 = vrot.slane %v3161, %v3421
  %v3423 = vlaneseq
  %v3424 = vshrl.u32 %v3423, 7
  %v3425 = vsub.s32 3, %v3424
  %v3426 = vrot.slane %v3161, %v3425
  %v3427 = vlaneseq
  %v3428 = vshrl.u32 %v3427, 7
  %v3429 = vsub.s32 4, %v3428
  %v3430 = vrot.slane %v3161, %v3429
  %v3431 = vlaneseq
  %v3432 = vshrl.u32 %v3431, 7
  %v3433 = vsub.s32 5, %v3432
  %v3434 = vrot.slane %v3161, %v3433
  %v3435 = vlaneseq
  %v3436 = vshrl.u32 %v3435, 7
  %v3437 = vsub.s32 6, %v3436
  %v3438 = vrot.slane %v3161, %v3437
  %v3439 = vlaneseq
  %v3440 = vshrl.u32 %v3439, 7
  %v3441 = vsub.s32 7, %v3440
  %v3442 = vrot.slane %v3161, %v3441
  %v3443 = vlaneseq
  %v3444 = vshrl.u32 %v3443, 7
  %v3445 = vsub.s32 0, %v3444
  %v3446 = vrot.slane %v3162, %v3445
  %v3447 = vlaneseq
  %v3448 = vshrl.u32 %v3447, 7
  %v3449 = vsub.s32 1, %v3448
  %v3450 = vrot.slane %v3162, %v3449
  %v3451 = vlaneseq
  %v3452 = vshrl.u32 %v3451, 7
  %v3453 = vsub.s32 2, %v3452
  %v3454 = vrot.slane %v3162, %v3453
  %v3455 = vlaneseq
  %v3456 = vshrl.u32 %v3455, 7
  %v3457 = vsub.s32 3, %v3456
  %v3458 = vrot.slane %v3162, %v3457
  %v3459 = vlaneseq
  %v3460 = vshrl.u32 %v3459, 7
  %v3461 = vsub.s32 4, %v3460
  %v3462 = vrot.slane %v3162, %v3461
  %v3463 = vlaneseq
  %v3464 = vshrl.u32 %v3463, 7
  %v3465 = vsub.s32 5, %v3464
  %v3466 = vrot.slane %v3162, %v3465
  %v3467 = vlaneseq
  %v3468 = vshrl.u32 %v3467, 7
  %v3469 = vsub.s32 6, %v3468
  %v3470 = vrot.slane %v3162, %v3469
  %v3471 = vlaneseq
  %v3472 = vshrl.u32 %v3471, 7
  %v3473 = vsub.s32 7, %v3472
  %v3474 = vrot.slane %v3162, %v3473
  %v3475 = vlaneseq
  %v3476 = vshrl.u32 %v3475, 7
  %v3477 = vsub.s32 0, %v3476
  %v3478 = vrot.slane %v3163, %v3477
  %v3479 = vlaneseq
  %v3480 = vshrl.u32 %v3479, 7
  %v3481 = vsub.s32 1, %v3480
  %v3482 = vrot.slane %v3163, %v3481
  %v3483 = vlaneseq
  %v3484 = vshrl.u32 %v3483, 7
  %v3485 = vsub.s32 2, %v3484
  %v3486 = vrot.slane %v3163, %v3485
  %v3487 = vlaneseq
  %v3488 = vshrl.u32 %v3487, 7
  %v3489 = vsub.s32 3, %v3488
  %v3490 = vrot.slane %v3163, %v3489
  %v3491 = vlaneseq
  %v3492 = vshrl.u32 %v3491, 7
  %v3493 = vsub.s32 4, %v3492
  %v3494 = vrot.slane %v3163, %v3493
  %v3495 = vlaneseq
  %v3496 = vshrl.u32 %v3495, 7
  %v3497 = vsub.s32 5, %v3496
  %v3498 = vrot.slane %v3163, %v3497
  %v3499 = vlaneseq
  %v3500 = vshrl.u32 %v3499, 7
  %v3501 = vsub.s32 6, %v3500
  %v3502 = vrot.slane %v3163, %v3501
  %v3503 = vlaneseq
  %v3504 = vshrl.u32 %v3503, 7
  %v3505 = vsub.s32 7, %v3504
  %v3506 = vrot.slane %v3163, %v3505
  %v3507 = vlaneseq
  %v3508 = vshrl.u32 %v3507, 7
  %v3509 = vsub.s32 0, %v3508
  %v3510 = vrot.slane %v3164, %v3509
  %v3511 = vlaneseq
  %v3512 = vshrl.u32 %v3511, 7
  %v3513 = vsub.s32 1, %v3512
  %v3514 = vrot.slane %v3164, %v3513
  %v3515 = vlaneseq
  %v3516 = vshrl.u32 %v3515, 7
  %v3517 = vsub.s32 2, %v3516
  %v3518 = vrot.slane %v3164, %v3517
  %v3519 = vlaneseq
  %v3520 = vshrl.u32 %v3519, 7
  %v3521 = vsub.s32 3, %v3520
  %v3522 = vrot.slane %v3164, %v3521
  %v3523 = vlaneseq
  %v3524 = vshrl.u32 %v3523, 7
  %v3525 = vsub.s32 4, %v3524
  %v3526 = vrot.slane %v3164, %v3525
  %v3527 = vlaneseq
  %v3528 = vshrl.u32 %v3527, 7
  %v3529 = vsub.s32 5, %v3528
  %v3530 = vrot.slane %v3164, %v3529
  %v3531 = vlaneseq
  %v3532 = vshrl.u32 %v3531, 7
  %v3533 = vsub.s32 6, %v3532
  %v3534 = vrot.slane %v3164, %v3533
  %v3535 = vlaneseq
  %v3536 = vshrl.u32 %v3535, 7
  %v3537 = vsub.s32 7, %v3536
  %v3538 = vrot.slane %v3164, %v3537
  %v3539 = vlaneseq
  %v3540 = vshrl.u32 %v3539, 7
  %v3541 = vsub.s32 0, %v3540
  %v3542 = vrot.slane %v3165, %v3541
  %v3543 = vlaneseq
  %v3544 = vshrl.u32 %v3543, 7
  %v3545 = vsub.s32 1, %v3544
  %v3546 = vrot.slane %v3165, %v3545
  %v3547 = vlaneseq
  %v3548 = vshrl.u32 %v3547, 7
  %v3549 = vsub.s32 2, %v3548
  %v3550 = vrot.slane %v3165, %v3549
  %v3551 = vlaneseq
  %v3552 = vshrl.u32 %v3551, 7
  %v3553 = vsub.s32 3, %v3552
  %v3554 = vrot.slane %v3165, %v3553
  %v3555 = vlaneseq
  %v3556 = vshrl.u32 %v3555, 7
  %v3557 = vsub.s32 4, %v3556
  %v3558 = vrot.slane %v3165, %v3557
  %v3559 = vlaneseq
  %v3560 = vshrl.u32 %v3559, 7
  %v3561 = vsub.s32 5, %v3560
  %v3562 = vrot.slane %v3165, %v3561
  %v3563 = vlaneseq
  %v3564 = vshrl.u32 %v3563, 7
  %v3565 = vsub.s32 6, %v3564
  %v3566 = vrot.slane %v3165, %v3565
  %v3567 = vlaneseq
  %v3568 = vshrl.u32 %v3567, 7
  %v3569 = vsub.s32 7, %v3568
  %v3570 = vrot.slane %v3165, %v3569
  %v3571 = vlaneseq
  %v3572 = vshrl.u32 %v3571, 7
  %v3573 = vsub.s32 0, %v3572
  %v3574 = vrot.slane %v3166, %v3573
  %v3575 = vlaneseq
  %v3576 = vshrl.u32 %v3575, 7
  %v3577 = vsub.s32 1, %v3576
  %v3578 = vrot.slane %v3166, %v3577
  %v3579 = vlaneseq
  %v3580 = vshrl.u32 %v3579, 7
  %v3581 = vsub.s32 2, %v3580
  %v3582 = vrot.slane %v3166, %v3581
  %v3583 = vlaneseq
  %v3584 = vshrl.u32 %v3583, 7
  %v3585 = vsub.s32 3, %v3584
  %v3586 = vrot.slane %v3166, %v3585
  %v3587 = vlaneseq
  %v3588 = vshrl.u32 %v3587, 7
  %v3589 = vsub.s32 4, %v3588
  %v3590 = vrot.slane %v3166, %v3589
  %v3591 = vlaneseq
  %v3592 = vshrl.u32 %v3591, 7
  %v3593 = vsub.s32 5, %v3592
  %v3594 = vrot.slane %v3166, %v3593
  %v3595 = vlaneseq
  %v3596 = vshrl.u32 %v3595, 7
  %v3597 = vsub.s32 6, %v3596
  %v3598 = vrot.slane %v3166, %v3597
  %v3599 = vlaneseq
  %v3600 = vshrl.u32 %v3599, 7
  %v3601 = vsub.s32 7, %v3600
  %v3602 = vrot.slane %v3166, %v3601
  %v3603 = vlaneseq
  %v3604 = vshrl.u32 %v3603, 7
  %v3605 = vsub.s32 0, %v3604
  %v3606 = vrot.slane %v3167, %v3605
  %v3607 = vlaneseq
  %v3608 = vshrl.u32 %v3607, 7
  %v3609 = vsub.s32 1, %v3608
  %v3610 = vrot.slane %v3167, %v3609
  %v3611 = vlaneseq
  %v3612 = vshrl.u32 %v3611, 7
  %v3613 = vsub.s32 2, %v3612
  %v3614 = vrot.slane %v3167, %v3613
  %v3615 = vlaneseq
  %v3616 = vshrl.u32 %v3615, 7
  %v3617 = vsub.s32 3, %v3616
  %v3618 = vrot.slane %v3167, %v3617
  %v3619 = vlaneseq
  %v3620 = vshrl.u32 %v3619, 7
  %v3621 = vsub.s32 4, %v3620
  %v3622 = vrot.slane %v3167, %v3621
  %v3623 = vlaneseq
  %v3624 = vshrl.u32 %v3623, 7
  %v3625 = vsub.s32 5, %v3624
  %v3626 = vrot.slane %v3167, %v3625
  %v3627 = vlaneseq
  %v3628 = vshrl.u32 %v3627, 7
  %v3629 = vsub.s32 6, %v3628
  %v3630 = vrot.slane %v3167, %v3629
  %v3631 = vlaneseq
  %v3632 = vshrl.u32 %v3631, 7
  %v3633 = vsub.s32 7, %v3632
  %v3634 = vrot.slane %v3167, %v3633
  %v3635 = vlaneseq
  %v3636 = vshrl.u32 %v3635, 7
  %v3637 = vsub.s32 0, %v3636
  %v3638 = vrot.slane %v3168, %v3637
  %v3639 = vlaneseq
  %v3640 = vshrl.u32 %v3639, 7
  %v3641 = vsub.s32 1, %v3640
  %v3642 = vrot.slane %v3168, %v3641
  %v3643 = vlaneseq
  %v3644 = vshrl.u32 %v3643, 7
  %v3645 = vsub.s32 2, %v3644
  %v3646 = vrot.slane %v3168, %v3645
  %v3647 = vlaneseq
  %v3648 = vshrl.u32 %v3647, 7
  %v3649 = vsub.s32 3, %v3648
  %v3650 = vrot.slane %v3168, %v3649
  %v3651 = vlaneseq
  %v3652 = vshrl.u32 %v3651, 7
  %v3653 = vsub.s32 4, %v3652
  %v3654 = vrot.slane %v3168, %v3653
  %v3655 = vlaneseq
  %v3656 = vshrl.u32 %v3655, 7
  %v3657 = vsub.s32 5, %v3656
  %v3658 = vrot.slane %v3168, %v3657
  %v3659 = vlaneseq
  %v3660 = vshrl.u32 %v3659, 7
  %v3661 = vsub.s32 6, %v3660
  %v3662 = vrot.slane %v3168, %v3661
  %v3663 = vlaneseq
  %v3664 = vshrl.u32 %v3663, 7
  %v3665 = vsub.s32 7, %v3664
  %v3666 = vrot.slane %v3168, %v3665
  %v3667 = vlaneseq
  %v3668 = vshrl.u32 %v3667, 7
  %v3669 = vsub.s32 0, %v3668
  %v3670 = vrot.slane %v3169, %v3669
  %v3671 = vlaneseq
  %v3672 = vshrl.u32 %v3671, 7
  %v3673 = vsub.s32 1, %v3672
  %v3674 = vrot.slane %v3169, %v3673
  %v3675 = vlaneseq
  %v3676 = vshrl.u32 %v3675, 7
  %v3677 = vsub.s32 2, %v3676
  %v3678 = vrot.slane %v3169, %v3677
  %v3679 = vlaneseq
  %v3680 = vshrl.u32 %v3679, 7
  %v3681 = vsub.s32 3, %v3680
  %v3682 = vrot.slane %v3169, %v3681
  %v3683 = vlaneseq
  %v3684 = vshrl.u32 %v3683, 7
  %v3685 = vsub.s32 4, %v3684
  %v3686 = vrot.slane %v3169, %v3685
  %v3687 = vlaneseq
  %v3688 = vshrl.u32 %v3687, 7
  %v3689 = vsub.s32 5, %v3688
  %v3690 = vrot.slane %v3169, %v3689
  %v3691 = vlaneseq
  %v3692 = vshrl.u32 %v3691, 7
  %v3693 = vsub.s32 6, %v3692
  %v3694 = vrot.slane %v3169, %v3693
  %v3695 = vlaneseq
  %v3696 = vshrl.u32 %v3695, 7
  %v3697 = vsub.s32 7, %v3696
  %v3698 = vrot.slane %v3169, %v3697
  %v3699 = vlaneseq
  %v3700 = vshrl.u32 %v3699, 7
  %v3701 = vsub.s32 0, %v3700
  %v3702 = vrot.slane %v3170, %v3701
  %v3703 = vlaneseq
  %v3704 = vshrl.u32 %v3703, 7
  %v3705 = vsub.s32 1, %v3704
  %v3706 = vrot.slane %v3170, %v3705
  %v3707 = vlaneseq
  %v3708 = vshrl.u32 %v3707, 7
  %v3709 = vsub.s32 2, %v3708
  %v3710 = vrot.slane %v3170, %v3709
  %v3711 = vlaneseq
  %v3712 = vshrl.u32 %v3711, 7
  %v3713 = vsub.s32 3, %v3712
  %v3714 = vrot.slane %v3170, %v3713
  %v3715 = vlaneseq
  %v3716 = vshrl.u32 %v3715, 7
  %v3717 = vsub.s32 4, %v3716
  %v3718 = vrot.slane %v3170, %v3717
  %v3719 = vlaneseq
  %v3720 = vshrl.u32 %v3719, 7
  %v3721 = vsub.s32 5, %v3720
  %v3722 = vrot.slane %v3170, %v3721
  %v3723 = vlaneseq
  %v3724 = vshrl.u32 %v3723, 7
  %v3725 = vsub.s32 6, %v3724
  %v3726 = vrot.slane %v3170, %v3725
  %v3727 = vlaneseq
  %v3728 = vshrl.u32 %v3727, 7
  %v3729 = vsub.s32 7, %v3728
  %v3730 = vrot.slane %v3170, %v3729
  %v3731 = vlaneseq
  %v3732 = vshrl.u32 %v3731, 7
  %v3733 = vsub.s32 0, %v3732
  %v3734 = vrot.slane %v3171, %v3733
  %v3735 = vlaneseq
  %v3736 = vshrl.u32 %v3735, 7
  %v3737 = vsub.s32 1, %v3736
  %v3738 = vrot.slane %v3171, %v3737
  %v3739 = vlaneseq
  %v3740 = vshrl.u32 %v3739, 7
  %v3741 = vsub.s32 2, %v3740
  %v3742 = vrot.slane %v3171, %v3741
  %v3743 = vlaneseq
  %v3744 = vshrl.u32 %v3743, 7
  %v3745 = vsub.s32 3, %v3744
  %v3746 = vrot.slane %v3171, %v3745
  %v3747 = vlaneseq
  %v3748 = vshrl.u32 %v3747, 7
  %v3749 = vsub.s32 4, %v3748
  %v3750 = vrot.slane %v3171, %v3749
  %v3751 = vlaneseq
  %v3752 = vshrl.u32 %v3751, 7
  %v3753 = vsub.s32 5, %v3752
  %v3754 = vrot.slane %v3171, %v3753
  %v3755 = vlaneseq
  %v3756 = vshrl.u32 %v3755, 7
  %v3757 = vsub.s32 6, %v3756
  %v3758 = vrot.slane %v3171, %v3757
  %v3759 = vlaneseq
  %v3760 = vshrl.u32 %v3759, 7
  %v3761 = vsub.s32 7, %v3760
  %v3762 = vrot.slane %v3171, %v3761
  %v3763 = vlaneseq
  %v3764 = vshrl.u32 %v3763, 7
  %v3765 = vsub.s32 0, %v3764
  %v3766 = vrot.slane %v3172, %v3765
  %v3767 = vlaneseq
  %v3768 = vshrl.u32 %v3767, 7
  %v3769 = vsub.s32 1, %v3768
  %v3770 = vrot.slane %v3172, %v3769
  %v3771 = vlaneseq
  %v3772 = vshrl.u32 %v3771, 7
  %v3773 = vsub.s32 2, %v3772
  %v3774 = vrot.slane %v3172, %v3773
  %v3775 = vlaneseq
  %v3776 = vshrl.u32 %v3775, 7
  %v3777 = vsub.s32 3, %v3776
  %v3778 = vrot.slane %v3172, %v3777
  %v3779 = vlaneseq
  %v3780 = vshrl.u32 %v3779, 7
  %v3781 = vsub.s32 4, %v3780
  %v3782 = vrot.slane %v3172, %v3781
  %v3783 = vlaneseq
  %v3784 = vshrl.u32 %v3783, 7
  %v3785 = vsub.s32 5, %v3784
  %v3786 = vrot.slane %v3172, %v3785
  %v3787 = vlaneseq
  %v3788 = vshrl.u32 %v3787, 7
  %v3789 = vsub.s32 6, %v3788
  %v3790 = vrot.slane %v3172, %v3789
  %v3791 = vlaneseq
  %v3792 = vshrl.u32 %v3791, 7
  %v3793 = vsub.s32 7, %v3792
  %v3794 = vrot.slane %v3172, %v3793
  %v3795 = vlaneseq
  %v3796 = vshrl.u32 %v3795, 7
  %v3797 = vsub.s32 0, %v3796
  %v3798 = vrot.slane %v3173, %v3797
  %v3799 = vlaneseq
  %v3800 = vshrl.u32 %v3799, 7
  %v3801 = vsub.s32 1, %v3800
  %v3802 = vrot.slane %v3173, %v3801
  %v3803 = vlaneseq
  %v3804 = vshrl.u32 %v3803, 7
  %v3805 = vsub.s32 2, %v3804
  %v3806 = vrot.slane %v3173, %v3805
  %v3807 = vlaneseq
  %v3808 = vshrl.u32 %v3807, 7
  %v3809 = vsub.s32 3, %v3808
  %v3810 = vrot.slane %v3173, %v3809
  %v3811 = vlaneseq
  %v3812 = vshrl.u32 %v3811, 7
  %v3813 = vsub.s32 4, %v3812
  %v3814 = vrot.slane %v3173, %v3813
  %v3815 = vlaneseq
  %v3816 = vshrl.u32 %v3815, 7
  %v3817 = vsub.s32 5, %v3816
  %v3818 = vrot.slane %v3173, %v3817
  %v3819 = vlaneseq
  %v3820 = vshrl.u32 %v3819, 7
  %v3821 = vsub.s32 6, %v3820
  %v3822 = vrot.slane %v3173, %v3821
  %v3823 = vlaneseq
  %v3824 = vshrl.u32 %v3823, 7
  %v3825 = vsub.s32 7, %v3824
  %v3826 = vrot.slane %v3173, %v3825
  %v3827 = vlaneseq
  %v3828 = vshrl.u32 %v3827, 7
  %v3829 = vsub.s32 0, %v3828
  %v3830 = vrot.slane %v3174, %v3829
  %v3831 = vlaneseq
  %v3832 = vshrl.u32 %v3831, 7
  %v3833 = vsub.s32 1, %v3832
  %v3834 = vrot.slane %v3174, %v3833
  %v3835 = vlaneseq
  %v3836 = vshrl.u32 %v3835, 7
  %v3837 = vsub.s32 2, %v3836
  %v3838 = vrot.slane %v3174, %v3837
  %v3839 = vlaneseq
  %v3840 = vshrl.u32 %v3839, 7
  %v3841 = vsub.s32 3, %v3840
  %v3842 = vrot.slane %v3174, %v3841
  %v3843 = vlaneseq
  %v3844 = vshrl.u32 %v3843, 7
  %v3845 = vsub.s32 4, %v3844
  %v3846 = vrot.slane %v3174, %v3845
  %v3847 = vlaneseq
  %v3848 = vshrl.u32 %v3847, 7
  %v3849 = vsub.s32 5, %v3848
  %v3850 = vrot.slane %v3174, %v3849
  %v3851 = vlaneseq
  %v3852 = vshrl.u32 %v3851, 7
  %v3853 = vsub.s32 6, %v3852
  %v3854 = vrot.slane %v3174, %v3853
  %v3855 = vlaneseq
  %v3856 = vshrl.u32 %v3855, 7
  %v3857 = vsub.s32 7, %v3856
  %v3858 = vrot.slane %v3174, %v3857
  %v3859 = vlaneseq
  %v3860 = vshrl.u32 %v3859, 7
  %v3861 = vsub.s32 0, %v3860
  %v3862 = vrot.slane %v3175, %v3861
  %v3863 = vlaneseq
  %v3864 = vshrl.u32 %v3863, 7
  %v3865 = vsub.s32 1, %v3864
  %v3866 = vrot.slane %v3175, %v3865
  %v3867 = vlaneseq
  %v3868 = vshrl.u32 %v3867, 7
  %v3869 = vsub.s32 2, %v3868
  %v3870 = vrot.slane %v3175, %v3869
  %v3871 = vlaneseq
  %v3872 = vshrl.u32 %v3871, 7
  %v3873 = vsub.s32 3, %v3872
  %v3874 = vrot.slane %v3175, %v3873
  %v3875 = vlaneseq
  %v3876 = vshrl.u32 %v3875, 7
  %v3877 = vsub.s32 4, %v3876
  %v3878 = vrot.slane %v3175, %v3877
  %v3879 = vlaneseq
  %v3880 = vshrl.u32 %v3879, 7
  %v3881 = vsub.s32 5, %v3880
  %v3882 = vrot.slane %v3175, %v3881
  %v3883 = vlaneseq
  %v3884 = vshrl.u32 %v3883, 7
  %v3885 = vsub.s32 6, %v3884
  %v3886 = vrot.slane %v3175, %v3885
  %v3887 = vlaneseq
  %v3888 = vshrl.u32 %v3887, 7
  %v3889 = vsub.s32 7, %v3888
  %v3890 = vrot.slane %v3175, %v3889
  %v3891 = vlaneseq
  %v3892 = vshrl.u32 %v3891, 7
  %v3893 = vsub.s32 0, %v3892
  %v3894 = vrot.slane %v3176, %v3893
  %v3895 = vlaneseq
  %v3896 = vshrl.u32 %v3895, 7
  %v3897 = vsub.s32 1, %v3896
  %v3898 = vrot.slane %v3176, %v3897
  %v3899 = vlaneseq
  %v3900 = vshrl.u32 %v3899, 7
  %v3901 = vsub.s32 2, %v3900
  %v3902 = vrot.slane %v3176, %v3901
  %v3903 = vlaneseq
  %v3904 = vshrl.u32 %v3903, 7
  %v3905 = vsub.s32 3, %v3904
  %v3906 = vrot.slane %v3176, %v3905
  %v3907 = vlaneseq
  %v3908 = vshrl.u32 %v3907, 7
  %v3909 = vsub.s32 4, %v3908
  %v3910 = vrot.slane %v3176, %v3909
  %v3911 = vlaneseq
  %v3912 = vshrl.u32 %v3911, 7
  %v3913 = vsub.s32 5, %v3912
  %v3914 = vrot.slane %v3176, %v3913
  %v3915 = vlaneseq
  %v3916 = vshrl.u32 %v3915, 7
  %v3917 = vsub.s32 6, %v3916
  %v3918 = vrot.slane %v3176, %v3917
  %v3919 = vlaneseq
  %v3920 = vshrl.u32 %v3919, 7
  %v3921 = vsub.s32 7, %v3920
  %v3922 = vrot.slane %v3176, %v3921
  %v3923 = vlaneseq
  %v3924 = vshrl.u32 %v3923, 7
  %v3925 = vsub.s32 0, %v3924
  %v3926 = vrot.slane %v3177, %v3925
  %v3927 = vlaneseq
  %v3928 = vshrl.u32 %v3927, 7
  %v3929 = vsub.s32 1, %v3928
  %v3930 = vrot.slane %v3177, %v3929
  %v3931 = vlaneseq
  %v3932 = vshrl.u32 %v3931, 7
  %v3933 = vsub.s32 2, %v3932
  %v3934 = vrot.slane %v3177, %v3933
  %v3935 = vlaneseq
  %v3936 = vshrl.u32 %v3935, 7
  %v3937 = vsub.s32 3, %v3936
  %v3938 = vrot.slane %v3177, %v3937
  %v3939 = vlaneseq
  %v3940 = vshrl.u32 %v3939, 7
  %v3941 = vsub.s32 4, %v3940
  %v3942 = vrot.slane %v3177, %v3941
  %v3943 = vlaneseq
  %v3944 = vshrl.u32 %v3943, 7
  %v3945 = vsub.s32 5, %v3944
  %v3946 = vrot.slane %v3177, %v3945
  %v3947 = vlaneseq
  %v3948 = vshrl.u32 %v3947, 7
  %v3949 = vsub.s32 6, %v3948
  %v3950 = vrot.slane %v3177, %v3949
  %v3951 = vlaneseq
  %v3952 = vshrl.u32 %v3951, 7
  %v3953 = vsub.s32 7, %v3952
  %v3954 = vrot.slane %v3177, %v3953
  %v3955 = vlaneseq
  %v3956 = vshrl.u32 %v3955, 7
  %v3957 = vsub.s32 0, %v3956
  %v3958 = vrot.slane %v3178, %v3957
  %v3959 = vlaneseq
  %v3960 = vshrl.u32 %v3959, 7
  %v3961 = vsub.s32 1, %v3960
  %v3962 = vrot.slane %v3178, %v3961
  %v3963 = vlaneseq
  %v3964 = vshrl.u32 %v3963, 7
  %v3965 = vsub.s32 2, %v3964
  %v3966 = vrot.slane %v3178, %v3965
  %v3967 = vlaneseq
  %v3968 = vshrl.u32 %v3967, 7
  %v3969 = vsub.s32 3, %v3968
  %v3970 = vrot.slane %v3178, %v3969
  %v3971 = vlaneseq
  %v3972 = vshrl.u32 %v3971, 7
  %v3973 = vsub.s32 4, %v3972
  %v3974 = vrot.slane %v3178, %v3973
  %v3975 = vlaneseq
  %v3976 = vshrl.u32 %v3975, 7
  %v3977 = vsub.s32 5, %v3976
  %v3978 = vrot.slane %v3178, %v3977
  %v3979 = vlaneseq
  %v3980 = vshrl.u32 %v3979, 7
  %v3981 = vsub.s32 6, %v3980
  %v3982 = vrot.slane %v3178, %v3981
  %v3983 = vlaneseq
  %v3984 = vshrl.u32 %v3983, 7
  %v3985 = vsub.s32 7, %v3984
  %v3986 = vrot.slane %v3178, %v3985
  %v3987 = vlaneseq
  %v3988 = vshrl.u32 %v3987, 7
  %v3989 = vsub.s32 0, %v3988
  %v3990 = vrot.slane %v3179, %v3989
  %v3991 = vlaneseq
  %v3992 = vshrl.u32 %v3991, 7
  %v3993 = vsub.s32 1, %v3992
  %v3994 = vrot.slane %v3179, %v3993
  %v3995 = vlaneseq
  %v3996 = vshrl.u32 %v3995, 7
  %v3997 = vsub.s32 2, %v3996
  %v3998 = vrot.slane %v3179, %v3997
  %v3999 = vlaneseq
  %v4000 = vshrl.u32 %v3999, 7
  %v4001 = vsub.s32 3, %v4000
  %v4002 = vrot.slane %v3179, %v4001
  %v4003 = vlaneseq
  %v4004 = vshrl.u32 %v4003, 7
  %v4005 = vsub.s32 4, %v4004
  %v4006 = vrot.slane %v3179, %v4005
  %v4007 = vlaneseq
  %v4008 = vshrl.u32 %v4007, 7
  %v4009 = vsub.s32 5, %v4008
  %v4010 = vrot.slane %v3179, %v4009
  %v4011 = vlaneseq
  %v4012 = vshrl.u32 %v4011, 7
  %v4013 = vsub.s32 6, %v4012
  %v4014 = vrot.slane %v3179, %v4013
  %v4015 = vlaneseq
  %v4016 = vshrl.u32 %v4015, 7
  %v4017 = vsub.s32 7, %v4016
  %v4018 = vrot.slane %v3179, %v4017
  %v4019 = vlaneseq
  %v4020 = vshrl.u32 %v4019, 7
  %v4021 = vsub.s32 0, %v4020
  %v4022 = vrot.slane %v3180, %v4021
  %v4023 = vlaneseq
  %v4024 = vshrl.u32 %v4023, 7
  %v4025 = vsub.s32 1, %v4024
  %v4026 = vrot.slane %v3180, %v4025
  %v4027 = vlaneseq
  %v4028 = vshrl.u32 %v4027, 7
  %v4029 = vsub.s32 2, %v4028
  %v4030 = vrot.slane %v3180, %v4029
  %v4031 = vlaneseq
  %v4032 = vshrl.u32 %v4031, 7
  %v4033 = vsub.s32 3, %v4032
  %v4034 = vrot.slane %v3180, %v4033
  %v4035 = vlaneseq
  %v4036 = vshrl.u32 %v4035, 7
  %v4037 = vsub.s32 4, %v4036
  %v4038 = vrot.slane %v3180, %v4037
  %v4039 = vlaneseq
  %v4040 = vshrl.u32 %v4039, 7
  %v4041 = vsub.s32 5, %v4040
  %v4042 = vrot.slane %v3180, %v4041
  %v4043 = vlaneseq
  %v4044 = vshrl.u32 %v4043, 7
  %v4045 = vsub.s32 6, %v4044
  %v4046 = vrot.slane %v3180, %v4045
  %v4047 = vlaneseq
  %v4048 = vshrl.u32 %v4047, 7
  %v4049 = vsub.s32 7, %v4048
  %v4050 = vrot.slane %v3180, %v4049
  %v4051 = vlaneseq
  %v4052 = vshrl.u32 %v4051, 7
  %v4053 = vsub.s32 0, %v4052
  %v4054 = vrot.slane %v3181, %v4053
  %v4055 = vlaneseq
  %v4056 = vshrl.u32 %v4055, 7
  %v4057 = vsub.s32 1, %v4056
  %v4058 = vrot.slane %v3181, %v4057
  %v4059 = vlaneseq
  %v4060 = vshrl.u32 %v4059, 7
  %v4061 = vsub.s32 2, %v4060
  %v4062 = vrot.slane %v3181, %v4061
  %v4063 = vlaneseq
  %v4064 = vshrl.u32 %v4063, 7
  %v4065 = vsub.s32 3, %v4064
  %v4066 = vrot.slane %v3181, %v4065
  %v4067 = vlaneseq
  %v4068 = vshrl.u32 %v4067, 7
  %v4069 = vsub.s32 4, %v4068
  %v4070 = vrot.slane %v3181, %v4069
  %v4071 = vlaneseq
  %v4072 = vshrl.u32 %v4071, 7
  %v4073 = vsub.s32 5, %v4072
  %v4074 = vrot.slane %v3181, %v4073
  %v4075 = vlaneseq
  %v4076 = vshrl.u32 %v4075, 7
  %v4077 = vsub.s32 6, %v4076
  %v4078 = vrot.slane %v3181, %v4077
  %v4079 = vlaneseq
  %v4080 = vshrl.u32 %v4079, 7
  %v4081 = vsub.s32 7, %v4080
  %v4082 = vrot.slane %v3181, %v4081
  %v4083 = vlaneseq
  %v4084 = vshrl.u32 %v4083, 7
  %v4085 = vsub.s32 0, %v4084
  %v4086 = vrot.slane %v3182, %v4085
  %v4087 = vlaneseq
  %v4088 = vshrl.u32 %v4087, 7
  %v4089 = vsub.s32 1, %v4088
  %v4090 = vrot.slane %v3182, %v4089
  %v4091 = vlaneseq
  %v4092 = vshrl.u32 %v4091, 7
  %v4093 = vsub.s32 2, %v4092
  %v4094 = vrot.slane %v3182, %v4093
  %v4095 = vlaneseq
  %v4096 = vshrl.u32 %v4095, 7
  %v4097 = vsub.s32 3, %v4096
  %v4098 = vrot.slane %v3182, %v4097
  %v4099 = vlaneseq
  %v4100 = vshrl.u32 %v4099, 7
  %v4101 = vsub.s32 4, %v4100
  %v4102 = vrot.slane %v3182, %v4101
  %v4103 = vlaneseq
  %v4104 = vshrl.u32 %v4103, 7
  %v4105 = vsub.s32 5, %v4104
  %v4106 = vrot.slane %v3182, %v4105
  %v4107 = vlaneseq
  %v4108 = vshrl.u32 %v4107, 7
  %v4109 = vsub.s32 6, %v4108
  %v4110 = vrot.slane %v3182, %v4109
  %v4111 = vlaneseq
  %v4112 = vshrl.u32 %v4111, 7
  %v4113 = vsub.s32 7, %v4112
  %v4114 = vrot.slane %v3182, %v4113
  %v4115 = vlaneseq
  %v4116 = vshrl.u32 %v4115, 7
  %v4117 = vsub.s32 0, %v4116
  %v4118 = vrot.slane %v3183, %v4117
  %v4119 = vlaneseq
  %v4120 = vshrl.u32 %v4119, 7
  %v4121 = vsub.s32 1, %v4120
  %v4122 = vrot.slane %v3183, %v4121
  %v4123 = vlaneseq
  %v4124 = vshrl.u32 %v4123, 7
  %v4125 = vsub.s32 2, %v4124
  %v4126 = vrot.slane %v3183, %v4125
  %v4127 = vlaneseq
  %v4128 = vshrl.u32 %v4127, 7
  %v4129 = vsub.s32 3, %v4128
  %v4130 = vrot.slane %v3183, %v4129
  %v4131 = vlaneseq
  %v4132 = vshrl.u32 %v4131, 7
  %v4133 = vsub.s32 4, %v4132
  %v4134 = vrot.slane %v3183, %v4133
  %v4135 = vlaneseq
  %v4136 = vshrl.u32 %v4135, 7
  %v4137 = vsub.s32 5, %v4136
  %v4138 = vrot.slane %v3183, %v4137
  %v4139 = vlaneseq
  %v4140 = vshrl.u32 %v4139, 7
  %v4141 = vsub.s32 6, %v4140
  %v4142 = vrot.slane %v3183, %v4141
  %v4143 = vlaneseq
  %v4144 = vshrl.u32 %v4143, 7
  %v4145 = vsub.s32 7, %v4144
  %v4146 = vrot.slane %v3183, %v4145
  %v4147 = vlaneseq
  %v4148 = vshrl.u32 %v4147, 7
  %v4149 = vsub.s32 0, %v4148
  %v4150 = vrot.slane %v3184, %v4149
  %v4151 = vlaneseq
  %v4152 = vshrl.u32 %v4151, 7
  %v4153 = vsub.s32 1, %v4152
  %v4154 = vrot.slane %v3184, %v4153
  %v4155 = vlaneseq
  %v4156 = vshrl.u32 %v4155, 7
  %v4157 = vsub.s32 2, %v4156
  %v4158 = vrot.slane %v3184, %v4157
  %v4159 = vlaneseq
  %v4160 = vshrl.u32 %v4159, 7
  %v4161 = vsub.s32 3, %v4160
  %v4162 = vrot.slane %v3184, %v4161
  %v4163 = vlaneseq
  %v4164 = vshrl.u32 %v4163, 7
  %v4165 = vsub.s32 4, %v4164
  %v4166 = vrot.slane %v3184, %v4165
  %v4167 = vlaneseq
  %v4168 = vshrl.u32 %v4167, 7
  %v4169 = vsub.s32 5, %v4168
  %v4170 = vrot.slane %v3184, %v4169
  %v4171 = vlaneseq
  %v4172 = vshrl.u32 %v4171, 7
  %v4173 = vsub.s32 6, %v4172
  %v4174 = vrot.slane %v3184, %v4173
  %v4175 = vlaneseq
  %v4176 = vshrl.u32 %v4175, 7
  %v4177 = vsub.s32 7, %v4176
  %v4178 = vrot.slane %v3184, %v4177
  %v4179 = vlaneseq
  %v4180 = vshrl.u32 %v4179, 7
  %v4181 = vsub.s32 0, %v4180
  %v4182 = vrot.slane %v3185, %v4181
  %v4183 = vlaneseq
  %v4184 = vshrl.u32 %v4183, 7
  %v4185 = vsub.s32 1, %v4184
  %v4186 = vrot.slane %v3185, %v4185
  %v4187 = vlaneseq
  %v4188 = vshrl.u32 %v4187, 7
  %v4189 = vsub.s32 2, %v4188
  %v4190 = vrot.slane %v3185, %v4189
  %v4191 = vlaneseq
  %v4192 = vshrl.u32 %v4191, 7
  %v4193 = vsub.s32 3, %v4192
  %v4194 = vrot.slane %v3185, %v4193
  %v4195 = vlaneseq
  %v4196 = vshrl.u32 %v4195, 7
  %v4197 = vsub.s32 4, %v4196
  %v4198 = vrot.slane %v3185, %v4197
  %v4199 = vlaneseq
  %v4200 = vshrl.u32 %v4199, 7
  %v4201 = vsub.s32 5, %v4200
  %v4202 = vrot.slane %v3185, %v4201
  %v4203 = vlaneseq
  %v4204 = vshrl.u32 %v4203, 7
  %v4205 = vsub.s32 6, %v4204
  %v4206 = vrot.slane %v3185, %v4205
  %v4207 = vlaneseq
  %v4208 = vshrl.u32 %v4207, 7
  %v4209 = vsub.s32 7, %v4208
  %v4210 = vrot.slane %v3185, %v4209
  %v4211 = vlaneseq
  %v4212 = vshrl.u32 %v4211, 7
  %v4213 = vsub.s32 0, %v4212
  %v4214 = vrot.slane %v3186, %v4213
  %v4215 = vlaneseq
  %v4216 = vshrl.u32 %v4215, 7
  %v4217 = vsub.s32 1, %v4216
  %v4218 = vrot.slane %v3186, %v4217
  %v4219 = vlaneseq
  %v4220 = vshrl.u32 %v4219, 7
  %v4221 = vsub.s32 2, %v4220
  %v4222 = vrot.slane %v3186, %v4221
  %v4223 = vlaneseq
  %v4224 = vshrl.u32 %v4223, 7
  %v4225 = vsub.s32 3, %v4224
  %v4226 = vrot.slane %v3186, %v4225
  %v4227 = vlaneseq
  %v4228 = vshrl.u32 %v4227, 7
  %v4229 = vsub.s32 4, %v4228
  %v4230 = vrot.slane %v3186, %v4229
  %v4231 = vlaneseq
  %v4232 = vshrl.u32 %v4231, 7
  %v4233 = vsub.s32 5, %v4232
  %v4234 = vrot.slane %v3186, %v4233
  %v4235 = vlaneseq
  %v4236 = vshrl.u32 %v4235, 7
  %v4237 = vsub.s32 6, %v4236
  %v4238 = vrot.slane %v3186, %v4237
  %v4239 = vlaneseq
  %v4240 = vshrl.u32 %v4239, 7
  %v4241 = vsub.s32 7, %v4240
  %v4242 = vrot.slane %v3186, %v4241
  %v4243 = vcombine.low %v3222, %v3226
  %v4244 = vcombine.low %v3230, %v3234
  %v4245 = vcombine.low %v3238, %v3242
  %v4246 = vcombine.low %v3246, %v3250
  %v4248 = vunpack.c.l.s4 1966171168
  %v4249 = vunpack.c.0.s8 %v4248
  %v4250 = vlaneseq
  %v4251 = vshrl.u32 %v4250, 7
  %v4252 = vsub.s32 %v4249, %v4251
  %v4253 = vrot.slane %v4243, %v4252
  %v4255 = vunpack.c.l.s4 1966171168
  %v4256 = vunpack.c.0.s8 %v4255
  %v4257 = vlaneseq
  %v4258 = vshrl.u32 %v4257, 7
  %v4259 = vsub.s32 %v4256, %v4258
  %v4260 = vrot.slane %v4244, %v4259
  %v4262 = vunpack.c.l.s4 1966171168
  %v4263 = vunpack.c.0.s8 %v4262
  %v4264 = vlaneseq
  %v4265 = vshrl.u32 %v4264, 7
  %v4266 = vsub.s32 %v4263, %v4265
  %v4267 = vrot.slane %v4245, %v4266
  %v4269 = vunpack.c.l.s4 1966171168
  %v4270 = vunpack.c.0.s8 %v4269
  %v4271 = vlaneseq
  %v4272 = vshrl.u32 %v4271, 7
  %v4273 = vsub.s32 %v4270, %v4272
  %v4274 = vrot.slane %v4246, %v4273
  %v4275 = vcombine.low %v4253, %v4260
  %v4276 = vcombine.low %v4267, %v4274
  %v4278 = vunpack.c.l.s4 1966171168
  %v4279 = vunpack.c.0.s8 %v4278
  %v4280 = vlaneseq
  %v4281 = vshrl.u32 %v4280, 7
  %v4282 = vsub.s32 %v4279, %v4281
  %v4283 = vrot.slane %v4275, %v4282
  %v4285 = vunpack.c.l.s4 1966171168
  %v4286 = vunpack.c.0.s8 %v4285
  %v4287 = vlaneseq
  %v4288 = vshrl.u32 %v4287, 7
  %v4289 = vsub.s32 %v4286, %v4288
  %v4290 = vrot.slane %v4276, %v4289
  %v4291 = vcombine.low %v4283, %v4290
  %v4292 = vcombine.low %v3254, %v3258
  %v4293 = vcombine.low %v3262, %v3266
  %v4294 = vcombine.low %v3270, %v3274
  %v4295 = vcombine.low %v3278, %v3282
  %v4297 = vunpack.c.l.s4 1966171168
  %v4298 = vunpack.c.0.s8 %v4297
  %v4299 = vlaneseq
  %v4300 = vshrl.u32 %v4299, 7
  %v4301 = vsub.s32 %v4298, %v4300
  %v4302 = vrot.slane %v4292, %v4301
  %v4304 = vunpack.c.l.s4 1966171168
  %v4305 = vunpack.c.0.s8 %v4304
  %v4306 = vlaneseq
  %v4307 = vshrl.u32 %v4306, 7
  %v4308 = vsub.s32 %v4305, %v4307
  %v4309 = vrot.slane %v4293, %v4308
  %v4311 = vunpack.c.l.s4 1966171168
  %v4312 = vunpack.c.0.s8 %v4311
  %v4313 = vlaneseq
  %v4314 = vshrl.u32 %v4313, 7
  %v4315 = vsub.s32 %v4312, %v4314
  %v4316 = vrot.slane %v4294, %v4315
  %v4318 = vunpack.c.l.s4 1966171168
  %v4319 = vunpack.c.0.s8 %v4318
  %v4320 = vlaneseq
  %v4321 = vshrl.u32 %v4320, 7
  %v4322 = vsub.s32 %v4319, %v4321
  %v4323 = vrot.slane %v4295, %v4322
  %v4324 = vcombine.low %v4302, %v4309
  %v4325 = vcombine.low %v4316, %v4323
  %v4327 = vunpack.c.l.s4 1966171168
  %v4328 = vunpack.c.0.s8 %v4327
  %v4329 = vlaneseq
  %v4330 = vshrl.u32 %v4329, 7
  %v4331 = vsub.s32 %v4328, %v4330
  %v4332 = vrot.slane %v4324, %v4331
  %v4334 = vunpack.c.l.s4 1966171168
  %v4335 = vunpack.c.0.s8 %v4334
  %v4336 = vlaneseq
  %v4337 = vshrl.u32 %v4336, 7
  %v4338 = vsub.s32 %v4335, %v4337
  %v4339 = vrot.slane %v4325, %v4338
  %v4340 = vcombine.low %v4332, %v4339
  %v4341 = vcombine.low %v3286, %v3290
  %v4342 = vcombine.low %v3294, %v3298
  %v4343 = vcombine.low %v3302, %v3306
  %v4344 = vcombine.low %v3310, %v3314
  %v4346 = vunpack.c.l.s4 1966171168
  %v4347 = vunpack.c.0.s8 %v4346
  %v4348 = vlaneseq
  %v4349 = vshrl.u32 %v4348, 7
  %v4350 = vsub.s32 %v4347, %v4349
  %v4351 = vrot.slane %v4341, %v4350
  %v4353 = vunpack.c.l.s4 1966171168
  %v4354 = vunpack.c.0.s8 %v4353
  %v4355 = vlaneseq
  %v4356 = vshrl.u32 %v4355, 7
  %v4357 = vsub.s32 %v4354, %v4356
  %v4358 = vrot.slane %v4342, %v4357
  %v4360 = vunpack.c.l.s4 1966171168
  %v4361 = vunpack.c.0.s8 %v4360
  %v4362 = vlaneseq
  %v4363 = vshrl.u32 %v4362, 7
  %v4364 = vsub.s32 %v4361, %v4363
  %v4365 = vrot.slane %v4343, %v4364
  %v4367 = vunpack.c.l.s4 1966171168
  %v4368 = vunpack.c.0.s8 %v4367
  %v4369 = vlaneseq
  %v4370 = vshrl.u32 %v4369, 7
  %v4371 = vsub.s32 %v4368, %v4370
  %v4372 = vrot.slane %v4344, %v4371
  %v4373 = vcombine.low %v4351, %v4358
  %v4374 = vcombine.low %v4365, %v4372
  %v4376 = vunpack.c.l.s4 1966171168
  %v4377 = vunpack.c.0.s8 %v4376
  %v4378 = vlaneseq
  %v4379 = vshrl.u32 %v4378, 7
  %v4380 = vsub.s32 %v4377, %v4379
  %v4381 = vrot.slane %v4373, %v4380
  %v4383 = vunpack.c.l.s4 1966171168
  %v4384 = vunpack.c.0.s8 %v4383
  %v4385 = vlaneseq
  %v4386 = vshrl.u32 %v4385, 7
  %v4387 = vsub.s32 %v4384, %v4386
  %v4388 = vrot.slane %v4374, %v4387
  %v4389 = vcombine.low %v4381, %v4388
  %v4390 = vcombine.low %v3318, %v3322
  %v4391 = vcombine.low %v3326, %v3330
  %v4392 = vcombine.low %v3334, %v3338
  %v4393 = vcombine.low %v3342, %v3346
  %v4395 = vunpack.c.l.s4 1966171168
  %v4396 = vunpack.c.0.s8 %v4395
  %v4397 = vlaneseq
  %v4398 = vshrl.u32 %v4397, 7
  %v4399 = vsub.s32 %v4396, %v4398
  %v4400 = vrot.slane %v4390, %v4399
  %v4402 = vunpack.c.l.s4 1966171168
  %v4403 = vunpack.c.0.s8 %v4402
  %v4404 = vlaneseq
  %v4405 = vshrl.u32 %v4404, 7
  %v4406 = vsub.s32 %v4403, %v4405
  %v4407 = vrot.slane %v4391, %v4406
  %v4409 = vunpack.c.l.s4 1966171168
  %v4410 = vunpack.c.0.s8 %v4409
  %v4411 = vlaneseq
  %v4412 = vshrl.u32 %v4411, 7
  %v4413 = vsub.s32 %v4410, %v4412
  %v4414 = vrot.slane %v4392, %v4413
  %v4416 = vunpack.c.l.s4 1966171168
  %v4417 = vunpack.c.0.s8 %v4416
  %v4418 = vlaneseq
  %v4419 = vshrl.u32 %v4418, 7
  %v4420 = vsub.s32 %v4417, %v4419
  %v4421 = vrot.slane %v4393, %v4420
  %v4422 = vcombine.low %v4400, %v4407
  %v4423 = vcombine.low %v4414, %v4421
  %v4425 = vunpack.c.l.s4 1966171168
  %v4426 = vunpack.c.0.s8 %v4425
  %v4427 = vlaneseq
  %v4428 = vshrl.u32 %v4427, 7
  %v4429 = vsub.s32 %v4426, %v4428
  %v4430 = vrot.slane %v4422, %v4429
  %v4432 = vunpack.c.l.s4 1966171168
  %v4433 = vunpack.c.0.s8 %v4432
  %v4434 = vlaneseq
  %v4435 = vshrl.u32 %v4434, 7
  %v4436 = vsub.s32 %v4433, %v4435
  %v4437 = vrot.slane %v4423, %v4436
  %v4438 = vcombine.low %v4430, %v4437
  %v4439 = vcombine.low %v3350, %v3354
  %v4440 = vcombine.low %v3358, %v3362
  %v4441 = vcombine.low %v3366, %v3370
  %v4442 = vcombine.low %v3374, %v3378
  %v4444 = vunpack.c.l.s4 1966171168
  %v4445 = vunpack.c.0.s8 %v4444
  %v4446 = vlaneseq
  %v4447 = vshrl.u32 %v4446, 7
  %v4448 = vsub.s32 %v4445, %v4447
  %v4449 = vrot.slane %v4439, %v4448
  %v4451 = vunpack.c.l.s4 1966171168
  %v4452 = vunpack.c.0.s8 %v4451
  %v4453 = vlaneseq
  %v4454 = vshrl.u32 %v4453, 7
  %v4455 = vsub.s32 %v4452, %v4454
  %v4456 = vrot.slane %v4440, %v4455
  %v4458 = vunpack.c.l.s4 1966171168
  %v4459 = vunpack.c.0.s8 %v4458
  %v4460 = vlaneseq
  %v4461 = vshrl.u32 %v4460, 7
  %v4462 = vsub.s32 %v4459, %v4461
  %v4463 = vrot.slane %v4441, %v4462
  %v4465 = vunpack.c.l.s4 1966171168
  %v4466 = vunpack.c.0.s8 %v4465
  %v4467 = vlaneseq
  %v4468 = vshrl.u32 %v4467, 7
  %v4469 = vsub.s32 %v4466, %v4468
  %v4470 = vrot.slane %v4442, %v4469
  %v4471 = vcombine.low %v4449, %v4456
  %v4472 = vcombine.low %v4463, %v4470
  %v4474 = vunpack.c.l.s4 1966171168
  %v4475 = vunpack.c.0.s8 %v4474
  %v4476 = vlaneseq
  %v4477 = vshrl.u32 %v4476, 7
  %v4478 = vsub.s32 %v4475, %v4477
  %v4479 = vrot.slane %v4471, %v4478
  %v4481 = vunpack.c.l.s4 1966171168
  %v4482 = vunpack.c.0.s8 %v4481
  %v4483 = vlaneseq
  %v4484 = vshrl.u32 %v4483, 7
  %v4485 = vsub.s32 %v4482, %v4484
  %v4486 = vrot.slane %v4472, %v4485
  %v4487 = vcombine.low %v4479, %v4486
  %v4488 = vcombine.low %v3382, %v3386
  %v4489 = vcombine.low %v3390, %v3394
  %v4490 = vcombine.low %v3398, %v3402
  %v4491 = vcombine.low %v3406, %v3410
  %v4493 = vunpack.c.l.s4 1966171168
  %v4494 = vunpack.c.0.s8 %v4493
  %v4495 = vlaneseq
  %v4496 = vshrl.u32 %v4495, 7
  %v4497 = vsub.s32 %v4494, %v4496
  %v4498 = vrot.slane %v4488, %v4497
  %v4500 = vunpack.c.l.s4 1966171168
  %v4501 = vunpack.c.0.s8 %v4500
  %v4502 = vlaneseq
  %v4503 = vshrl.u32 %v4502, 7
  %v4504 = vsub.s32 %v4501, %v4503
  %v4505 = vrot.slane %v4489, %v4504
  %v4507 = vunpack.c.l.s4 1966171168
  %v4508 = vunpack.c.0.s8 %v4507
  %v4509 = vlaneseq
  %v4510 = vshrl.u32 %v4509, 7
  %v4511 = vsub.s32 %v4508, %v4510
  %v4512 = vrot.slane %v4490, %v4511
  %v4514 = vunpack.c.l.s4 1966171168
  %v4515 = vunpack.c.0.s8 %v4514
  %v4516 = vlaneseq
  %v4517 = vshrl.u32 %v4516, 7
  %v4518 = vsub.s32 %v4515, %v4517
  %v4519 = vrot.slane %v4491, %v4518
  %v4520 = vcombine.low %v4498, %v4505
  %v4521 = vcombine.low %v4512, %v4519
  %v4523 = vunpack.c.l.s4 1966171168
  %v4524 = vunpack.c.0.s8 %v4523
  %v4525 = vlaneseq
  %v4526 = vshrl.u32 %v4525, 7
  %v4527 = vsub.s32 %v4524, %v4526
  %v4528 = vrot.slane %v4520, %v4527
  %v4530 = vunpack.c.l.s4 1966171168
  %v4531 = vunpack.c.0.s8 %v4530
  %v4532 = vlaneseq
  %v4533 = vshrl.u32 %v4532, 7
  %v4534 = vsub.s32 %v4531, %v4533
  %v4535 = vrot.slane %v4521, %v4534
  %v4536 = vcombine.low %v4528, %v4535
  %v4537 = vcombine.low %v3414, %v3418
  %v4538 = vcombine.low %v3422, %v3426
  %v4539 = vcombine.low %v3430, %v3434
  %v4540 = vcombine.low %v3438, %v3442
  %v4542 = vunpack.c.l.s4 1966171168
  %v4543 = vunpack.c.0.s8 %v4542
  %v4544 = vlaneseq
  %v4545 = vshrl.u32 %v4544, 7
  %v4546 = vsub.s32 %v4543, %v4545
  %v4547 = vrot.slane %v4537, %v4546
  %v4549 = vunpack.c.l.s4 1966171168
  %v4550 = vunpack.c.0.s8 %v4549
  %v4551 = vlaneseq
  %v4552 = vshrl.u32 %v4551, 7
  %v4553 = vsub.s32 %v4550, %v4552
  %v4554 = vrot.slane %v4538, %v4553
  %v4556 = vunpack.c.l.s4 1966171168
  %v4557 = vunpack.c.0.s8 %v4556
  %v4558 = vlaneseq
  %v4559 = vshrl.u32 %v4558, 7
  %v4560 = vsub.s32 %v4557, %v4559
  %v4561 = vrot.slane %v4539, %v4560
  %v4563 = vunpack.c.l.s4 1966171168
  %v4564 = vunpack.c.0.s8 %v4563
  %v4565 = vlaneseq
  %v4566 = vshrl.u32 %v4565, 7
  %v4567 = vsub.s32 %v4564, %v4566
  %v4568 = vrot.slane %v4540, %v4567
  %v4569 = vcombine.low %v4547, %v4554
  %v4570 = vcombine.low %v4561, %v4568
  %v4572 = vunpack.c.l.s4 1966171168
  %v4573 = vunpack.c.0.s8 %v4572
  %v4574 = vlaneseq
  %v4575 = vshrl.u32 %v4574, 7
  %v4576 = vsub.s32 %v4573, %v4575
  %v4577 = vrot.slane %v4569, %v4576
  %v4579 = vunpack.c.l.s4 1966171168
  %v4580 = vunpack.c.0.s8 %v4579
  %v4581 = vlaneseq
  %v4582 = vshrl.u32 %v4581, 7
  %v4583 = vsub.s32 %v4580, %v4582
  %v4584 = vrot.slane %v4570, %v4583
  %v4585 = vcombine.low %v4577, %v4584
  %v4586 = vcombine.low %v3446, %v3450
  %v4587 = vcombine.low %v3454, %v3458
  %v4588 = vcombine.low %v3462, %v3466
  %v4589 = vcombine.low %v3470, %v3474
  %v4591 = vunpack.c.l.s4 1966171168
  %v4592 = vunpack.c.0.s8 %v4591
  %v4593 = vlaneseq
  %v4594 = vshrl.u32 %v4593, 7
  %v4595 = vsub.s32 %v4592, %v4594
  %v4596 = vrot.slane %v4586, %v4595
  %v4598 = vunpack.c.l.s4 1966171168
  %v4599 = vunpack.c.0.s8 %v4598
  %v4600 = vlaneseq
  %v4601 = vshrl.u32 %v4600, 7
  %v4602 = vsub.s32 %v4599, %v4601
  %v4603 = vrot.slane %v4587, %v4602
  %v4605 = vunpack.c.l.s4 1966171168
  %v4606 = vunpack.c.0.s8 %v4605
  %v4607 = vlaneseq
  %v4608 = vshrl.u32 %v4607, 7
  %v4609 = vsub.s32 %v4606, %v4608
  %v4610 = vrot.slane %v4588, %v4609
  %v4612 = vunpack.c.l.s4 1966171168
  %v4613 = vunpack.c.0.s8 %v4612
  %v4614 = vlaneseq
  %v4615 = vshrl.u32 %v4614, 7
  %v4616 = vsub.s32 %v4613, %v4615
  %v4617 = vrot.slane %v4589, %v4616
  %v4618 = vcombine.low %v4596, %v4603
  %v4619 = vcombine.low %v4610, %v4617
  %v4621 = vunpack.c.l.s4 1966171168
  %v4622 = vunpack.c.0.s8 %v4621
  %v4623 = vlaneseq
  %v4624 = vshrl.u32 %v4623, 7
  %v4625 = vsub.s32 %v4622, %v4624
  %v4626 = vrot.slane %v4618, %v4625
  %v4628 = vunpack.c.l.s4 1966171168
  %v4629 = vunpack.c.0.s8 %v4628
  %v4630 = vlaneseq
  %v4631 = vshrl.u32 %v4630, 7
  %v4632 = vsub.s32 %v4629, %v4631
  %v4633 = vrot.slane %v4619, %v4632
  %v4634 = vcombine.low %v4626, %v4633
  %v4635 = vcombine.low %v3478, %v3482
  %v4636 = vcombine.low %v3486, %v3490
  %v4637 = vcombine.low %v3494, %v3498
  %v4638 = vcombine.low %v3502, %v3506
  %v4640 = vunpack.c.l.s4 1966171168
  %v4641 = vunpack.c.0.s8 %v4640
  %v4642 = vlaneseq
  %v4643 = vshrl.u32 %v4642, 7
  %v4644 = vsub.s32 %v4641, %v4643
  %v4645 = vrot.slane %v4635, %v4644
  %v4647 = vunpack.c.l.s4 1966171168
  %v4648 = vunpack.c.0.s8 %v4647
  %v4649 = vlaneseq
  %v4650 = vshrl.u32 %v4649, 7
  %v4651 = vsub.s32 %v4648, %v4650
  %v4652 = vrot.slane %v4636, %v4651
  %v4654 = vunpack.c.l.s4 1966171168
  %v4655 = vunpack.c.0.s8 %v4654
  %v4656 = vlaneseq
  %v4657 = vshrl.u32 %v4656, 7
  %v4658 = vsub.s32 %v4655, %v4657
  %v4659 = vrot.slane %v4637, %v4658
  %v4661 = vunpack.c.l.s4 1966171168
  %v4662 = vunpack.c.0.s8 %v4661
  %v4663 = vlaneseq
  %v4664 = vshrl.u32 %v4663, 7
  %v4665 = vsub.s32 %v4662, %v4664
  %v4666 = vrot.slane %v4638, %v4665
  %v4667 = vcombine.low %v4645, %v4652
  %v4668 = vcombine.low %v4659, %v4666
  %v4670 = vunpack.c.l.s4 1966171168
  %v4671 = vunpack.c.0.s8 %v4670
  %v4672 = vlaneseq
  %v4673 = vshrl.u32 %v4672, 7
  %v4674 = vsub.s32 %v4671, %v4673
  %v4675 = vrot.slane %v4667, %v4674
  %v4677 = vunpack.c.l.s4 1966171168
  %v4678 = vunpack.c.0.s8 %v4677
  %v4679 = vlaneseq
  %v4680 = vshrl.u32 %v4679, 7
  %v4681 = vsub.s32 %v4678, %v4680
  %v4682 = vrot.slane %v4668, %v4681
  %v4683 = vcombine.low %v4675, %v4682
  %v4684 = vcombine.low %v3510, %v3514
  %v4685 = vcombine.low %v3518, %v3522
  %v4686 = vcombine.low %v3526, %v3530
  %v4687 = vcombine.low %v3534, %v3538
  %v4689 = vunpack.c.l.s4 1966171168
  %v4690 = vunpack.c.0.s8 %v4689
  %v4691 = vlaneseq
  %v4692 = vshrl.u32 %v4691, 7
  %v4693 = vsub.s32 %v4690, %v4692
  %v4694 = vrot.slane %v4684, %v4693
  %v4696 = vunpack.c.l.s4 1966171168
  %v4697 = vunpack.c.0.s8 %v4696
  %v4698 = vlaneseq
  %v4699 = vshrl.u32 %v4698, 7
  %v4700 = vsub.s32 %v4697, %v4699
  %v4701 = vrot.slane %v4685, %v4700
  %v4703 = vunpack.c.l.s4 1966171168
  %v4704 = vunpack.c.0.s8 %v4703
  %v4705 = vlaneseq
  %v4706 = vshrl.u32 %v4705, 7
  %v4707 = vsub.s32 %v4704, %v4706
  %v4708 = vrot.slane %v4686, %v4707
  %v4710 = vunpack.c.l.s4 1966171168
  %v4711 = vunpack.c.0.s8 %v4710
  %v4712 = vlaneseq
  %v4713 = vshrl.u32 %v4712, 7
  %v4714 = vsub.s32 %v4711, %v4713
  %v4715 = vrot.slane %v4687, %v4714
  %v4716 = vcombine.low %v4694, %v4701
  %v4717 = vcombine.low %v4708, %v4715
  %v4719 = vunpack.c.l.s4 1966171168
  %v4720 = vunpack.c.0.s8 %v4719
  %v4721 = vlaneseq
  %v4722 = vshrl.u32 %v4721, 7
  %v4723 = vsub.s32 %v4720, %v4722
  %v4724 = vrot.slane %v4716, %v4723
  %v4726 = vunpack.c.l.s4 1966171168
  %v4727 = vunpack.c.0.s8 %v4726
  %v4728 = vlaneseq
  %v4729 = vshrl.u32 %v4728, 7
  %v4730 = vsub.s32 %v4727, %v4729
  %v4731 = vrot.slane %v4717, %v4730
  %v4732 = vcombine.low %v4724, %v4731
  %v4733 = vcombine.low %v3542, %v3546
  %v4734 = vcombine.low %v3550, %v3554
  %v4735 = vcombine.low %v3558, %v3562
  %v4736 = vcombine.low %v3566, %v3570
  %v4738 = vunpack.c.l.s4 1966171168
  %v4739 = vunpack.c.0.s8 %v4738
  %v4740 = vlaneseq
  %v4741 = vshrl.u32 %v4740, 7
  %v4742 = vsub.s32 %v4739, %v4741
  %v4743 = vrot.slane %v4733, %v4742
  %v4745 = vunpack.c.l.s4 1966171168
  %v4746 = vunpack.c.0.s8 %v4745
  %v4747 = vlaneseq
  %v4748 = vshrl.u32 %v4747, 7
  %v4749 = vsub.s32 %v4746, %v4748
  %v4750 = vrot.slane %v4734, %v4749
  %v4752 = vunpack.c.l.s4 1966171168
  %v4753 = vunpack.c.0.s8 %v4752
  %v4754 = vlaneseq
  %v4755 = vshrl.u32 %v4754, 7
  %v4756 = vsub.s32 %v4753, %v4755
  %v4757 = vrot.slane %v4735, %v4756
  %v4759 = vunpack.c.l.s4 1966171168
  %v4760 = vunpack.c.0.s8 %v4759
  %v4761 = vlaneseq
  %v4762 = vshrl.u32 %v4761, 7
  %v4763 = vsub.s32 %v4760, %v4762
  %v4764 = vrot.slane %v4736, %v4763
  %v4765 = vcombine.low %v4743, %v4750
  %v4766 = vcombine.low %v4757, %v4764
  %v4768 = vunpack.c.l.s4 1966171168
  %v4769 = vunpack.c.0.s8 %v4768
  %v4770 = vlaneseq
  %v4771 = vshrl.u32 %v4770, 7
  %v4772 = vsub.s32 %v4769, %v4771
  %v4773 = vrot.slane %v4765, %v4772
  %v4775 = vunpack.c.l.s4 1966171168
  %v4776 = vunpack.c.0.s8 %v4775
  %v4777 = vlaneseq
  %v4778 = vshrl.u32 %v4777, 7
  %v4779 = vsub.s32 %v4776, %v4778
  %v4780 = vrot.slane %v4766, %v4779
  %v4781 = vcombine.low %v4773, %v4780
  %v4782 = vcombine.low %v3574, %v3578
  %v4783 = vcombine.low %v3582, %v3586
  %v4784 = vcombine.low %v3590, %v3594
  %v4785 = vcombine.low %v3598, %v3602
  %v4787 = vunpack.c.l.s4 1966171168
  %v4788 = vunpack.c.0.s8 %v4787
  %v4789 = vlaneseq
  %v4790 = vshrl.u32 %v4789, 7
  %v4791 = vsub.s32 %v4788, %v4790
  %v4792 = vrot.slane %v4782, %v4791
  %v4794 = vunpack.c.l.s4 1966171168
  %v4795 = vunpack.c.0.s8 %v4794
  %v4796 = vlaneseq
  %v4797 = vshrl.u32 %v4796, 7
  %v4798 = vsub.s32 %v4795, %v4797
  %v4799 = vrot.slane %v4783, %v4798
  %v4801 = vunpack.c.l.s4 1966171168
  %v4802 = vunpack.c.0.s8 %v4801
  %v4803 = vlaneseq
  %v4804 = vshrl.u32 %v4803, 7
  %v4805 = vsub.s32 %v4802, %v4804
  %v4806 = vrot.slane %v4784, %v4805
  %v4808 = vunpack.c.l.s4 1966171168
  %v4809 = vunpack.c.0.s8 %v4808
  %v4810 = vlaneseq
  %v4811 = vshrl.u32 %v4810, 7
  %v4812 = vsub.s32 %v4809, %v4811
  %v4813 = vrot.slane %v4785, %v4812
  %v4814 = vcombine.low %v4792, %v4799
  %v4815 = vcombine.low %v4806, %v4813
  %v4817 = vunpack.c.l.s4 1966171168
  %v4818 = vunpack.c.0.s8 %v4817
  %v4819 = vlaneseq
  %v4820 = vshrl.u32 %v4819, 7
  %v4821 = vsub.s32 %v4818, %v4820
  %v4822 = vrot.slane %v4814, %v4821
  %v4824 = vunpack.c.l.s4 1966171168
  %v4825 = vunpack.c.0.s8 %v4824
  %v4826 = vlaneseq
  %v4827 = vshrl.u32 %v4826, 7
  %v4828 = vsub.s32 %v4825, %v4827
  %v4829 = vrot.slane %v4815, %v4828
  %v4830 = vcombine.low %v4822, %v4829
  %v4831 = vcombine.low %v3606, %v3610
  %v4832 = vcombine.low %v3614, %v3618
  %v4833 = vcombine.low %v3622, %v3626
  %v4834 = vcombine.low %v3630, %v3634
  %v4836 = vunpack.c.l.s4 1966171168
  %v4837 = vunpack.c.0.s8 %v4836
  %v4838 = vlaneseq
  %v4839 = vshrl.u32 %v4838, 7
  %v4840 = vsub.s32 %v4837, %v4839
  %v4841 = vrot.slane %v4831, %v4840
  %v4843 = vunpack.c.l.s4 1966171168
  %v4844 = vunpack.c.0.s8 %v4843
  %v4845 = vlaneseq
  %v4846 = vshrl.u32 %v4845, 7
  %v4847 = vsub.s32 %v4844, %v4846
  %v4848 = vrot.slane %v4832, %v4847
  %v4850 = vunpack.c.l.s4 1966171168
  %v4851 = vunpack.c.0.s8 %v4850
  %v4852 = vlaneseq
  %v4853 = vshrl.u32 %v4852, 7
  %v4854 = vsub.s32 %v4851, %v4853
  %v4855 = vrot.slane %v4833, %v4854
  %v4857 = vunpack.c.l.s4 1966171168
  %v4858 = vunpack.c.0.s8 %v4857
  %v4859 = vlaneseq
  %v4860 = vshrl.u32 %v4859, 7
  %v4861 = vsub.s32 %v4858, %v4860
  %v4862 = vrot.slane %v4834, %v4861
  %v4863 = vcombine.low %v4841, %v4848
  %v4864 = vcombine.low %v4855, %v4862
  %v4866 = vunpack.c.l.s4 1966171168
  %v4867 = vunpack.c.0.s8 %v4866
  %v4868 = vlaneseq
  %v4869 = vshrl.u32 %v4868, 7
  %v4870 = vsub.s32 %v4867, %v4869
  %v4871 = vrot.slane %v4863, %v4870
  %v4873 = vunpack.c.l.s4 1966171168
  %v4874 = vunpack.c.0.s8 %v4873
  %v4875 = vlaneseq
  %v4876 = vshrl.u32 %v4875, 7
  %v4877 = vsub.s32 %v4874, %v4876
  %v4878 = vrot.slane %v4864, %v4877
  %v4879 = vcombine.low %v4871, %v4878
  %v4880 = vcombine.low %v3638, %v3642
  %v4881 = vcombine.low %v3646, %v3650
  %v4882 = vcombine.low %v3654, %v3658
  %v4883 = vcombine.low %v3662, %v3666
  %v4885 = vunpack.c.l.s4 1966171168
  %v4886 = vunpack.c.0.s8 %v4885
  %v4887 = vlaneseq
  %v4888 = vshrl.u32 %v4887, 7
  %v4889 = vsub.s32 %v4886, %v4888
  %v4890 = vrot.slane %v4880, %v4889
  %v4892 = vunpack.c.l.s4 1966171168
  %v4893 = vunpack.c.0.s8 %v4892
  %v4894 = vlaneseq
  %v4895 = vshrl.u32 %v4894, 7
  %v4896 = vsub.s32 %v4893, %v4895
  %v4897 = vrot.slane %v4881, %v4896
  %v4899 = vunpack.c.l.s4 1966171168
  %v4900 = vunpack.c.0.s8 %v4899
  %v4901 = vlaneseq
  %v4902 = vshrl.u32 %v4901, 7
  %v4903 = vsub.s32 %v4900, %v4902
  %v4904 = vrot.slane %v4882, %v4903
  %v4906 = vunpack.c.l.s4 1966171168
  %v4907 = vunpack.c.0.s8 %v4906
  %v4908 = vlaneseq
  %v4909 = vshrl.u32 %v4908, 7
  %v4910 = vsub.s32 %v4907, %v4909
  %v4911 = vrot.slane %v4883, %v4910
  %v4912 = vcombine.low %v4890, %v4897
  %v4913 = vcombine.low %v4904, %v4911
  %v4915 = vunpack.c.l.s4 1966171168
  %v4916 = vunpack.c.0.s8 %v4915
  %v4917 = vlaneseq
  %v4918 = vshrl.u32 %v4917, 7
  %v4919 = vsub.s32 %v4916, %v4918
  %v4920 = vrot.slane %v4912, %v4919
  %v4922 = vunpack.c.l.s4 1966171168
  %v4923 = vunpack.c.0.s8 %v4922
  %v4924 = vlaneseq
  %v4925 = vshrl.u32 %v4924, 7
  %v4926 = vsub.s32 %v4923, %v4925
  %v4927 = vrot.slane %v4913, %v4926
  %v4928 = vcombine.low %v4920, %v4927
  %v4929 = vcombine.low %v3670, %v3674
  %v4930 = vcombine.low %v3678, %v3682
  %v4931 = vcombine.low %v3686, %v3690
  %v4932 = vcombine.low %v3694, %v3698
  %v4934 = vunpack.c.l.s4 1966171168
  %v4935 = vunpack.c.0.s8 %v4934
  %v4936 = vlaneseq
  %v4937 = vshrl.u32 %v4936, 7
  %v4938 = vsub.s32 %v4935, %v4937
  %v4939 = vrot.slane %v4929, %v4938
  %v4941 = vunpack.c.l.s4 1966171168
  %v4942 = vunpack.c.0.s8 %v4941
  %v4943 = vlaneseq
  %v4944 = vshrl.u32 %v4943, 7
  %v4945 = vsub.s32 %v4942, %v4944
  %v4946 = vrot.slane %v4930, %v4945
  %v4948 = vunpack.c.l.s4 1966171168
  %v4949 = vunpack.c.0.s8 %v4948
  %v4950 = vlaneseq
  %v4951 = vshrl.u32 %v4950, 7
  %v4952 = vsub.s32 %v4949, %v4951
  %v4953 = vrot.slane %v4931, %v4952
  %v4955 = vunpack.c.l.s4 1966171168
  %v4956 = vunpack.c.0.s8 %v4955
  %v4957 = vlaneseq
  %v4958 = vshrl.u32 %v4957, 7
  %v4959 = vsub.s32 %v4956, %v4958
  %v4960 = vrot.slane %v4932, %v4959
  %v4961 = vcombine.low %v4939, %v4946
  %v4962 = vcombine.low %v4953, %v4960
  %v4964 = vunpack.c.l.s4 1966171168
  %v4965 = vunpack.c.0.s8 %v4964
  %v4966 = vlaneseq
  %v4967 = vshrl.u32 %v4966, 7
  %v4968 = vsub.s32 %v4965, %v4967
  %v4969 = vrot.slane %v4961, %v4968
  %v4971 = vunpack.c.l.s4 1966171168
  %v4972 = vunpack.c.0.s8 %v4971
  %v4973 = vlaneseq
  %v4974 = vshrl.u32 %v4973, 7
  %v4975 = vsub.s32 %v4972, %v4974
  %v4976 = vrot.slane %v4962, %v4975
  %v4977 = vcombine.low %v4969, %v4976
  %v4978 = vcombine.low %v3702, %v3706
  %v4979 = vcombine.low %v3710, %v3714
  %v4980 = vcombine.low %v3718, %v3722
  %v4981 = vcombine.low %v3726, %v3730
  %v4983 = vunpack.c.l.s4 1966171168
  %v4984 = vunpack.c.0.s8 %v4983
  %v4985 = vlaneseq
  %v4986 = vshrl.u32 %v4985, 7
  %v4987 = vsub.s32 %v4984, %v4986
  %v4988 = vrot.slane %v4978, %v4987
  %v4990 = vunpack.c.l.s4 1966171168
  %v4991 = vunpack.c.0.s8 %v4990
  %v4992 = vlaneseq
  %v4993 = vshrl.u32 %v4992, 7
  %v4994 = vsub.s32 %v4991, %v4993
  %v4995 = vrot.slane %v4979, %v4994
  %v4997 = vunpack.c.l.s4 1966171168
  %v4998 = vunpack.c.0.s8 %v4997
  %v4999 = vlaneseq
  %v5000 = vshrl.u32 %v4999, 7
  %v5001 = vsub.s32 %v4998, %v5000
  %v5002 = vrot.slane %v4980, %v5001
  %v5004 = vunpack.c.l.s4 1966171168
  %v5005 = vunpack.c.0.s8 %v5004
  %v5006 = vlaneseq
  %v5007 = vshrl.u32 %v5006, 7
  %v5008 = vsub.s32 %v5005, %v5007
  %v5009 = vrot.slane %v4981, %v5008
  %v5010 = vcombine.low %v4988, %v4995
  %v5011 = vcombine.low %v5002, %v5009
  %v5013 = vunpack.c.l.s4 1966171168
  %v5014 = vunpack.c.0.s8 %v5013
  %v5015 = vlaneseq
  %v5016 = vshrl.u32 %v5015, 7
  %v5017 = vsub.s32 %v5014, %v5016
  %v5018 = vrot.slane %v5010, %v5017
  %v5020 = vunpack.c.l.s4 1966171168
  %v5021 = vunpack.c.0.s8 %v5020
  %v5022 = vlaneseq
  %v5023 = vshrl.u32 %v5022, 7
  %v5024 = vsub.s32 %v5021, %v5023
  %v5025 = vrot.slane %v5011, %v5024
  %v5026 = vcombine.low %v5018, %v5025
  %v5027 = vcombine.low %v3734, %v3738
  %v5028 = vcombine.low %v3742, %v3746
  %v5029 = vcombine.low %v3750, %v3754
  %v5030 = vcombine.low %v3758, %v3762
  %v5032 = vunpack.c.l.s4 1966171168
  %v5033 = vunpack.c.0.s8 %v5032
  %v5034 = vlaneseq
  %v5035 = vshrl.u32 %v5034, 7
  %v5036 = vsub.s32 %v5033, %v5035
  %v5037 = vrot.slane %v5027, %v5036
  %v5039 = vunpack.c.l.s4 1966171168
  %v5040 = vunpack.c.0.s8 %v5039
  %v5041 = vlaneseq
  %v5042 = vshrl.u32 %v5041, 7
  %v5043 = vsub.s32 %v5040, %v5042
  %v5044 = vrot.slane %v5028, %v5043
  %v5046 = vunpack.c.l.s4 1966171168
  %v5047 = vunpack.c.0.s8 %v5046
  %v5048 = vlaneseq
  %v5049 = vshrl.u32 %v5048, 7
  %v5050 = vsub.s32 %v5047, %v5049
  %v5051 = vrot.slane %v5029, %v5050
  %v5053 = vunpack.c.l.s4 1966171168
  %v5054 = vunpack.c.0.s8 %v5053
  %v5055 = vlaneseq
  %v5056 = vshrl.u32 %v5055, 7
  %v5057 = vsub.s32 %v5054, %v5056
  %v5058 = vrot.slane %v5030, %v5057
  %v5059 = vcombine.low %v5037, %v5044
  %v5060 = vcombine.low %v5051, %v5058
  %v5062 = vunpack.c.l.s4 1966171168
  %v5063 = vunpack.c.0.s8 %v5062
  %v5064 = vlaneseq
  %v5065 = vshrl.u32 %v5064, 7
  %v5066 = vsub.s32 %v5063, %v5065
  %v5067 = vrot.slane %v5059, %v5066
  %v5069 = vunpack.c.l.s4 1966171168
  %v5070 = vunpack.c.0.s8 %v5069
  %v5071 = vlaneseq
  %v5072 = vshrl.u32 %v5071, 7
  %v5073 = vsub.s32 %v5070, %v5072
  %v5074 = vrot.slane %v5060, %v5073
  %v5075 = vcombine.low %v5067, %v5074
  %v5076 = vcombine.low %v3766, %v3770
  %v5077 = vcombine.low %v3774, %v3778
  %v5078 = vcombine.low %v3782, %v3786
  %v5079 = vcombine.low %v3790, %v3794
  %v5081 = vunpack.c.l.s4 1966171168
  %v5082 = vunpack.c.0.s8 %v5081
  %v5083 = vlaneseq
  %v5084 = vshrl.u32 %v5083, 7
  %v5085 = vsub.s32 %v5082, %v5084
  %v5086 = vrot.slane %v5076, %v5085
  %v5088 = vunpack.c.l.s4 1966171168
  %v5089 = vunpack.c.0.s8 %v5088
  %v5090 = vlaneseq
  %v5091 = vshrl.u32 %v5090, 7
  %v5092 = vsub.s32 %v5089, %v5091
  %v5093 = vrot.slane %v5077, %v5092
  %v5095 = vunpack.c.l.s4 1966171168
  %v5096 = vunpack.c.0.s8 %v5095
  %v5097 = vlaneseq
  %v5098 = vshrl.u32 %v5097, 7
  %v5099 = vsub.s32 %v5096, %v5098
  %v5100 = vrot.slane %v5078, %v5099
  %v5102 = vunpack.c.l.s4 1966171168
  %v5103 = vunpack.c.0.s8 %v5102
  %v5104 = vlaneseq
  %v5105 = vshrl.u32 %v5104, 7
  %v5106 = vsub.s32 %v5103, %v5105
  %v5107 = vrot.slane %v5079, %v5106
  %v5108 = vcombine.low %v5086, %v5093
  %v5109 = vcombine.low %v5100, %v5107
  %v5111 = vunpack.c.l.s4 1966171168
  %v5112 = vunpack.c.0.s8 %v5111
  %v5113 = vlaneseq
  %v5114 = vshrl.u32 %v5113, 7
  %v5115 = vsub.s32 %v5112, %v5114
  %v5116 = vrot.slane %v5108, %v5115
  %v5118 = vunpack.c.l.s4 1966171168
  %v5119 = vunpack.c.0.s8 %v5118
  %v5120 = vlaneseq
  %v5121 = vshrl.u32 %v5120, 7
  %v5122 = vsub.s32 %v5119, %v5121
  %v5123 = vrot.slane %v5109, %v5122
  %v5124 = vcombine.low %v5116, %v5123
  %v5125 = vcombine.low %v3798, %v3802
  %v5126 = vcombine.low %v3806, %v3810
  %v5127 = vcombine.low %v3814, %v3818
  %v5128 = vcombine.low %v3822, %v3826
  %v5130 = vunpack.c.l.s4 1966171168
  %v5131 = vunpack.c.0.s8 %v5130
  %v5132 = vlaneseq
  %v5133 = vshrl.u32 %v5132, 7
  %v5134 = vsub.s32 %v5131, %v5133
  %v5135 = vrot.slane %v5125, %v5134
  %v5137 = vunpack.c.l.s4 1966171168
  %v5138 = vunpack.c.0.s8 %v5137
  %v5139 = vlaneseq
  %v5140 = vshrl.u32 %v5139, 7
  %v5141 = vsub.s32 %v5138, %v5140
  %v5142 = vrot.slane %v5126, %v5141
  %v5144 = vunpack.c.l.s4 1966171168
  %v5145 = vunpack.c.0.s8 %v5144
  %v5146 = vlaneseq
  %v5147 = vshrl.u32 %v5146, 7
  %v5148 = vsub.s32 %v5145, %v5147
  %v5149 = vrot.slane %v5127, %v5148
  %v5151 = vunpack.c.l.s4 1966171168
  %v5152 = vunpack.c.0.s8 %v5151
  %v5153 = vlaneseq
  %v5154 = vshrl.u32 %v5153, 7
  %v5155 = vsub.s32 %v5152, %v5154
  %v5156 = vrot.slane %v5128, %v5155
  %v5157 = vcombine.low %v5135, %v5142
  %v5158 = vcombine.low %v5149, %v5156
  %v5160 = vunpack.c.l.s4 1966171168
  %v5161 = vunpack.c.0.s8 %v5160
  %v5162 = vlaneseq
  %v5163 = vshrl.u32 %v5162, 7
  %v5164 = vsub.s32 %v5161, %v5163
  %v5165 = vrot.slane %v5157, %v5164
  %v5167 = vunpack.c.l.s4 1966171168
  %v5168 = vunpack.c.0.s8 %v5167
  %v5169 = vlaneseq
  %v5170 = vshrl.u32 %v5169, 7
  %v5171 = vsub.s32 %v5168, %v5170
  %v5172 = vrot.slane %v5158, %v5171
  %v5173 = vcombine.low %v5165, %v5172
  %v5174 = vcombine.low %v3830, %v3834
  %v5175 = vcombine.low %v3838, %v3842
  %v5176 = vcombine.low %v3846, %v3850
  %v5177 = vcombine.low %v3854, %v3858
  %v5179 = vunpack.c.l.s4 1966171168
  %v5180 = vunpack.c.0.s8 %v5179
  %v5181 = vlaneseq
  %v5182 = vshrl.u32 %v5181, 7
  %v5183 = vsub.s32 %v5180, %v5182
  %v5184 = vrot.slane %v5174, %v5183
  %v5186 = vunpack.c.l.s4 1966171168
  %v5187 = vunpack.c.0.s8 %v5186
  %v5188 = vlaneseq
  %v5189 = vshrl.u32 %v5188, 7
  %v5190 = vsub.s32 %v5187, %v5189
  %v5191 = vrot.slane %v5175, %v5190
  %v5193 = vunpack.c.l.s4 1966171168
  %v5194 = vunpack.c.0.s8 %v5193
  %v5195 = vlaneseq
  %v5196 = vshrl.u32 %v5195, 7
  %v5197 = vsub.s32 %v5194, %v5196
  %v5198 = vrot.slane %v5176, %v5197
  %v5200 = vunpack.c.l.s4 1966171168
  %v5201 = vunpack.c.0.s8 %v5200
  %v5202 = vlaneseq
  %v5203 = vshrl.u32 %v5202, 7
  %v5204 = vsub.s32 %v5201, %v5203
  %v5205 = vrot.slane %v5177, %v5204
  %v5206 = vcombine.low %v5184, %v5191
  %v5207 = vcombine.low %v5198, %v5205
  %v5209 = vunpack.c.l.s4 1966171168
  %v5210 = vunpack.c.0.s8 %v5209
  %v5211 = vlaneseq
  %v5212 = vshrl.u32 %v5211, 7
  %v5213 = vsub.s32 %v5210, %v5212
  %v5214 = vrot.slane %v5206, %v5213
  %v5216 = vunpack.c.l.s4 1966171168
  %v5217 = vunpack.c.0.s8 %v5216
  %v5218 = vlaneseq
  %v5219 = vshrl.u32 %v5218, 7
  %v5220 = vsub.s32 %v5217, %v5219
  %v5221 = vrot.slane %v5207, %v5220
  %v5222 = vcombine.low %v5214, %v5221
  %v5223 = vcombine.low %v3862, %v3866
  %v5224 = vcombine.low %v3870, %v3874
  %v5225 = vcombine.low %v3878, %v3882
  %v5226 = vcombine.low %v3886, %v3890
  %v5228 = vunpack.c.l.s4 1966171168
  %v5229 = vunpack.c.0.s8 %v5228
  %v5230 = vlaneseq
  %v5231 = vshrl.u32 %v5230, 7
  %v5232 = vsub.s32 %v5229, %v5231
  %v5233 = vrot.slane %v5223, %v5232
  %v5235 = vunpack.c.l.s4 1966171168
  %v5236 = vunpack.c.0.s8 %v5235
  %v5237 = vlaneseq
  %v5238 = vshrl.u32 %v5237, 7
  %v5239 = vsub.s32 %v5236, %v5238
  %v5240 = vrot.slane %v5224, %v5239
  %v5242 = vunpack.c.l.s4 1966171168
  %v5243 = vunpack.c.0.s8 %v5242
  %v5244 = vlaneseq
  %v5245 = vshrl.u32 %v5244, 7
  %v5246 = vsub.s32 %v5243, %v5245
  %v5247 = vrot.slane %v5225, %v5246
  %v5249 = vunpack.c.l.s4 1966171168
  %v5250 = vunpack.c.0.s8 %v5249
  %v5251 = vlaneseq
  %v5252 = vshrl.u32 %v5251, 7
  %v5253 = vsub.s32 %v5250, %v5252
  %v5254 = vrot.slane %v5226, %v5253
  %v5255 = vcombine.low %v5233, %v5240
  %v5256 = vcombine.low %v5247, %v5254
  %v5258 = vunpack.c.l.s4 1966171168
  %v5259 = vunpack.c.0.s8 %v5258
  %v5260 = vlaneseq
  %v5261 = vshrl.u32 %v5260, 7
  %v5262 = vsub.s32 %v5259, %v5261
  %v5263 = vrot.slane %v5255, %v5262
  %v5265 = vunpack.c.l.s4 1966171168
  %v5266 = vunpack.c.0.s8 %v5265
  %v5267 = vlaneseq
  %v5268 = vshrl.u32 %v5267, 7
  %v5269 = vsub.s32 %v5266, %v5268
  %v5270 = vrot.slane %v5256, %v5269
  %v5271 = vcombine.low %v5263, %v5270
  %v5272 = vcombine.low %v3894, %v3898
  %v5273 = vcombine.low %v3902, %v3906
  %v5274 = vcombine.low %v3910, %v3914
  %v5275 = vcombine.low %v3918, %v3922
  %v5277 = vunpack.c.l.s4 1966171168
  %v5278 = vunpack.c.0.s8 %v5277
  %v5279 = vlaneseq
  %v5280 = vshrl.u32 %v5279, 7
  %v5281 = vsub.s32 %v5278, %v5280
  %v5282 = vrot.slane %v5272, %v5281
  %v5284 = vunpack.c.l.s4 1966171168
  %v5285 = vunpack.c.0.s8 %v5284
  %v5286 = vlaneseq
  %v5287 = vshrl.u32 %v5286, 7
  %v5288 = vsub.s32 %v5285, %v5287
  %v5289 = vrot.slane %v5273, %v5288
  %v5291 = vunpack.c.l.s4 1966171168
  %v5292 = vunpack.c.0.s8 %v5291
  %v5293 = vlaneseq
  %v5294 = vshrl.u32 %v5293, 7
  %v5295 = vsub.s32 %v5292, %v5294
  %v5296 = vrot.slane %v5274, %v5295
  %v5298 = vunpack.c.l.s4 1966171168
  %v5299 = vunpack.c.0.s8 %v5298
  %v5300 = vlaneseq
  %v5301 = vshrl.u32 %v5300, 7
  %v5302 = vsub.s32 %v5299, %v5301
  %v5303 = vrot.slane %v5275, %v5302
  %v5304 = vcombine.low %v5282, %v5289
  %v5305 = vcombine.low %v5296, %v5303
  %v5307 = vunpack.c.l.s4 1966171168
  %v5308 = vunpack.c.0.s8 %v5307
  %v5309 = vlaneseq
  %v5310 = vshrl.u32 %v5309, 7
  %v5311 = vsub.s32 %v5308, %v5310
  %v5312 = vrot.slane %v5304, %v5311
  %v5314 = vunpack.c.l.s4 1966171168
  %v5315 = vunpack.c.0.s8 %v5314
  %v5316 = vlaneseq
  %v5317 = vshrl.u32 %v5316, 7
  %v5318 = vsub.s32 %v5315, %v5317
  %v5319 = vrot.slane %v5305, %v5318
  %v5320 = vcombine.low %v5312, %v5319
  %v5321 = vcombine.low %v3926, %v3930
  %v5322 = vcombine.low %v3934, %v3938
  %v5323 = vcombine.low %v3942, %v3946
  %v5324 = vcombine.low %v3950, %v3954
  %v5326 = vunpack.c.l.s4 1966171168
  %v5327 = vunpack.c.0.s8 %v5326
  %v5328 = vlaneseq
  %v5329 = vshrl.u32 %v5328, 7
  %v5330 = vsub.s32 %v5327, %v5329
  %v5331 = vrot.slane %v5321, %v5330
  %v5333 = vunpack.c.l.s4 1966171168
  %v5334 = vunpack.c.0.s8 %v5333
  %v5335 = vlaneseq
  %v5336 = vshrl.u32 %v5335, 7
  %v5337 = vsub.s32 %v5334, %v5336
  %v5338 = vrot.slane %v5322, %v5337
  %v5340 = vunpack.c.l.s4 1966171168
  %v5341 = vunpack.c.0.s8 %v5340
  %v5342 = vlaneseq
  %v5343 = vshrl.u32 %v5342, 7
  %v5344 = vsub.s32 %v5341, %v5343
  %v5345 = vrot.slane %v5323, %v5344
  %v5347 = vunpack.c.l.s4 1966171168
  %v5348 = vunpack.c.0.s8 %v5347
  %v5349 = vlaneseq
  %v5350 = vshrl.u32 %v5349, 7
  %v5351 = vsub.s32 %v5348, %v5350
  %v5352 = vrot.slane %v5324, %v5351
  %v5353 = vcombine.low %v5331, %v5338
  %v5354 = vcombine.low %v5345, %v5352
  %v5356 = vunpack.c.l.s4 1966171168
  %v5357 = vunpack.c.0.s8 %v5356
  %v5358 = vlaneseq
  %v5359 = vshrl.u32 %v5358, 7
  %v5360 = vsub.s32 %v5357, %v5359
  %v5361 = vrot.slane %v5353, %v5360
  %v5363 = vunpack.c.l.s4 1966171168
  %v5364 = vunpack.c.0.s8 %v5363
  %v5365 = vlaneseq
  %v5366 = vshrl.u32 %v5365, 7
  %v5367 = vsub.s32 %v5364, %v5366
  %v5368 = vrot.slane %v5354, %v5367
  %v5369 = vcombine.low %v5361, %v5368
  %v5370 = vcombine.low %v3958, %v3962
  %v5371 = vcombine.low %v3966, %v3970
  %v5372 = vcombine.low %v3974, %v3978
  %v5373 = vcombine.low %v3982, %v3986
  %v5375 = vunpack.c.l.s4 1966171168
  %v5376 = vunpack.c.0.s8 %v5375
  %v5377 = vlaneseq
  %v5378 = vshrl.u32 %v5377, 7
  %v5379 = vsub.s32 %v5376, %v5378
  %v5380 = vrot.slane %v5370, %v5379
  %v5382 = vunpack.c.l.s4 1966171168
  %v5383 = vunpack.c.0.s8 %v5382
  %v5384 = vlaneseq
  %v5385 = vshrl.u32 %v5384, 7
  %v5386 = vsub.s32 %v5383, %v5385
  %v5387 = vrot.slane %v5371, %v5386
  %v5389 = vunpack.c.l.s4 1966171168
  %v5390 = vunpack.c.0.s8 %v5389
  %v5391 = vlaneseq
  %v5392 = vshrl.u32 %v5391, 7
  %v5393 = vsub.s32 %v5390, %v5392
  %v5394 = vrot.slane %v5372, %v5393
  %v5396 = vunpack.c.l.s4 1966171168
  %v5397 = vunpack.c.0.s8 %v5396
  %v5398 = vlaneseq
  %v5399 = vshrl.u32 %v5398, 7
  %v5400 = vsub.s32 %v5397, %v5399
  %v5401 = vrot.slane %v5373, %v5400
  %v5402 = vcombine.low %v5380, %v5387
  %v5403 = vcombine.low %v5394, %v5401
  %v5405 = vunpack.c.l.s4 1966171168
  %v5406 = vunpack.c.0.s8 %v5405
  %v5407 = vlaneseq
  %v5408 = vshrl.u32 %v5407, 7
  %v5409 = vsub.s32 %v5406, %v5408
  %v5410 = vrot.slane %v5402, %v5409
  %v5412 = vunpack.c.l.s4 1966171168
  %v5413 = vunpack.c.0.s8 %v5412
  %v5414 = vlaneseq
  %v5415 = vshrl.u32 %v5414, 7
  %v5416 = vsub.s32 %v5413, %v5415
  %v5417 = vrot.slane %v5403, %v5416
  %v5418 = vcombine.low %v5410, %v5417
  %v5419 = vcombine.low %v3990, %v3994
  %v5420 = vcombine.low %v3998, %v4002
  %v5421 = vcombine.low %v4006, %v4010
  %v5422 = vcombine.low %v4014, %v4018
  %v5424 = vunpack.c.l.s4 1966171168
  %v5425 = vunpack.c.0.s8 %v5424
  %v5426 = vlaneseq
  %v5427 = vshrl.u32 %v5426, 7
  %v5428 = vsub.s32 %v5425, %v5427
  %v5429 = vrot.slane %v5419, %v5428
  %v5431 = vunpack.c.l.s4 1966171168
  %v5432 = vunpack.c.0.s8 %v5431
  %v5433 = vlaneseq
  %v5434 = vshrl.u32 %v5433, 7
  %v5435 = vsub.s32 %v5432, %v5434
  %v5436 = vrot.slane %v5420, %v5435
  %v5438 = vunpack.c.l.s4 1966171168
  %v5439 = vunpack.c.0.s8 %v5438
  %v5440 = vlaneseq
  %v5441 = vshrl.u32 %v5440, 7
  %v5442 = vsub.s32 %v5439, %v5441
  %v5443 = vrot.slane %v5421, %v5442
  %v5445 = vunpack.c.l.s4 1966171168
  %v5446 = vunpack.c.0.s8 %v5445
  %v5447 = vlaneseq
  %v5448 = vshrl.u32 %v5447, 7
  %v5449 = vsub.s32 %v5446, %v5448
  %v5450 = vrot.slane %v5422, %v5449
  %v5451 = vcombine.low %v5429, %v5436
  %v5452 = vcombine.low %v5443, %v5450
  %v5454 = vunpack.c.l.s4 1966171168
  %v5455 = vunpack.c.0.s8 %v5454
  %v5456 = vlaneseq
  %v5457 = vshrl.u32 %v5456, 7
  %v5458 = vsub.s32 %v5455, %v5457
  %v5459 = vrot.slane %v5451, %v5458
  %v5461 = vunpack.c.l.s4 1966171168
  %v5462 = vunpack.c.0.s8 %v5461
  %v5463 = vlaneseq
  %v5464 = vshrl.u32 %v5463, 7
  %v5465 = vsub.s32 %v5462, %v5464
  %v5466 = vrot.slane %v5452, %v5465
  %v5467 = vcombine.low %v5459, %v5466
  %v5468 = vcombine.low %v4022, %v4026
  %v5469 = vcombine.low %v4030, %v4034
  %v5470 = vcombine.low %v4038, %v4042
  %v5471 = vcombine.low %v4046, %v4050
  %v5473 = vunpack.c.l.s4 1966171168
  %v5474 = vunpack.c.0.s8 %v5473
  %v5475 = vlaneseq
  %v5476 = vshrl.u32 %v5475, 7
  %v5477 = vsub.s32 %v5474, %v5476
  %v5478 = vrot.slane %v5468, %v5477
  %v5480 = vunpack.c.l.s4 1966171168
  %v5481 = vunpack.c.0.s8 %v5480
  %v5482 = vlaneseq
  %v5483 = vshrl.u32 %v5482, 7
  %v5484 = vsub.s32 %v5481, %v5483
  %v5485 = vrot.slane %v5469, %v5484
  %v5487 = vunpack.c.l.s4 1966171168
  %v5488 = vunpack.c.0.s8 %v5487
  %v5489 = vlaneseq
  %v5490 = vshrl.u32 %v5489, 7
  %v5491 = vsub.s32 %v5488, %v5490
  %v5492 = vrot.slane %v5470, %v5491
  %v5494 = vunpack.c.l.s4 1966171168
  %v5495 = vunpack.c.0.s8 %v5494
  %v5496 = vlaneseq
  %v5497 = vshrl.u32 %v5496, 7
  %v5498 = vsub.s32 %v5495, %v5497
  %v5499 = vrot.slane %v5471, %v5498
  %v5500 = vcombine.low %v5478, %v5485
  %v5501 = vcombine.low %v5492, %v5499
  %v5503 = vunpack.c.l.s4 1966171168
  %v5504 = vunpack.c.0.s8 %v5503
  %v5505 = vlaneseq
  %v5506 = vshrl.u32 %v5505, 7
  %v5507 = vsub.s32 %v5504, %v5506
  %v5508 = vrot.slane %v5500, %v5507
  %v5510 = vunpack.c.l.s4 1966171168
  %v5511 = vunpack.c.0.s8 %v5510
  %v5512 = vlaneseq
  %v5513 = vshrl.u32 %v5512, 7
  %v5514 = vsub.s32 %v5511, %v5513
  %v5515 = vrot.slane %v5501, %v5514
  %v5516 = vcombine.low %v5508, %v5515
  %v5517 = vcombine.low %v4054, %v4058
  %v5518 = vcombine.low %v4062, %v4066
  %v5519 = vcombine.low %v4070, %v4074
  %v5520 = vcombine.low %v4078, %v4082
  %v5522 = vunpack.c.l.s4 1966171168
  %v5523 = vunpack.c.0.s8 %v5522
  %v5524 = vlaneseq
  %v5525 = vshrl.u32 %v5524, 7
  %v5526 = vsub.s32 %v5523, %v5525
  %v5527 = vrot.slane %v5517, %v5526
  %v5529 = vunpack.c.l.s4 1966171168
  %v5530 = vunpack.c.0.s8 %v5529
  %v5531 = vlaneseq
  %v5532 = vshrl.u32 %v5531, 7
  %v5533 = vsub.s32 %v5530, %v5532
  %v5534 = vrot.slane %v5518, %v5533
  %v5536 = vunpack.c.l.s4 1966171168
  %v5537 = vunpack.c.0.s8 %v5536
  %v5538 = vlaneseq
  %v5539 = vshrl.u32 %v5538, 7
  %v5540 = vsub.s32 %v5537, %v5539
  %v5541 = vrot.slane %v5519, %v5540
  %v5543 = vunpack.c.l.s4 1966171168
  %v5544 = vunpack.c.0.s8 %v5543
  %v5545 = vlaneseq
  %v5546 = vshrl.u32 %v5545, 7
  %v5547 = vsub.s32 %v5544, %v5546
  %v5548 = vrot.slane %v5520, %v5547
  %v5549 = vcombine.low %v5527, %v5534
  %v5550 = vcombine.low %v5541, %v5548
  %v5552 = vunpack.c.l.s4 1966171168
  %v5553 = vunpack.c.0.s8 %v5552
  %v5554 = vlaneseq
  %v5555 = vshrl.u32 %v5554, 7
  %v5556 = vsub.s32 %v5553, %v5555
  %v5557 = vrot.slane %v5549, %v5556
  %v5559 = vunpack.c.l.s4 1966171168
  %v5560 = vunpack.c.0.s8 %v5559
  %v5561 = vlaneseq
  %v5562 = vshrl.u32 %v5561, 7
  %v5563 = vsub.s32 %v5560, %v5562
  %v5564 = vrot.slane %v5550, %v5563
  %v5565 = vcombine.low %v5557, %v5564
  %v5566 = vcombine.low %v4086, %v4090
  %v5567 = vcombine.low %v4094, %v4098
  %v5568 = vcombine.low %v4102, %v4106
  %v5569 = vcombine.low %v4110, %v4114
  %v5571 = vunpack.c.l.s4 1966171168
  %v5572 = vunpack.c.0.s8 %v5571
  %v5573 = vlaneseq
  %v5574 = vshrl.u32 %v5573, 7
  %v5575 = vsub.s32 %v5572, %v5574
  %v5576 = vrot.slane %v5566, %v5575
  %v5578 = vunpack.c.l.s4 1966171168
  %v5579 = vunpack.c.0.s8 %v5578
  %v5580 = vlaneseq
  %v5581 = vshrl.u32 %v5580, 7
  %v5582 = vsub.s32 %v5579, %v5581
  %v5583 = vrot.slane %v5567, %v5582
  %v5585 = vunpack.c.l.s4 1966171168
  %v5586 = vunpack.c.0.s8 %v5585
  %v5587 = vlaneseq
  %v5588 = vshrl.u32 %v5587, 7
  %v5589 = vsub.s32 %v5586, %v5588
  %v5590 = vrot.slane %v5568, %v5589
  %v5592 = vunpack.c.l.s4 1966171168
  %v5593 = vunpack.c.0.s8 %v5592
  %v5594 = vlaneseq
  %v5595 = vshrl.u32 %v5594, 7
  %v5596 = vsub.s32 %v5593, %v5595
  %v5597 = vrot.slane %v5569, %v5596
  %v5598 = vcombine.low %v5576, %v5583
  %v5599 = vcombine.low %v5590, %v5597
  %v5601 = vunpack.c.l.s4 1966171168
  %v5602 = vunpack.c.0.s8 %v5601
  %v5603 = vlaneseq
  %v5604 = vshrl.u32 %v5603, 7
  %v5605 = vsub.s32 %v5602, %v5604
  %v5606 = vrot.slane %v5598, %v5605
  %v5608 = vunpack.c.l.s4 1966171168
  %v5609 = vunpack.c.0.s8 %v5608
  %v5610 = vlaneseq
  %v5611 = vshrl.u32 %v5610, 7
  %v5612 = vsub.s32 %v5609, %v5611
  %v5613 = vrot.slane %v5599, %v5612
  %v5614 = vcombine.low %v5606, %v5613
  %v5615 = vcombine.low %v4118, %v4122
  %v5616 = vcombine.low %v4126, %v4130
  %v5617 = vcombine.low %v4134, %v4138
  %v5618 = vcombine.low %v4142, %v4146
  %v5620 = vunpack.c.l.s4 1966171168
  %v5621 = vunpack.c.0.s8 %v5620
  %v5622 = vlaneseq
  %v5623 = vshrl.u32 %v5622, 7
  %v5624 = vsub.s32 %v5621, %v5623
  %v5625 = vrot.slane %v5615, %v5624
  %v5627 = vunpack.c.l.s4 1966171168
  %v5628 = vunpack.c.0.s8 %v5627
  %v5629 = vlaneseq
  %v5630 = vshrl.u32 %v5629, 7
  %v5631 = vsub.s32 %v5628, %v5630
  %v5632 = vrot.slane %v5616, %v5631
  %v5634 = vunpack.c.l.s4 1966171168
  %v5635 = vunpack.c.0.s8 %v5634
  %v5636 = vlaneseq
  %v5637 = vshrl.u32 %v5636, 7
  %v5638 = vsub.s32 %v5635, %v5637
  %v5639 = vrot.slane %v5617, %v5638
  %v5641 = vunpack.c.l.s4 1966171168
  %v5642 = vunpack.c.0.s8 %v5641
  %v5643 = vlaneseq
  %v5644 = vshrl.u32 %v5643, 7
  %v5645 = vsub.s32 %v5642, %v5644
  %v5646 = vrot.slane %v5618, %v5645
  %v5647 = vcombine.low %v5625, %v5632
  %v5648 = vcombine.low %v5639, %v5646
  %v5650 = vunpack.c.l.s4 1966171168
  %v5651 = vunpack.c.0.s8 %v5650
  %v5652 = vlaneseq
  %v5653 = vshrl.u32 %v5652, 7
  %v5654 = vsub.s32 %v5651, %v5653
  %v5655 = vrot.slane %v5647, %v5654
  %v5657 = vunpack.c.l.s4 1966171168
  %v5658 = vunpack.c.0.s8 %v5657
  %v5659 = vlaneseq
  %v5660 = vshrl.u32 %v5659, 7
  %v5661 = vsub.s32 %v5658, %v5660
  %v5662 = vrot.slane %v5648, %v5661
  %v5663 = vcombine.low %v5655, %v5662
  %v5664 = vcombine.low %v4150, %v4154
  %v5665 = vcombine.low %v4158, %v4162
  %v5666 = vcombine.low %v4166, %v4170
  %v5667 = vcombine.low %v4174, %v4178
  %v5669 = vunpack.c.l.s4 1966171168
  %v5670 = vunpack.c.0.s8 %v5669
  %v5671 = vlaneseq
  %v5672 = vshrl.u32 %v5671, 7
  %v5673 = vsub.s32 %v5670, %v5672
  %v5674 = vrot.slane %v5664, %v5673
  %v5676 = vunpack.c.l.s4 1966171168
  %v5677 = vunpack.c.0.s8 %v5676
  %v5678 = vlaneseq
  %v5679 = vshrl.u32 %v5678, 7
  %v5680 = vsub.s32 %v5677, %v5679
  %v5681 = vrot.slane %v5665, %v5680
  %v5683 = vunpack.c.l.s4 1966171168
  %v5684 = vunpack.c.0.s8 %v5683
  %v5685 = vlaneseq
  %v5686 = vshrl.u32 %v5685, 7
  %v5687 = vsub.s32 %v5684, %v5686
  %v5688 = vrot.slane %v5666, %v5687
  %v5690 = vunpack.c.l.s4 1966171168
  %v5691 = vunpack.c.0.s8 %v5690
  %v5692 = vlaneseq
  %v5693 = vshrl.u32 %v5692, 7
  %v5694 = vsub.s32 %v5691, %v5693
  %v5695 = vrot.slane %v5667, %v5694
  %v5696 = vcombine.low %v5674, %v5681
  %v5697 = vcombine.low %v5688, %v5695
  %v5699 = vunpack.c.l.s4 1966171168
  %v5700 = vunpack.c.0.s8 %v5699
  %v5701 = vlaneseq
  %v5702 = vshrl.u32 %v5701, 7
  %v5703 = vsub.s32 %v5700, %v5702
  %v5704 = vrot.slane %v5696, %v5703
  %v5706 = vunpack.c.l.s4 1966171168
  %v5707 = vunpack.c.0.s8 %v5706
  %v5708 = vlaneseq
  %v5709 = vshrl.u32 %v5708, 7
  %v5710 = vsub.s32 %v5707, %v5709
  %v5711 = vrot.slane %v5697, %v5710
  %v5712 = vcombine.low %v5704, %v5711
  %v5713 = vcombine.low %v4182, %v4186
  %v5714 = vcombine.low %v4190, %v4194
  %v5715 = vcombine.low %v4198, %v4202
  %v5716 = vcombine.low %v4206, %v4210
  %v5718 = vunpack.c.l.s4 1966171168
  %v5719 = vunpack.c.0.s8 %v5718
  %v5720 = vlaneseq
  %v5721 = vshrl.u32 %v5720, 7
  %v5722 = vsub.s32 %v5719, %v5721
  %v5723 = vrot.slane %v5713, %v5722
  %v5725 = vunpack.c.l.s4 1966171168
  %v5726 = vunpack.c.0.s8 %v5725
  %v5727 = vlaneseq
  %v5728 = vshrl.u32 %v5727, 7
  %v5729 = vsub.s32 %v5726, %v5728
  %v5730 = vrot.slane %v5714, %v5729
  %v5732 = vunpack.c.l.s4 1966171168
  %v5733 = vunpack.c.0.s8 %v5732
  %v5734 = vlaneseq
  %v5735 = vshrl.u32 %v5734, 7
  %v5736 = vsub.s32 %v5733, %v5735
  %v5737 = vrot.slane %v5715, %v5736
  %v5739 = vunpack.c.l.s4 1966171168
  %v5740 = vunpack.c.0.s8 %v5739
  %v5741 = vlaneseq
  %v5742 = vshrl.u32 %v5741, 7
  %v5743 = vsub.s32 %v5740, %v5742
  %v5744 = vrot.slane %v5716, %v5743
  %v5745 = vcombine.low %v5723, %v5730
  %v5746 = vcombine.low %v5737, %v5744
  %v5748 = vunpack.c.l.s4 1966171168
  %v5749 = vunpack.c.0.s8 %v5748
  %v5750 = vlaneseq
  %v5751 = vshrl.u32 %v5750, 7
  %v5752 = vsub.s32 %v5749, %v5751
  %v5753 = vrot.slane %v5745, %v5752
  %v5755 = vunpack.c.l.s4 1966171168
  %v5756 = vunpack.c.0.s8 %v5755
  %v5757 = vlaneseq
  %v5758 = vshrl.u32 %v5757, 7
  %v5759 = vsub.s32 %v5756, %v5758
  %v5760 = vrot.slane %v5746, %v5759
  %v5761 = vcombine.low %v5753, %v5760
  %v5762 = vcombine.low %v4214, %v4218
  %v5763 = vcombine.low %v4222, %v4226
  %v5764 = vcombine.low %v4230, %v4234
  %v5765 = vcombine.low %v4238, %v4242
  %v5767 = vunpack.c.l.s4 1966171168
  %v5768 = vunpack.c.0.s8 %v5767
  %v5769 = vlaneseq
  %v5770 = vshrl.u32 %v5769, 7
  %v5771 = vsub.s32 %v5768, %v5770
  %v5772 = vrot.slane %v5762, %v5771
  %v5774 = vunpack.c.l.s4 1966171168
  %v5775 = vunpack.c.0.s8 %v5774
  %v5776 = vlaneseq
  %v5777 = vshrl.u32 %v5776, 7
  %v5778 = vsub.s32 %v5775, %v5777
  %v5779 = vrot.slane %v5763, %v5778
  %v5781 = vunpack.c.l.s4 1966171168
  %v5782 = vunpack.c.0.s8 %v5781
  %v5783 = vlaneseq
  %v5784 = vshrl.u32 %v5783, 7
  %v5785 = vsub.s32 %v5782, %v5784
  %v5786 = vrot.slane %v5764, %v5785
  %v5788 = vunpack.c.l.s4 1966171168
  %v5789 = vunpack.c.0.s8 %v5788
  %v5790 = vlaneseq
  %v5791 = vshrl.u32 %v5790, 7
  %v5792 = vsub.s32 %v5789, %v5791
  %v5793 = vrot.slane %v5765, %v5792
  %v5794 = vcombine.low %v5772, %v5779
  %v5795 = vcombine.low %v5786, %v5793
  %v5797 = vunpack.c.l.s4 1966171168
  %v5798 = vunpack.c.0.s8 %v5797
  %v5799 = vlaneseq
  %v5800 = vshrl.u32 %v5799, 7
  %v5801 = vsub.s32 %v5798, %v5800
  %v5802 = vrot.slane %v5794, %v5801
  %v5804 = vunpack.c.l.s4 1966171168
  %v5805 = vunpack.c.0.s8 %v5804
  %v5806 = vlaneseq
  %v5807 = vshrl.u32 %v5806, 7
  %v5808 = vsub.s32 %v5805, %v5807
  %v5809 = vrot.slane %v5795, %v5808
  %v5810 = vcombine.low %v5802, %v5809
  %5811 = vset.pattern.permute.xlu0 0
  %5812 = vperm.xlu0 %5811, %v4291
  %v5813 = vpop.permute.xlu0 %5812
  %5814 = vset.pattern.permute.xlu0 0
  %5815 = vperm.xlu0 %5814, %v4340
  %v5816 = vpop.permute.xlu0 %5815
  %5817 = vset.pattern.permute.xlu0 0
  %5818 = vperm.xlu0 %5817, %v4389
  %v5819 = vpop.permute.xlu0 %5818
  %5820 = vset.pattern.permute.xlu0 0
  %5821 = vperm.xlu0 %5820, %v4438
  %v5822 = vpop.permute.xlu0 %5821
  %5823 = vset.pattern.permute.xlu0 0
  %5824 = vperm.xlu0 %5823, %v4487
  %v5825 = vpop.permute.xlu0 %5824
  %5826 = vset.pattern.permute.xlu0 0
  %5827 = vperm.xlu0 %5826, %v4536
  %v5828 = vpop.permute.xlu0 %5827
  %5829 = vset.pattern.permute.xlu0 0
  %5830 = vperm.xlu0 %5829, %v4585
  %v5831 = vpop.permute.xlu0 %5830
  %5832 = vset.pattern.permute.xlu0 0
  %5833 = vperm.xlu0 %5832, %v4634
  %v5834 = vpop.permute.xlu0 %5833
  %5835 = vset.pattern.permute.xlu0 0
  %5836 = vperm.xlu0 %5835, %v4683
  %v5837 = vpop.permute.xlu0 %5836
  %5838 = vset.pattern.permute.xlu0 0
  %5839 = vperm.xlu0 %5838, %v4732
  %v5840 = vpop.permute.xlu0 %5839
  %5841 = vset.pattern.permute.xlu0 0
  %5842 = vperm.xlu0 %5841, %v4781
  %v5843 = vpop.permute.xlu0 %5842
  %5844 = vset.pattern.permute.xlu0 0
  %5845 = vperm.xlu0 %5844, %v4830
  %v5846 = vpop.permute.xlu0 %5845
  %5847 = vset.pattern.permute.xlu0 0
  %5848 = vperm.xlu0 %5847, %v4879
  %v5849 = vpop.permute.xlu0 %5848
  %5850 = vset.pattern.permute.xlu0 0
  %5851 = vperm.xlu0 %5850, %v4928
  %v5852 = vpop.permute.xlu0 %5851
  %5853 = vset.pattern.permute.xlu0 0
  %5854 = vperm.xlu0 %5853, %v4977
  %v5855 = vpop.permute.xlu0 %5854
  %5856 = vset.pattern.permute.xlu0 0
  %5857 = vperm.xlu0 %5856, %v5026
  %v5858 = vpop.permute.xlu0 %5857
  %5859 = vset.pattern.permute.xlu0 0
  %5860 = vperm.xlu0 %5859, %v5075
  %v5861 = vpop.permute.xlu0 %5860
  %5862 = vset.pattern.permute.xlu0 0
  %5863 = vperm.xlu0 %5862, %v5124
  %v5864 = vpop.permute.xlu0 %5863
  %5865 = vset.pattern.permute.xlu0 0
  %5866 = vperm.xlu0 %5865, %v5173
  %v5867 = vpop.permute.xlu0 %5866
  %5868 = vset.pattern.permute.xlu0 0
  %5869 = vperm.xlu0 %5868, %v5222
  %v5870 = vpop.permute.xlu0 %5869
  %5871 = vset.pattern.permute.xlu0 0
  %5872 = vperm.xlu0 %5871, %v5271
  %v5873 = vpop.permute.xlu0 %5872
  %5874 = vset.pattern.permute.xlu0 0
  %5875 = vperm.xlu0 %5874, %v5320
  %v5876 = vpop.permute.xlu0 %5875
  %5877 = vset.pattern.permute.xlu0 0
  %5878 = vperm.xlu0 %5877, %v5369
  %v5879 = vpop.permute.xlu0 %5878
  %5880 = vset.pattern.permute.xlu0 0
  %5881 = vperm.xlu0 %5880, %v5418
  %v5882 = vpop.permute.xlu0 %5881
  %5883 = vset.pattern.permute.xlu0 0
  %5884 = vperm.xlu0 %5883, %v5467
  %v5885 = vpop.permute.xlu0 %5884
  %5886 = vset.pattern.permute.xlu0 0
  %5887 = vperm.xlu0 %5886, %v5516
  %v5888 = vpop.permute.xlu0 %5887
  %5889 = vset.pattern.permute.xlu0 0
  %5890 = vperm.xlu0 %5889, %v5565
  %v5891 = vpop.permute.xlu0 %5890
  %5892 = vset.pattern.permute.xlu0 0
  %5893 = vperm.xlu0 %5892, %v5614
  %v5894 = vpop.permute.xlu0 %5893
  %5895 = vset.pattern.permute.xlu0 0
  %5896 = vperm.xlu0 %5895, %v5663
  %v5897 = vpop.permute.xlu0 %5896
  %5898 = vset.pattern.permute.xlu0 0
  %5899 = vperm.xlu0 %5898, %v5712
  %v5900 = vpop.permute.xlu0 %5899
  %5901 = vset.pattern.permute.xlu0 0
  %5902 = vperm.xlu0 %5901, %v5761
  %v5903 = vpop.permute.xlu0 %5902
  %5904 = vset.pattern.permute.xlu0 0
  %5905 = vperm.xlu0 %5904, %v5810
  %v5906 = vpop.permute.xlu0 %5905
  %v5907 = vlaneseq
  %v5908 = vand.u32 %v5907, 127
  %v5909 = vlaneseq
  %v5910 = vshrl.u32 %v5909, 7
  %v5911 = vsub.s32 %v5908, %v5910
  %v5912 = vrot.slane %v5813, %v5911
  %v5913 = vadd.s32 %v5908, 4294967288
  %v5914 = vlaneseq
  %v5915 = vshrl.u32 %v5914, 7
  %v5916 = vsub.s32 %v5913, %v5915
  %v5917 = vrot.slane %v5816, %v5916
  %vm5918 = vcmask 130112
  %v5919 = vsel %vm5918, %v5917, %v5912
  %v5920 = vadd.s32 %v5908, 4294967280
  %v5921 = vlaneseq
  %v5922 = vshrl.u32 %v5921, 7
  %v5923 = vsub.s32 %v5920, %v5922
  %v5924 = vrot.slane %v5819, %v5923
  %vm5925 = vcmask 195712
  %v5926 = vsel %vm5925, %v5924, %v5919
  %v5927 = vadd.s32 %v5908, 4294967272
  %v5928 = vlaneseq
  %v5929 = vshrl.u32 %v5928, 7
  %v5930 = vsub.s32 %v5927, %v5929
  %v5931 = vrot.slane %v5822, %v5930
  %vm5932 = vcmask 261312
  %v5933 = vsel %vm5932, %v5931, %v5926
  %v5934 = vadd.s32 %v5908, 4294967264
  %v5935 = vlaneseq
  %v5936 = vshrl.u32 %v5935, 7
  %v5937 = vsub.s32 %v5934, %v5936
  %v5938 = vrot.slane %v5825, %v5937
  %vm5939 = vcmask 326912
  %v5940 = vsel %vm5939, %v5938, %v5933
  %v5941 = vadd.s32 %v5908, 4294967256
  %v5942 = vlaneseq
  %v5943 = vshrl.u32 %v5942, 7
  %v5944 = vsub.s32 %v5941, %v5943
  %v5945 = vrot.slane %v5828, %v5944
  %vm5946 = vcmask 392512
  %v5947 = vsel %vm5946, %v5945, %v5940
  %v5948 = vadd.s32 %v5908, 4294967248
  %v5949 = vlaneseq
  %v5950 = vshrl.u32 %v5949, 7
  %v5951 = vsub.s32 %v5948, %v5950
  %v5952 = vrot.slane %v5831, %v5951
  %vm5953 = vcmask 458112
  %v5954 = vsel %vm5953, %v5952, %v5947
  %v5955 = vadd.s32 %v5908, 4294967240
  %v5956 = vlaneseq
  %v5957 = vshrl.u32 %v5956, 7
  %v5958 = vsub.s32 %v5955, %v5957
  %v5959 = vrot.slane %v5834, %v5958
  %vm5960 = vcmask 523712
  %v5961 = vsel %vm5960, %v5959, %v5954
  %v5962 = vadd.s32 %v5908, 4294967232
  %v5963 = vlaneseq
  %v5964 = vshrl.u32 %v5963, 7
  %v5965 = vsub.s32 %v5962, %v5964
  %v5966 = vrot.slane %v5837, %v5965
  %vm5967 = vcmask 589312
  %v5968 = vsel %vm5967, %v5966, %v5961
  %v5969 = vadd.s32 %v5908, 4294967224
  %v5970 = vlaneseq
  %v5971 = vshrl.u32 %v5970, 7
  %v5972 = vsub.s32 %v5969, %v5971
  %v5973 = vrot.slane %v5840, %v5972
  %vm5974 = vcmask 654912
  %v5975 = vsel %vm5974, %v5973, %v5968
  %v5976 = vadd.s32 %v5908, 4294967216
  %v5977 = vlaneseq
  %v5978 = vshrl.u32 %v5977, 7
  %v5979 = vsub.s32 %v5976, %v5978
  %v5980 = vrot.slane %v5843, %v5979
  %vm5981 = vcmask 720512
  %v5982 = vsel %vm5981, %v5980, %v5975
  %v5983 = vadd.s32 %v5908, 4294967208
  %v5984 = vlaneseq
  %v5985 = vshrl.u32 %v5984, 7
  %v5986 = vsub.s32 %v5983, %v5985
  %v5987 = vrot.slane %v5846, %v5986
  %vm5988 = vcmask 786112
  %v5989 = vsel %vm5988, %v5987, %v5982
  %v5990 = vadd.s32 %v5908, 4294967200
  %v5991 = vlaneseq
  %v5992 = vshrl.u32 %v5991, 7
  %v5993 = vsub.s32 %v5990, %v5992
  %v5994 = vrot.slane %v5849, %v5993
  %vm5995 = vcmask 851712
  %v5996 = vsel %vm5995, %v5994, %v5989
  %v5997 = vadd.s32 %v5908, 4294967192
  %v5998 = vlaneseq
  %v5999 = vshrl.u32 %v5998, 7
  %v6000 = vsub.s32 %v5997, %v5999
  %v6001 = vrot.slane %v5852, %v6000
  %vm6002 = vcmask 917312
  %v6003 = vsel %vm6002, %v6001, %v5996
  %v6004 = vadd.s32 %v5908, 4294967184
  %v6005 = vlaneseq
  %v6006 = vshrl.u32 %v6005, 7
  %v6007 = vsub.s32 %v6004, %v6006
  %v6008 = vrot.slane %v5855, %v6007
  %vm6009 = vcmask 982912
  %v6010 = vsel %vm6009, %v6008, %v6003
  %v6011 = vadd.s32 %v5908, 4294967176
  %v6012 = vlaneseq
  %v6013 = vshrl.u32 %v6012, 7
  %v6014 = vsub.s32 %v6011, %v6013
  %v6015 = vrot.slane %v5858, %v6014
  %vm6016 = vcmask 1048512
  %v6017 = vsel %vm6016, %v6015, %v6010
  %v6018 = vlaneseq
  %v6019 = vshrl.u32 %v6018, 7
  %v6020 = vsub.s32 %v5908, %v6019
  %v6021 = vrot.slane %v5861, %v6020
  %v6022 = vlaneseq
  %v6023 = vshrl.u32 %v6022, 7
  %v6024 = vsub.s32 %v5913, %v6023
  %v6025 = vrot.slane %v5864, %v6024
  %v6026 = vsel %vm5918, %v6025, %v6021
  %v6027 = vlaneseq
  %v6028 = vshrl.u32 %v6027, 7
  %v6029 = vsub.s32 %v5920, %v6028
  %v6030 = vrot.slane %v5867, %v6029
  %v6031 = vsel %vm5925, %v6030, %v6026
  %v6032 = vlaneseq
  %v6033 = vshrl.u32 %v6032, 7
  %v6034 = vsub.s32 %v5927, %v6033
  %v6035 = vrot.slane %v5870, %v6034
  %v6036 = vsel %vm5932, %v6035, %v6031
  %v6037 = vlaneseq
  %v6038 = vshrl.u32 %v6037, 7
  %v6039 = vsub.s32 %v5934, %v6038
  %v6040 = vrot.slane %v5873, %v6039
  %v6041 = vsel %vm5939, %v6040, %v6036
  %v6042 = vlaneseq
  %v6043 = vshrl.u32 %v6042, 7
  %v6044 = vsub.s32 %v5941, %v6043
  %v6045 = vrot.slane %v5876, %v6044
  %v6046 = vsel %vm5946, %v6045, %v6041
  %v6047 = vlaneseq
  %v6048 = vshrl.u32 %v6047, 7
  %v6049 = vsub.s32 %v5948, %v6048
  %v6050 = vrot.slane %v5879, %v6049
  %v6051 = vsel %vm5953, %v6050, %v6046
  %v6052 = vlaneseq
  %v6053 = vshrl.u32 %v6052, 7
  %v6054 = vsub.s32 %v5955, %v6053
  %v6055 = vrot.slane %v5882, %v6054
  %v6056 = vsel %vm5960, %v6055, %v6051
  %v6057 = vlaneseq
  %v6058 = vshrl.u32 %v6057, 7
  %v6059 = vsub.s32 %v5962, %v6058
  %v6060 = vrot.slane %v5885, %v6059
  %v6061 = vsel %vm5967, %v6060, %v6056
  %v6062 = vlaneseq
  %v6063 = vshrl.u32 %v6062, 7
  %v6064 = vsub.s32 %v5969, %v6063
  %v6065 = vrot.slane %v5888, %v6064
  %v6066 = vsel %vm5974, %v6065, %v6061
  %v6067 = vlaneseq
  %v6068 = vshrl.u32 %v6067, 7
  %v6069 = vsub.s32 %v5976, %v6068
  %v6070 = vrot.slane %v5891, %v6069
  %v6071 = vsel %vm5981, %v6070, %v6066
  %v6072 = vlaneseq
  %v6073 = vshrl.u32 %v6072, 7
  %v6074 = vsub.s32 %v5983, %v6073
  %v6075 = vrot.slane %v5894, %v6074
  %v6076 = vsel %vm5988, %v6075, %v6071
  %v6077 = vlaneseq
  %v6078 = vshrl.u32 %v6077, 7
  %v6079 = vsub.s32 %v5990, %v6078
  %v6080 = vrot.slane %v5897, %v6079
  %v6081 = vsel %vm5995, %v6080, %v6076
  %v6082 = vlaneseq
  %v6083 = vshrl.u32 %v6082, 7
  %v6084 = vsub.s32 %v5997, %v6083
  %v6085 = vrot.slane %v5900, %v6084
  %v6086 = vsel %vm6002, %v6085, %v6081
  %v6087 = vlaneseq
  %v6088 = vshrl.u32 %v6087, 7
  %v6089 = vsub.s32 %v6004, %v6088
  %v6090 = vrot.slane %v5903, %v6089
  %v6091 = vsel %vm6009, %v6090, %v6086
  %v6092 = vlaneseq
  %v6093 = vshrl.u32 %v6092, 7
  %v6094 = vsub.s32 %v6011, %v6093
  %v6095 = vrot.slane %v5906, %v6094
  %v6096 = vsel %vm6016, %v6095, %v6091
  %v6097 = vcombine.low %v6017, %v6096
  %v6099 = vunpack.c.l.s4 1966171168
  %v6100 = vunpack.c.0.s8 %v6099
  %v6101 = vlaneseq
  %v6102 = vshrl.u32 %v6101, 7
  %v6103 = vsub.s32 %v6100, %v6102
  %v6104 = vrot.slane %v6097, %v6103
  %v6106 = vunpack.c.l.s4 1966171168
  %v6107 = vunpack.c.0.s8 %v6106
  %v6108 = vlaneseq
  %v6109 = vshrl.u32 %v6108, 7
  %v6110 = vsub.s32 %v6107, %v6109
  %v6111 = vrot.slane %v6104, %v6110
  %v6113 = vlaneseq
  %vm6114 = vcmp.ge.s32.totalorder %v6113, 0
  %vm6115 = vcmp.lt.s32.totalorder %v6113, 256
  %vm6116 = vmand %vm6114, %vm6115
  %6117 = vst.msk [vmem:[%s6] sm:$0x3] %vm6116, %v6111
  // Predicated region
  $region26: #{hake_forward.1} parent=0 // pred_check
    _
  $region27: #{hake_forward.1} parent=0 // pred_check_branch
    %6119 = sbr.rel (0) target = $region29
  $region28: #{hake_forward.1} parent=0 // pred_region
    _
  $region29: #{hake_forward.1} parent=0 // pred_fallthru
    _
  // Predicated region
  $region30: #{hake_forward.1} parent=0 // pred_check
    _
  $region31: #{hake_forward.1} parent=0 // pred_check_branch
    %6121 = sbr.rel (0) target = $region33
  $region32: #{hake_forward.1} parent=0 // pred_region
    _
  $region33: #{hake_forward.1} parent=0 // pred_fallthru
    _

</llo_original>
